<compile_context>
chip_gen: v7x
topology: tpu7x:2x2x1
jax: 0.10.0
libtpu: 0.0.40
codegen_flags: <defaults>
</compile_context>

<pallas_src>
import functools

import jax
import jax.numpy as jnp
from jax import lax
from jax.experimental import pallas as pl
from jax.experimental.pallas import tpu as pltpu

LN_EPS = 1e-5  # torch.nn.LayerNorm default


# ----------------------------- kernel helpers ------------------------------ #
def _layernorm(x, gamma, beta):
    # gamma/beta broadcast against x's rows (supports per-row gamma/beta).
    mu = jnp.mean(x, axis=-1, keepdims=True)
    var = jnp.mean((x - mu) ** 2, axis=-1, keepdims=True)
    return (x - mu) * lax.rsqrt(var + LN_EPS) * gamma + beta


# --------------------------------- kernel ---------------------------------- #
def _slot_attention_kernel(iters, eps, K, D, H,
                           feat_ref, slots0_ref,
                           ln_feat_ref, wkv_ref,
                           ln_q_ref, wq_ref,
                           gru_wih_ref, gru_whh_ref, gru_bih_ref, gru_bhh_ref,
                           ln_res_ref, w1_ref, b1_ref, w2_ref, b2_ref,
                           slots_ref, attn_ref):
    # Row 0 of the stacked slot tile is the background slot.
    row_ids = lax.broadcasted_iota(jnp.int32, (K, 1), 0)
    is_bg = row_ids == 0                                   # (K, 1) bool

    def pick(x_all, width):
        # x_all: (K, 2*width) laid out as [fg-half | bg-half]; per-row select.
        return jnp.where(is_bg, x_all[:, width:2 * width], x_all[:, :width])

    # ---- feature LayerNorm + fused k/v projection (once per batch elem) ----
    feat = feat_ref[...]                                                     # (N, C)
    featn = _layernorm(feat, ln_feat_ref[0:1, :], ln_feat_ref[1:2, :])
    kv = jnp.dot(featn, wkv_ref[...], preferred_element_type=jnp.float32)    # (N, 2D)
    k = kv[:, 0:D]                                                           # (N, D)
    v = kv[:, D:2 * D]                                                       # (N, D)

    # q @ k^T is expressed with a trans_b dot_general so Mosaic's matmul
    # handles the transposed operand natively (no materialized k transpose).
    qk_dims = (((1,), (1,)), ((), ()))

    ln_q_g, ln_q_b = ln_q_ref[0], ln_q_ref[1]        # (K, D) each
    ln_r_g, ln_r_b = ln_res_ref[0], ln_res_ref[1]    # (K, D) each

    slots = slots0_ref[...]                          # (K, D), row 0 = bg
    attn = None
    for _ in range(iters):                           # static unroll, iters == 3
        slots_prev = slots

        # ---- q projection (both branches, one matmul; scale pre-folded) ----
        q_all = jnp.dot(_layernorm(slots, ln_q_g, ln_q_b), wq_ref[...],
                        preferred_element_type=jnp.float32)                  # (K, 2D)
        q = pick(q_all, D)                                                   # (K, D)

        dots = lax.dot_general(q, k, qk_dims,
                               preferred_element_type=jnp.float32)           # (K, N)

        # ---- softmax over the slot axis + attention-weight renorm ----
        m = jnp.max(dots, axis=0, keepdims=True)                             # (1, N)
        e = jnp.exp(dots - m)
        attn = e * pl.reciprocal(jnp.sum(e, axis=0, keepdims=True),
                                 approx=True) + eps                          # (K, N)
        w = attn * pl.reciprocal(jnp.sum(attn, axis=-1, keepdims=True),
                                 approx=True)                                # (K, N)
        upd = jnp.dot(w, v, preferred_element_type=jnp.float32)              # (K, D)

        # ---- fused GRU: both branches, all 3 gates per operand matmul ----
        gi = pick(jnp.dot(upd, gru_wih_ref[...],
                          preferred_element_type=jnp.float32), 3 * D)
        gi = gi + gru_bih_ref[...]                                           # (K, 3D)
        gh = pick(jnp.dot(slots_prev, gru_whh_ref[...],
                          preferred_element_type=jnp.float32), 3 * D)
        gh = gh + gru_bhh_ref[...]                                           # (K, 3D)
        r = jax.nn.sigmoid(gi[:, 0:D] + gh[:, 0:D])
        z = jax.nn.sigmoid(gi[:, D:2 * D] + gh[:, D:2 * D])
        n = jnp.tanh(gi[:, 2 * D:3 * D] + r * gh[:, 2 * D:3 * D])
        gru_out = (1.0 - z) * n + z * slots_prev                             # (K, D)

        # ---- fused residual MLP (both branches) ----
        x = _layernorm(gru_out, ln_r_g, ln_r_b)
        h1_all = jnp.dot(x, w1_ref[...], preferred_element_type=jnp.float32)  # (K, 2H)
        h1 = jnp.maximum(pick(h1_all, H) + b1_ref[...], 0.0)                  # (K, H)
        h2_all = jnp.dot(h1, w2_ref[...], preferred_element_type=jnp.float32)  # (K, 2D)
        slots = gru_out + pick(h2_all, D) + b2_ref[...]                       # (K, D)

    # single aligned full-block stores (bg row already at index 0)
    slots_ref[...] = slots
    attn_ref[...] = attn


# ------------------------- parameter packing (glue) ------------------------- #
PACKED_ORDER = ["ln_feat", "wkv", "ln_q", "wq",
                "gru_wih", "gru_whh", "gru_bih", "gru_bhh",
                "ln_res", "w1", "b1", "w2", "b2"]


def pack_params(p, K, D, H, scale):
    """Pack the per-branch / per-gate params into fused, lane-dense arrays."""

    def fuse_gates(w):          # (3, D, D), gate order (r, z, n) -> (D, 3D)
        return jnp.concatenate([w[0], w[1], w[2]], axis=1)

    def rows_bg_fg(bg, fg):     # (1, X) bg row + (1, X) fg row -> (K, X) table
        return jnp.concatenate([bg, jnp.tile(fg, (K - 1, 1))], axis=0)

    def ln_rows(ln_bg, ln_fg):  # (2, dim) gamma/beta each -> (2, K, dim)
        return jnp.stack([rows_bg_fg(ln_bg[0:1], ln_fg[0:1]),
                          rows_bg_fg(ln_bg[1:2], ln_fg[1:2])], axis=0)

    return {
        "ln_feat": p["featln"],                                            # (2, C)
        "wkv": jnp.concatenate([p["wk"], p["wv"]], axis=1),                # (C, 2D)
        "ln_q": ln_rows(p["qbgln"], p["qln"]),                             # (2, K, D)
        # dots scale (= slot_dim ** -0.5) folded into the fused q weight.
        "wq": jnp.concatenate([p["wq"], p["wqbg"]], axis=1)
              * jnp.float32(scale),                                        # (D, 2D)
        "gru_wih": jnp.concatenate([fuse_gates(p["gf_wih"]),
                                    fuse_gates(p["gb_wih"])], axis=1),     # (D, 6D)
        "gru_whh": jnp.concatenate([fuse_gates(p["gf_whh"]),
                                    fuse_gates(p["gb_whh"])], axis=1),     # (D, 6D)
        "gru_bih": rows_bg_fg(p["gb_bih"].reshape(1, 3 * D),
                              p["gf_bih"].reshape(1, 3 * D)),              # (K, 3D)
        "gru_bhh": rows_bg_fg(p["gb_bhh"].reshape(1, 3 * D),
                              p["gf_bhh"].reshape(1, 3 * D)),              # (K, 3D)
        "ln_res": ln_rows(p["rbln"], p["rln"]),                            # (2, K, D)
        "w1": jnp.concatenate([p["rw1"], p["rbw1"]], axis=1),              # (D, 2H)
        "b1": rows_bg_fg(p["rbb1"], p["rb1"]),                             # (K, H)
        "w2": jnp.concatenate([p["rw2"], p["rbw2"]], axis=1),              # (H, 2D)
        "b2": rows_bg_fg(p["rbb2"], p["rb2"]),                             # (K, D)
    }


# -------------------------------- wrapper ----------------------------------- #
def slot_attention(feat, slot_fg0, slot_bg0, params, *, iters=3, eps=1e-8):
    B, N, C = feat.shape
    Kf, D = slot_fg0.shape[1], slot_fg0.shape[2]
    K = Kf + 1
    H = params["rw1"].shape[1]
    scale = float(D) ** (-0.5)

    # stacked slot tile, row 0 = background (matches output ordering)
    slots0 = jnp.concatenate([slot_bg0, slot_fg0], axis=1)        # (B, K, D)
    packed = pack_params(params, K, D, H, scale)
    plist = [packed[name] for name in PACKED_ORDER]

    kernel = functools.partial(_slot_attention_kernel, iters, eps, K, D, H)

    def batch_spec(arr):
        s = arr.shape
        t = len(s) - 1
        return pl.BlockSpec((None,) + s[1:], lambda b, _t=t: (b,) + (0,) * _t)

    def full_spec(arr):
        s = arr.shape
        nd = len(s)
        return pl.BlockSpec(s, lambda b, _nd=nd: (0,) * _nd)

    in_specs = ([batch_spec(feat), batch_spec(slots0)]
                + [full_spec(x) for x in plist])
    out_specs = (
        pl.BlockSpec((None, K, D), lambda b: (b, 0, 0)),
        pl.BlockSpec((None, K, N), lambda b: (b, 0, 0)),
    )
    out_shape = (
        jax.ShapeDtypeStruct((B, K, D), jnp.float32),
        jax.ShapeDtypeStruct((B, K, N), jnp.float32),
    )

    return pl.pallas_call(
        kernel,
        grid=(B,),
        in_specs=in_specs,
        out_specs=out_specs,
        out_shape=out_shape,
        # batch elements are independent -> let v7x shard them across both TCs
        compiler_params=pltpu.CompilerParams(dimension_semantics=("parallel",)),
    )(feat, slots0, *plist)


# ------------------- pure-JAX reference (PyTorch spec, unfused) ------------- #
def slot_attention_ref(feat, slot_fg0, slot_bg0, p, *, iters=3, eps=1e-8):
    D = slot_fg0.shape[-1]
    scale = float(D) ** (-0.5)
    hp = lax.Precision.HIGHEST

    def ln(x, gb):
        mu = x.mean(-1, keepdims=True)
        var = ((x - mu) ** 2).mean(-1, keepdims=True)
        return (x - mu) / jnp.sqrt(var + LN_EPS) * gb[0] + gb[1]

    def grucell(x, h, wih, whh, bih, bhh):
        gi = [jnp.dot(x, wih[g], precision=hp) + bih[g] for g in range(3)]
        gh = [jnp.dot(h, whh[g], precision=hp) + bhh[g] for g in range(3)]
        r = jax.nn.sigmoid(gi[0] + gh[0])
        z = jax.nn.sigmoid(gi[1] + gh[1])
        n = jnp.tanh(gi[2] + r * gh[2])
        return (1.0 - z) * n + z * h

    def mlp(x, lngb, w1, b1, w2, b2):
        h = jnp.maximum(jnp.dot(ln(x, lngb), w1, precision=hp) + b1, 0.0)
        return jnp.dot(h, w2, precision=hp) + b2

    featn = ln(feat, p["featln"])
    k = jnp.dot(featn, p["wk"], precision=hp)
    v = jnp.dot(featn, p["wv"], precision=hp)
    slot_fg, slot_bg = slot_fg0, slot_bg0
    attn = None
    for _ in range(iters):
        prev_fg, prev_bg = slot_fg, slot_bg
        q_fg = jnp.dot(ln(slot_fg, p["qln"]), p["wq"], precision=hp)
        q_bg = jnp.dot(ln(slot_bg, p["qbgln"]), p["wqbg"], precision=hp)
        dots_fg = jnp.einsum("bid,bjd->bij", q_fg, k, precision=hp) * scale
        dots_bg = jnp.einsum("bid,bjd->bij", q_bg, k, precision=hp) * scale
        dots = jnp.concatenate([dots_bg, dots_fg], axis=1)
        attn = jax.nn.softmax(dots, axis=1) + eps
        attn_bg, attn_fg = attn[:, 0:1, :], attn[:, 1:, :]
        w_bg = attn_bg / attn_bg.sum(-1, keepdims=True)
        w_fg = attn_fg / attn_fg.sum(-1, keepdims=True)
        upd_bg = jnp.einsum("bij,bjd->bid", w_bg, v, precision=hp)
        upd_fg = jnp.einsum("bij,bjd->bid", w_fg, v, precision=hp)
        slot_bg = grucell(upd_bg, prev_bg,
                          p["gb_wih"], p["gb_whh"], p["gb_bih"], p["gb_bhh"])
        slot_fg = grucell(upd_fg, prev_fg,
                          p["gf_wih"], p["gf_whh"], p["gf_bih"], p["gf_bhh"])
        slot_bg = slot_bg + mlp(slot_bg, p["rbln"],
                                p["rbw1"], p["rbb1"], p["rbw2"], p["rbb2"])
        slot_fg = slot_fg + mlp(slot_fg, p["rln"],
                                p["rw1"], p["rb1"], p["rw2"], p["rb2"])
    slots = jnp.concatenate([slot_bg, slot_fg], axis=1)
    return slots, attn


# ----------------------------------- main ----------------------------------- #
if __name__ == "__main__":
    # SlotAttention(num_slots=5, in_dim=64, slot_dim=64, iters=3, hidden_dim=128)
    B, N, C = 2, 64, 64          # N = 8x8 flattened spatial tokens
    K = 5                        # num_slots (1 background + 4 foreground)
    D = 64                       # slot_dim
    H = 128                      # hidden_dim (max(slot_dim, 128))
    iters, eps = 3, 1e-8

    keys = iter(jax.random.split(jax.random.PRNGKey(0), 40))

    def nrm(shape, s=0.1):
        return (s * jax.random.normal(next(keys), shape)).astype(jnp.float32)

    def ln_gb(dim):
        return jnp.concatenate([jnp.ones((1, dim), jnp.float32),
                                jnp.zeros((1, dim), jnp.float32)], axis=0)

    params = {
        "featln": ln_gb(C),
        "wk": nrm((C, D)), "wv": nrm((C, D)),
        "qln": ln_gb(D), "wq": nrm((D, D)),
        "qbgln": ln_gb(D), "wqbg": nrm((D, D)),
        # GRU (fg): gate order (r, z, n), "x @ W" convention
        "gf_wih": nrm((3, D, D)), "gf_whh": nrm((3, D, D)),
        "gf_bih": nrm((3, D), 0.01), "gf_bhh": nrm((3, D), 0.01),
        # GRU (bg)
        "gb_wih": nrm((3, D, D)), "gb_whh": nrm((3, D, D)),
        "gb_bih": nrm((3, D), 0.01), "gb_bhh": nrm((3, D), 0.01),
        # to_res (fg)
        "rln": ln_gb(D), "rw1": nrm((D, H)), "rb1": nrm((1, H), 0.01),
        "rw2": nrm((H, D)), "rb2": nrm((1, D), 0.01),
        # to_res_bg
        "rbln": ln_gb(D), "rbw1": nrm((D, H)), "rbb1": nrm((1, H), 0.01),
        "rbw2": nrm((H, D)), "rbb2": nrm((1, D), 0.01),
    }

    # slot initialisation (mu + exp(logsigma) * randn) -- plain JAX glue
    # TODO(synk): torch.randn_like noise is reproduced with jax.random here.
    slots_mu = nrm((1, K - 1, D), 1.0)
    slots_logsigma = nrm((1, K - 1, D), 0.1)
    slots_mu_bg = nrm((1, 1, D), 1.0)
    slots_logsigma_bg = nrm((1, 1, D), 0.1)
    slot_fg0 = (slots_mu + jnp.exp(slots_logsigma)
                * jax.random.normal(next(keys), (B, K - 1, D))).astype(jnp.float32)
    slot_bg0 = (slots_mu_bg + jnp.exp(slots_logsigma_bg)
                * jax.random.normal(next(keys), (B, 1, D))).astype(jnp.float32)

    feat = jax.random.normal(next(keys), (B, N, C), dtype=jnp.float32)

    slots, attn = slot_attention(feat, slot_fg0, slot_bg0, params,
                                 iters=iters, eps=eps)
    slots, attn = jax.block_until_ready((slots, attn))

    assert slots.shape == (B, K, D) and attn.shape == (B, K, N)
    assert bool(jnp.all(jnp.isfinite(slots))) and bool(jnp.all(jnp.isfinite(attn)))

    # loose-tolerance sanity check against the unfused pure-JAX reference
    # (catches weight-packing / branch-ordering bugs; approx EUP reciprocal
    #  and MXU rounding stay well inside this margin)
    slots_r, attn_r = slot_attention_ref(feat, slot_fg0, slot_bg0, params,
                                         iters=iters, eps=eps)
    assert bool(jnp.allclose(slots, slots_r, rtol=5e-2, atol=5e-2)), "slots mismatch"
    assert bool(jnp.allclose(attn, attn_r, rtol=5e-2, atol=5e-2)), "attn mismatch"

    print("KERNEL_OK")
</pallas_src>

<mosaic_0001>
module attributes {stable_mosaic.version = 11 : i64} {
  func.func @_slot_attention_kernel(%arg0: i32, %arg1: memref<1x64x64xf32, #tpu.memory_space<vmem>>, %arg2: memref<1x5x64xf32, #tpu.memory_space<vmem>>, %arg3: memref<2x64xf32, #tpu.memory_space<vmem>>, %arg4: memref<64x128xf32, #tpu.memory_space<vmem>>, %arg5: memref<2x5x64xf32, #tpu.memory_space<vmem>>, %arg6: memref<64x128xf32, #tpu.memory_space<vmem>>, %arg7: memref<64x384xf32, #tpu.memory_space<vmem>>, %arg8: memref<64x384xf32, #tpu.memory_space<vmem>>, %arg9: memref<5x192xf32, #tpu.memory_space<vmem>>, %arg10: memref<5x192xf32, #tpu.memory_space<vmem>>, %arg11: memref<2x5x64xf32, #tpu.memory_space<vmem>>, %arg12: memref<64x256xf32, #tpu.memory_space<vmem>>, %arg13: memref<5x128xf32, #tpu.memory_space<vmem>>, %arg14: memref<128x128xf32, #tpu.memory_space<vmem>>, %arg15: memref<5x64xf32, #tpu.memory_space<vmem>>, %arg16: memref<1x5x64xf32, #tpu.memory_space<vmem>>, %arg17: memref<1x5x64xf32, #tpu.memory_space<vmem>>) attributes {dimension_semantics = [#tpu.dimension_semantics<parallel>], iteration_bounds = array<i64: 2>, scalar_prefetch = 0 : i64, scratch_operands = 0 : i64, tpu.core_type = #tpu.core_type<tc>, window_params = [{transform_indices = @transform_0, window_bounds = array<i64: 1, 64, 64>}, {transform_indices = @transform_1, window_bounds = array<i64: 1, 5, 64>}, {pipeline_mode = #tpu.pipeline_mode<synchronous>, transform_indices = @transform_2, window_bounds = array<i64: 2, 64>}, {pipeline_mode = #tpu.pipeline_mode<synchronous>, transform_indices = @transform_3, window_bounds = array<i64: 64, 128>}, {pipeline_mode = #tpu.pipeline_mode<synchronous>, transform_indices = @transform_4, window_bounds = array<i64: 2, 5, 64>}, {pipeline_mode = #tpu.pipeline_mode<synchronous>, transform_indices = @transform_5, window_bounds = array<i64: 64, 128>}, {pipeline_mode = #tpu.pipeline_mode<synchronous>, transform_indices = @transform_6, window_bounds = array<i64: 64, 384>}, {pipeline_mode = #tpu.pipeline_mode<synchronous>, transform_indices = @transform_7, window_bounds = array<i64: 64, 384>}, {pipeline_mode = #tpu.pipeline_mode<synchronous>, transform_indices = @transform_8, window_bounds = array<i64: 5, 192>}, {pipeline_mode = #tpu.pipeline_mode<synchronous>, transform_indices = @transform_9, window_bounds = array<i64: 5, 192>}, {pipeline_mode = #tpu.pipeline_mode<synchronous>, transform_indices = @transform_10, window_bounds = array<i64: 2, 5, 64>}, {pipeline_mode = #tpu.pipeline_mode<synchronous>, transform_indices = @transform_11, window_bounds = array<i64: 64, 256>}, {pipeline_mode = #tpu.pipeline_mode<synchronous>, transform_indices = @transform_12, window_bounds = array<i64: 5, 128>}, {pipeline_mode = #tpu.pipeline_mode<synchronous>, transform_indices = @transform_13, window_bounds = array<i64: 128, 128>}, {pipeline_mode = #tpu.pipeline_mode<synchronous>, transform_indices = @transform_14, window_bounds = array<i64: 5, 64>}, {transform_indices = @transform_15, window_bounds = array<i64: 1, 5, 64>}, {transform_indices = @transform_16, window_bounds = array<i64: 1, 5, 64>}]} {
    %0 = tpu.iota {dimensions = array<i32: 0>} : vector<5x1xi32>
    %c0_i32 = arith.constant 0 : i32
    %1 = vector.broadcast %c0_i32 : i32 to vector<5x1xi32>
    %2 = arith.cmpi eq, %0, %1 : vector<5x1xi32>
    %c0 = arith.constant 0 : index
    %c0_0 = arith.constant 0 : index
    %c0_1 = arith.constant 0 : index
    %3 = vector.load %arg1[%c0, %c0_0, %c0_1] : memref<1x64x64xf32, #tpu.memory_space<vmem>>, vector<1x64x64xf32>
    %4 = vector.shape_cast %3 : vector<1x64x64xf32> to vector<64x64xf32>
    %c0_2 = arith.constant 0 : index
    %c0_3 = arith.constant 0 : index
    %5 = vector.load %arg3[%c0_2, %c0_3] : memref<2x64xf32, #tpu.memory_space<vmem>>, vector<1x64xf32>
    %c1 = arith.constant 1 : index
    %c0_4 = arith.constant 0 : index
    %6 = vector.load %arg3[%c1, %c0_4] : memref<2x64xf32, #tpu.memory_space<vmem>>, vector<1x64xf32>
    %cst = arith.constant dense<0.000000e+00> : vector<64xf32>
    %7 = vector.multi_reduction <add>, %4, %cst [1] : vector<64x64xf32> to vector<64xf32>
    %8 = vector.shape_cast %7 : vector<64xf32> to vector<64x1xf32>
    %cst_5 = arith.constant 6.400000e+01 : f32
    %9 = vector.broadcast %cst_5 : f32 to vector<64x1xf32>
    %10 = arith.divf %8, %9 : vector<64x1xf32>
    %11 = vector.broadcast %10 : vector<64x1xf32> to vector<64x64xf32>
    %12 = arith.subf %4, %11 : vector<64x64xf32>
    %13 = arith.mulf %12, %12 : vector<64x64xf32>
    %cst_6 = arith.constant dense<0.000000e+00> : vector<64xf32>
    %14 = vector.multi_reduction <add>, %13, %cst_6 [1] : vector<64x64xf32> to vector<64xf32>
    %15 = vector.shape_cast %14 : vector<64xf32> to vector<64x1xf32>
    %cst_7 = arith.constant 6.400000e+01 : f32
    %16 = vector.broadcast %cst_7 : f32 to vector<64x1xf32>
    %17 = arith.divf %15, %16 : vector<64x1xf32>
    %18 = vector.broadcast %10 : vector<64x1xf32> to vector<64x64xf32>
    %19 = arith.subf %4, %18 : vector<64x64xf32>
    %cst_8 = arith.constant 9.99999974E-6 : f32
    %20 = vector.broadcast %cst_8 : f32 to vector<64x1xf32>
    %21 = arith.addf %17, %20 : vector<64x1xf32>
    %22 = math.rsqrt %21 : vector<64x1xf32>
    %23 = vector.broadcast %22 : vector<64x1xf32> to vector<64x64xf32>
    %24 = arith.mulf %19, %23 : vector<64x64xf32>
    %25 = vector.broadcast %5 : vector<1x64xf32> to vector<64x64xf32>
    %26 = arith.mulf %24, %25 : vector<64x64xf32>
    %27 = vector.broadcast %6 : vector<1x64xf32> to vector<64x64xf32>
    %28 = arith.addf %26, %27 : vector<64x64xf32>
    %c0_9 = arith.constant 0 : index
    %c0_10 = arith.constant 0 : index
    %29 = vector.load %arg4[%c0_9, %c0_10] : memref<64x128xf32, #tpu.memory_space<vmem>>, vector<64x128xf32>
    %cst_11 = arith.constant dense<0.000000e+00> : vector<64x128xf32>
    %30 = tpu.matmul %28, %29, %cst_11 {dimension_numbers = #tpu.dot_dimension_numbers<[1], [0], [0], [1], [0, 0, 1, 1], [], []>} : vector<64x64xf32>, vector<64x128xf32>, vector<64x128xf32> -> vector<64x128xf32>
    %31 = vector.extract_strided_slice %30 {offsets = [0, 0], sizes = [64, 64], strides = [1, 1]} : vector<64x128xf32> to vector<64x64xf32>
    %32 = vector.extract_strided_slice %30 {offsets = [0, 64], sizes = [64, 64], strides = [1, 1]} : vector<64x128xf32> to vector<64x64xf32>
    %c0_12 = arith.constant 0 : index
    %c0_13 = arith.constant 0 : index
    %c0_14 = arith.constant 0 : index
    %33 = vector.load %arg5[%c0_12, %c0_13, %c0_14] : memref<2x5x64xf32, #tpu.memory_space<vmem>>, vector<1x5x64xf32>
    %34 = vector.shape_cast %33 : vector<1x5x64xf32> to vector<5x64xf32>
    %c1_15 = arith.constant 1 : index
    %c0_16 = arith.constant 0 : index
    %c0_17 = arith.constant 0 : index
    %35 = vector.load %arg5[%c1_15, %c0_16, %c0_17] : memref<2x5x64xf32, #tpu.memory_space<vmem>>, vector<1x5x64xf32>
    %36 = vector.shape_cast %35 : vector<1x5x64xf32> to vector<5x64xf32>
    %c0_18 = arith.constant 0 : index
    %c0_19 = arith.constant 0 : index
    %c0_20 = arith.constant 0 : index
    %37 = vector.load %arg11[%c0_18, %c0_19, %c0_20] : memref<2x5x64xf32, #tpu.memory_space<vmem>>, vector<1x5x64xf32>
    %38 = vector.shape_cast %37 : vector<1x5x64xf32> to vector<5x64xf32>
    %c1_21 = arith.constant 1 : index
    %c0_22 = arith.constant 0 : index
    %c0_23 = arith.constant 0 : index
    %39 = vector.load %arg11[%c1_21, %c0_22, %c0_23] : memref<2x5x64xf32, #tpu.memory_space<vmem>>, vector<1x5x64xf32>
    %40 = vector.shape_cast %39 : vector<1x5x64xf32> to vector<5x64xf32>
    %c0_24 = arith.constant 0 : index
    %c0_25 = arith.constant 0 : index
    %c0_26 = arith.constant 0 : index
    %41 = vector.load %arg2[%c0_24, %c0_25, %c0_26] : memref<1x5x64xf32, #tpu.memory_space<vmem>>, vector<1x5x64xf32>
    %42 = vector.shape_cast %41 : vector<1x5x64xf32> to vector<5x64xf32>
    %cst_27 = arith.constant dense<0.000000e+00> : vector<5xf32>
    %43 = vector.multi_reduction <add>, %42, %cst_27 [1] : vector<5x64xf32> to vector<5xf32>
    %44 = vector.shape_cast %43 : vector<5xf32> to vector<5x1xf32>
    %cst_28 = arith.constant 6.400000e+01 : f32
    %45 = vector.broadcast %cst_28 : f32 to vector<5x1xf32>
    %46 = arith.divf %44, %45 : vector<5x1xf32>
    %47 = vector.broadcast %46 : vector<5x1xf32> to vector<5x64xf32>
    %48 = arith.subf %42, %47 : vector<5x64xf32>
    %49 = arith.mulf %48, %48 : vector<5x64xf32>
    %cst_29 = arith.constant dense<0.000000e+00> : vector<5xf32>
    %50 = vector.multi_reduction <add>, %49, %cst_29 [1] : vector<5x64xf32> to vector<5xf32>
    %51 = vector.shape_cast %50 : vector<5xf32> to vector<5x1xf32>
    %cst_30 = arith.constant 6.400000e+01 : f32
    %52 = vector.broadcast %cst_30 : f32 to vector<5x1xf32>
    %53 = arith.divf %51, %52 : vector<5x1xf32>
    %54 = vector.broadcast %46 : vector<5x1xf32> to vector<5x64xf32>
    %55 = arith.subf %42, %54 : vector<5x64xf32>
    %cst_31 = arith.constant 9.99999974E-6 : f32
    %56 = vector.broadcast %cst_31 : f32 to vector<5x1xf32>
    %57 = arith.addf %53, %56 : vector<5x1xf32>
    %58 = math.rsqrt %57 : vector<5x1xf32>
    %59 = vector.broadcast %58 : vector<5x1xf32> to vector<5x64xf32>
    %60 = arith.mulf %55, %59 : vector<5x64xf32>
    %61 = arith.mulf %60, %34 : vector<5x64xf32>
    %62 = arith.addf %61, %36 : vector<5x64xf32>
    %c0_32 = arith.constant 0 : index
    %c0_33 = arith.constant 0 : index
    %63 = vector.load %arg6[%c0_32, %c0_33] : memref<64x128xf32, #tpu.memory_space<vmem>>, vector<64x128xf32>
    %cst_34 = arith.constant dense<0.000000e+00> : vector<5x128xf32>
    %64 = tpu.matmul %62, %63, %cst_34 {dimension_numbers = #tpu.dot_dimension_numbers<[1], [0], [0], [1], [0, 0, 1, 1], [], []>} : vector<5x64xf32>, vector<64x128xf32>, vector<5x128xf32> -> vector<5x128xf32>
    %65 = vector.extract_strided_slice %64 {offsets = [0, 64], sizes = [5, 64], strides = [1, 1]} : vector<5x128xf32> to vector<5x64xf32>
    %66 = vector.extract_strided_slice %64 {offsets = [0, 0], sizes = [5, 64], strides = [1, 1]} : vector<5x128xf32> to vector<5x64xf32>
    %67 = vector.shape_cast %2 : vector<5x1xi1> to vector<5x1xi1>
    %68 = vector.broadcast %67 : vector<5x1xi1> to vector<5x64xi1>
    %69 = arith.select %68, %65, %66 : vector<5x64xi1>, vector<5x64xf32>
    %cst_35 = arith.constant dense<0.000000e+00> : vector<5x64xf32>
    %70 = tpu.matmul %69, %31, %cst_35 {dimension_numbers = #tpu.dot_dimension_numbers<[1], [1], [0], [0], [0, 0, 1, 0], [], []>} : vector<5x64xf32>, vector<64x64xf32>, vector<5x64xf32> -> vector<5x64xf32>
    %cst_36 = arith.constant dense<0xFF800000> : vector<64xf32>
    %71 = vector.multi_reduction <maximumf>, %70, %cst_36 [0] : vector<5x64xf32> to vector<64xf32>
    %72 = vector.shape_cast %71 : vector<64xf32> to vector<1x64xf32>
    %73 = vector.broadcast %72 : vector<1x64xf32> to vector<5x64xf32>
    %74 = arith.subf %70, %73 : vector<5x64xf32>
    %75 = math.exp %74 : vector<5x64xf32>
    %cst_37 = arith.constant dense<0.000000e+00> : vector<64xf32>
    %76 = vector.multi_reduction <add>, %75, %cst_37 [0] : vector<5x64xf32> to vector<64xf32>
    %77 = vector.shape_cast %76 : vector<64xf32> to vector<1x64xf32>
    %78 = tpu.reciprocal %77 {approx = true} : vector<1x64xf32> -> vector<1x64xf32>
    %79 = vector.broadcast %78 : vector<1x64xf32> to vector<5x64xf32>
    %80 = arith.mulf %75, %79 : vector<5x64xf32>
    %cst_38 = arith.constant 9.99999993E-9 : f32
    %81 = vector.broadcast %cst_38 : f32 to vector<5x64xf32>
    %82 = arith.addf %80, %81 : vector<5x64xf32>
    %cst_39 = arith.constant dense<0.000000e+00> : vector<5xf32>
    %83 = vector.multi_reduction <add>, %82, %cst_39 [1] : vector<5x64xf32> to vector<5xf32>
    %84 = vector.shape_cast %83 : vector<5xf32> to vector<5x1xf32>
    %85 = tpu.reciprocal %84 {approx = true} : vector<5x1xf32> -> vector<5x1xf32>
    %86 = vector.broadcast %85 : vector<5x1xf32> to vector<5x64xf32>
    %87 = arith.mulf %82, %86 : vector<5x64xf32>
    %cst_40 = arith.constant dense<0.000000e+00> : vector<5x64xf32>
    %88 = tpu.matmul %87, %32, %cst_40 {dimension_numbers = #tpu.dot_dimension_numbers<[1], [0], [0], [1], [0, 0, 1, 1], [], []>} : vector<5x64xf32>, vector<64x64xf32>, vector<5x64xf32> -> vector<5x64xf32>
    %c0_41 = arith.constant 0 : index
    %c0_42 = arith.constant 0 : index
    %89 = vector.load %arg7[%c0_41, %c0_42] : memref<64x384xf32, #tpu.memory_space<vmem>>, vector<64x384xf32>
    %cst_43 = arith.constant dense<0.000000e+00> : vector<5x384xf32>
    %90 = tpu.matmul %88, %89, %cst_43 {dimension_numbers = #tpu.dot_dimension_numbers<[1], [0], [0], [1], [0, 0, 1, 1], [], []>} : vector<5x64xf32>, vector<64x384xf32>, vector<5x384xf32> -> vector<5x384xf32>
    %91 = vector.extract_strided_slice %90 {offsets = [0, 192], sizes = [5, 192], strides = [1, 1]} : vector<5x384xf32> to vector<5x192xf32>
    %92 = vector.extract_strided_slice %90 {offsets = [0, 0], sizes = [5, 192], strides = [1, 1]} : vector<5x384xf32> to vector<5x192xf32>
    %93 = vector.shape_cast %2 : vector<5x1xi1> to vector<5x1xi1>
    %94 = vector.broadcast %93 : vector<5x1xi1> to vector<5x192xi1>
    %95 = arith.select %94, %91, %92 : vector<5x192xi1>, vector<5x192xf32>
    %c0_44 = arith.constant 0 : index
    %c0_45 = arith.constant 0 : index
    %96 = vector.load %arg9[%c0_44, %c0_45] : memref<5x192xf32, #tpu.memory_space<vmem>>, vector<5x192xf32>
    %97 = arith.addf %95, %96 : vector<5x192xf32>
    %c0_46 = arith.constant 0 : index
    %c0_47 = arith.constant 0 : index
    %98 = vector.load %arg8[%c0_46, %c0_47] : memref<64x384xf32, #tpu.memory_space<vmem>>, vector<64x384xf32>
    %cst_48 = arith.constant dense<0.000000e+00> : vector<5x384xf32>
    %99 = tpu.matmul %42, %98, %cst_48 {dimension_numbers = #tpu.dot_dimension_numbers<[1], [0], [0], [1], [0, 0, 1, 1], [], []>} : vector<5x64xf32>, vector<64x384xf32>, vector<5x384xf32> -> vector<5x384xf32>
    %100 = vector.extract_strided_slice %99 {offsets = [0, 192], sizes = [5, 192], strides = [1, 1]} : vector<5x384xf32> to vector<5x192xf32>
    %101 = vector.extract_strided_slice %99 {offsets = [0, 0], sizes = [5, 192], strides = [1, 1]} : vector<5x384xf32> to vector<5x192xf32>
    %102 = vector.shape_cast %2 : vector<5x1xi1> to vector<5x1xi1>
    %103 = vector.broadcast %102 : vector<5x1xi1> to vector<5x192xi1>
    %104 = arith.select %103, %100, %101 : vector<5x192xi1>, vector<5x192xf32>
    %c0_49 = arith.constant 0 : index
    %c0_50 = arith.constant 0 : index
    %105 = vector.load %arg10[%c0_49, %c0_50] : memref<5x192xf32, #tpu.memory_space<vmem>>, vector<5x192xf32>
    %106 = arith.addf %104, %105 : vector<5x192xf32>
    %107 = vector.extract_strided_slice %97 {offsets = [0, 0], sizes = [5, 64], strides = [1, 1]} : vector<5x192xf32> to vector<5x64xf32>
    %108 = vector.extract_strided_slice %106 {offsets = [0, 0], sizes = [5, 64], strides = [1, 1]} : vector<5x192xf32> to vector<5x64xf32>
    %109 = arith.addf %107, %108 : vector<5x64xf32>
    %110 = arith.negf %109 : vector<5x64xf32>
    %111 = math.exp %110 : vector<5x64xf32>
    %cst_51 = arith.constant 1.000000e+00 : f32
    %112 = vector.broadcast %cst_51 : f32 to vector<5x64xf32>
    %113 = arith.addf %112, %111 : vector<5x64xf32>
    %114 = arith.divf %112, %113 : vector<5x64xf32>
    %115 = vector.extract_strided_slice %97 {offsets = [0, 64], sizes = [5, 64], strides = [1, 1]} : vector<5x192xf32> to vector<5x64xf32>
    %116 = vector.extract_strided_slice %106 {offsets = [0, 64], sizes = [5, 64], strides = [1, 1]} : vector<5x192xf32> to vector<5x64xf32>
    %117 = arith.addf %115, %116 : vector<5x64xf32>
    %118 = arith.negf %117 : vector<5x64xf32>
    %119 = math.exp %118 : vector<5x64xf32>
    %cst_52 = arith.constant 1.000000e+00 : f32
    %120 = vector.broadcast %cst_52 : f32 to vector<5x64xf32>
    %121 = arith.addf %120, %119 : vector<5x64xf32>
    %122 = arith.divf %120, %121 : vector<5x64xf32>
    %123 = vector.extract_strided_slice %97 {offsets = [0, 128], sizes = [5, 64], strides = [1, 1]} : vector<5x192xf32> to vector<5x64xf32>
    %124 = vector.extract_strided_slice %106 {offsets = [0, 128], sizes = [5, 64], strides = [1, 1]} : vector<5x192xf32> to vector<5x64xf32>
    %125 = arith.mulf %114, %124 : vector<5x64xf32>
    %126 = arith.addf %123, %125 : vector<5x64xf32>
    %127 = math.tanh %126 : vector<5x64xf32>
    %cst_53 = arith.constant 1.000000e+00 : f32
    %128 = vector.broadcast %cst_53 : f32 to vector<5x64xf32>
    %129 = arith.subf %128, %122 : vector<5x64xf32>
    %130 = arith.mulf %129, %127 : vector<5x64xf32>
    %131 = arith.mulf %122, %42 : vector<5x64xf32>
    %132 = arith.addf %130, %131 : vector<5x64xf32>
    %cst_54 = arith.constant dense<0.000000e+00> : vector<5xf32>
    %133 = vector.multi_reduction <add>, %132, %cst_54 [1] : vector<5x64xf32> to vector<5xf32>
    %134 = vector.shape_cast %133 : vector<5xf32> to vector<5x1xf32>
    %cst_55 = arith.constant 6.400000e+01 : f32
    %135 = vector.broadcast %cst_55 : f32 to vector<5x1xf32>
    %136 = arith.divf %134, %135 : vector<5x1xf32>
    %137 = vector.broadcast %136 : vector<5x1xf32> to vector<5x64xf32>
    %138 = arith.subf %132, %137 : vector<5x64xf32>
    %139 = arith.mulf %138, %138 : vector<5x64xf32>
    %cst_56 = arith.constant dense<0.000000e+00> : vector<5xf32>
    %140 = vector.multi_reduction <add>, %139, %cst_56 [1] : vector<5x64xf32> to vector<5xf32>
    %141 = vector.shape_cast %140 : vector<5xf32> to vector<5x1xf32>
    %cst_57 = arith.constant 6.400000e+01 : f32
    %142 = vector.broadcast %cst_57 : f32 to vector<5x1xf32>
    %143 = arith.divf %141, %142 : vector<5x1xf32>
    %144 = vector.broadcast %136 : vector<5x1xf32> to vector<5x64xf32>
    %145 = arith.subf %132, %144 : vector<5x64xf32>
    %cst_58 = arith.constant 9.99999974E-6 : f32
    %146 = vector.broadcast %cst_58 : f32 to vector<5x1xf32>
    %147 = arith.addf %143, %146 : vector<5x1xf32>
    %148 = math.rsqrt %147 : vector<5x1xf32>
    %149 = vector.broadcast %148 : vector<5x1xf32> to vector<5x64xf32>
    %150 = arith.mulf %145, %149 : vector<5x64xf32>
    %151 = arith.mulf %150, %38 : vector<5x64xf32>
    %152 = arith.addf %151, %40 : vector<5x64xf32>
    %c0_59 = arith.constant 0 : index
    %c0_60 = arith.constant 0 : index
    %153 = vector.load %arg12[%c0_59, %c0_60] : memref<64x256xf32, #tpu.memory_space<vmem>>, vector<64x256xf32>
    %cst_61 = arith.constant dense<0.000000e+00> : vector<5x256xf32>
    %154 = tpu.matmul %152, %153, %cst_61 {dimension_numbers = #tpu.dot_dimension_numbers<[1], [0], [0], [1], [0, 0, 1, 1], [], []>} : vector<5x64xf32>, vector<64x256xf32>, vector<5x256xf32> -> vector<5x256xf32>
    %155 = vector.extract_strided_slice %154 {offsets = [0, 128], sizes = [5, 128], strides = [1, 1]} : vector<5x256xf32> to vector<5x128xf32>
    %156 = vector.extract_strided_slice %154 {offsets = [0, 0], sizes = [5, 128], strides = [1, 1]} : vector<5x256xf32> to vector<5x128xf32>
    %157 = vector.shape_cast %2 : vector<5x1xi1> to vector<5x1xi1>
    %158 = vector.broadcast %157 : vector<5x1xi1> to vector<5x128xi1>
    %159 = arith.select %158, %155, %156 : vector<5x128xi1>, vector<5x128xf32>
    %c0_62 = arith.constant 0 : index
    %c0_63 = arith.constant 0 : index
    %160 = vector.load %arg13[%c0_62, %c0_63] : memref<5x128xf32, #tpu.memory_space<vmem>>, vector<5x128xf32>
    %161 = arith.addf %159, %160 : vector<5x128xf32>
    %cst_64 = arith.constant 0.000000e+00 : f32
    %162 = vector.broadcast %cst_64 : f32 to vector<5x128xf32>
    %163 = arith.maximumf %161, %162 : vector<5x128xf32>
    %c0_65 = arith.constant 0 : index
    %c0_66 = arith.constant 0 : index
    %164 = vector.load %arg14[%c0_65, %c0_66] : memref<128x128xf32, #tpu.memory_space<vmem>>, vector<128x128xf32>
    %cst_67 = arith.constant dense<0.000000e+00> : vector<5x128xf32>
    %165 = tpu.matmul %163, %164, %cst_67 {dimension_numbers = #tpu.dot_dimension_numbers<[1], [0], [0], [1], [0, 0, 1, 1], [], []>} : vector<5x128xf32>, vector<128x128xf32>, vector<5x128xf32> -> vector<5x128xf32>
    %166 = vector.extract_strided_slice %165 {offsets = [0, 64], sizes = [5, 64], strides = [1, 1]} : vector<5x128xf32> to vector<5x64xf32>
    %167 = vector.extract_strided_slice %165 {offsets = [0, 0], sizes = [5, 64], strides = [1, 1]} : vector<5x128xf32> to vector<5x64xf32>
    %168 = vector.shape_cast %2 : vector<5x1xi1> to vector<5x1xi1>
    %169 = vector.broadcast %168 : vector<5x1xi1> to vector<5x64xi1>
    %170 = arith.select %169, %166, %167 : vector<5x64xi1>, vector<5x64xf32>
    %171 = arith.addf %132, %170 : vector<5x64xf32>
    %c0_68 = arith.constant 0 : index
    %c0_69 = arith.constant 0 : index
    %172 = vector.load %arg15[%c0_68, %c0_69] : memref<5x64xf32, #tpu.memory_space<vmem>>, vector<5x64xf32>
    %173 = arith.addf %171, %172 : vector<5x64xf32>
    %cst_70 = arith.constant dense<0.000000e+00> : vector<5xf32>
    %174 = vector.multi_reduction <add>, %173, %cst_70 [1] : vector<5x64xf32> to vector<5xf32>
    %175 = vector.shape_cast %174 : vector<5xf32> to vector<5x1xf32>
    %cst_71 = arith.constant 6.400000e+01 : f32
    %176 = vector.broadcast %cst_71 : f32 to vector<5x1xf32>
    %177 = arith.divf %175, %176 : vector<5x1xf32>
    %178 = vector.broadcast %177 : vector<5x1xf32> to vector<5x64xf32>
    %179 = arith.subf %173, %178 : vector<5x64xf32>
    %180 = arith.mulf %179, %179 : vector<5x64xf32>
    %cst_72 = arith.constant dense<0.000000e+00> : vector<5xf32>
    %181 = vector.multi_reduction <add>, %180, %cst_72 [1] : vector<5x64xf32> to vector<5xf32>
    %182 = vector.shape_cast %181 : vector<5xf32> to vector<5x1xf32>
    %cst_73 = arith.constant 6.400000e+01 : f32
    %183 = vector.broadcast %cst_73 : f32 to vector<5x1xf32>
    %184 = arith.divf %182, %183 : vector<5x1xf32>
    %185 = vector.broadcast %177 : vector<5x1xf32> to vector<5x64xf32>
    %186 = arith.subf %173, %185 : vector<5x64xf32>
    %cst_74 = arith.constant 9.99999974E-6 : f32
    %187 = vector.broadcast %cst_74 : f32 to vector<5x1xf32>
    %188 = arith.addf %184, %187 : vector<5x1xf32>
    %189 = math.rsqrt %188 : vector<5x1xf32>
    %190 = vector.broadcast %189 : vector<5x1xf32> to vector<5x64xf32>
    %191 = arith.mulf %186, %190 : vector<5x64xf32>
    %192 = arith.mulf %191, %34 : vector<5x64xf32>
    %193 = arith.addf %192, %36 : vector<5x64xf32>
    %c0_75 = arith.constant 0 : index
    %c0_76 = arith.constant 0 : index
    %194 = vector.load %arg6[%c0_75, %c0_76] : memref<64x128xf32, #tpu.memory_space<vmem>>, vector<64x128xf32>
    %cst_77 = arith.constant dense<0.000000e+00> : vector<5x128xf32>
    %195 = tpu.matmul %193, %194, %cst_77 {dimension_numbers = #tpu.dot_dimension_numbers<[1], [0], [0], [1], [0, 0, 1, 1], [], []>} : vector<5x64xf32>, vector<64x128xf32>, vector<5x128xf32> -> vector<5x128xf32>
    %196 = vector.extract_strided_slice %195 {offsets = [0, 64], sizes = [5, 64], strides = [1, 1]} : vector<5x128xf32> to vector<5x64xf32>
    %197 = vector.extract_strided_slice %195 {offsets = [0, 0], sizes = [5, 64], strides = [1, 1]} : vector<5x128xf32> to vector<5x64xf32>
    %198 = vector.shape_cast %2 : vector<5x1xi1> to vector<5x1xi1>
    %199 = vector.broadcast %198 : vector<5x1xi1> to vector<5x64xi1>
    %200 = arith.select %199, %196, %197 : vector<5x64xi1>, vector<5x64xf32>
    %cst_78 = arith.constant dense<0.000000e+00> : vector<5x64xf32>
    %201 = tpu.matmul %200, %31, %cst_78 {dimension_numbers = #tpu.dot_dimension_numbers<[1], [1], [0], [0], [0, 0, 1, 0], [], []>} : vector<5x64xf32>, vector<64x64xf32>, vector<5x64xf32> -> vector<5x64xf32>
    %cst_79 = arith.constant dense<0xFF800000> : vector<64xf32>
    %202 = vector.multi_reduction <maximumf>, %201, %cst_79 [0] : vector<5x64xf32> to vector<64xf32>
    %203 = vector.shape_cast %202 : vector<64xf32> to vector<1x64xf32>
    %204 = vector.broadcast %203 : vector<1x64xf32> to vector<5x64xf32>
    %205 = arith.subf %201, %204 : vector<5x64xf32>
    %206 = math.exp %205 : vector<5x64xf32>
    %cst_80 = arith.constant dense<0.000000e+00> : vector<64xf32>
    %207 = vector.multi_reduction <add>, %206, %cst_80 [0] : vector<5x64xf32> to vector<64xf32>
    %208 = vector.shape_cast %207 : vector<64xf32> to vector<1x64xf32>
    %209 = tpu.reciprocal %208 {approx = true} : vector<1x64xf32> -> vector<1x64xf32>
    %210 = vector.broadcast %209 : vector<1x64xf32> to vector<5x64xf32>
    %211 = arith.mulf %206, %210 : vector<5x64xf32>
    %cst_81 = arith.constant 9.99999993E-9 : f32
    %212 = vector.broadcast %cst_81 : f32 to vector<5x64xf32>
    %213 = arith.addf %211, %212 : vector<5x64xf32>
    %cst_82 = arith.constant dense<0.000000e+00> : vector<5xf32>
    %214 = vector.multi_reduction <add>, %213, %cst_82 [1] : vector<5x64xf32> to vector<5xf32>
    %215 = vector.shape_cast %214 : vector<5xf32> to vector<5x1xf32>
    %216 = tpu.reciprocal %215 {approx = true} : vector<5x1xf32> -> vector<5x1xf32>
    %217 = vector.broadcast %216 : vector<5x1xf32> to vector<5x64xf32>
    %218 = arith.mulf %213, %217 : vector<5x64xf32>
    %cst_83 = arith.constant dense<0.000000e+00> : vector<5x64xf32>
    %219 = tpu.matmul %218, %32, %cst_83 {dimension_numbers = #tpu.dot_dimension_numbers<[1], [0], [0], [1], [0, 0, 1, 1], [], []>} : vector<5x64xf32>, vector<64x64xf32>, vector<5x64xf32> -> vector<5x64xf32>
    %c0_84 = arith.constant 0 : index
    %c0_85 = arith.constant 0 : index
    %220 = vector.load %arg7[%c0_84, %c0_85] : memref<64x384xf32, #tpu.memory_space<vmem>>, vector<64x384xf32>
    %cst_86 = arith.constant dense<0.000000e+00> : vector<5x384xf32>
    %221 = tpu.matmul %219, %220, %cst_86 {dimension_numbers = #tpu.dot_dimension_numbers<[1], [0], [0], [1], [0, 0, 1, 1], [], []>} : vector<5x64xf32>, vector<64x384xf32>, vector<5x384xf32> -> vector<5x384xf32>
    %222 = vector.extract_strided_slice %221 {offsets = [0, 192], sizes = [5, 192], strides = [1, 1]} : vector<5x384xf32> to vector<5x192xf32>
    %223 = vector.extract_strided_slice %221 {offsets = [0, 0], sizes = [5, 192], strides = [1, 1]} : vector<5x384xf32> to vector<5x192xf32>
    %224 = vector.shape_cast %2 : vector<5x1xi1> to vector<5x1xi1>
    %225 = vector.broadcast %224 : vector<5x1xi1> to vector<5x192xi1>
    %226 = arith.select %225, %222, %223 : vector<5x192xi1>, vector<5x192xf32>
    %c0_87 = arith.constant 0 : index
    %c0_88 = arith.constant 0 : index
    %227 = vector.load %arg9[%c0_87, %c0_88] : memref<5x192xf32, #tpu.memory_space<vmem>>, vector<5x192xf32>
    %228 = arith.addf %226, %227 : vector<5x192xf32>
    %c0_89 = arith.constant 0 : index
    %c0_90 = arith.constant 0 : index
    %229 = vector.load %arg8[%c0_89, %c0_90] : memref<64x384xf32, #tpu.memory_space<vmem>>, vector<64x384xf32>
    %cst_91 = arith.constant dense<0.000000e+00> : vector<5x384xf32>
    %230 = tpu.matmul %173, %229, %cst_91 {dimension_numbers = #tpu.dot_dimension_numbers<[1], [0], [0], [1], [0, 0, 1, 1], [], []>} : vector<5x64xf32>, vector<64x384xf32>, vector<5x384xf32> -> vector<5x384xf32>
    %231 = vector.extract_strided_slice %230 {offsets = [0, 192], sizes = [5, 192], strides = [1, 1]} : vector<5x384xf32> to vector<5x192xf32>
    %232 = vector.extract_strided_slice %230 {offsets = [0, 0], sizes = [5, 192], strides = [1, 1]} : vector<5x384xf32> to vector<5x192xf32>
    %233 = vector.shape_cast %2 : vector<5x1xi1> to vector<5x1xi1>
    %234 = vector.broadcast %233 : vector<5x1xi1> to vector<5x192xi1>
    %235 = arith.select %234, %231, %232 : vector<5x192xi1>, vector<5x192xf32>
    %c0_92 = arith.constant 0 : index
    %c0_93 = arith.constant 0 : index
    %236 = vector.load %arg10[%c0_92, %c0_93] : memref<5x192xf32, #tpu.memory_space<vmem>>, vector<5x192xf32>
    %237 = arith.addf %235, %236 : vector<5x192xf32>
    %238 = vector.extract_strided_slice %228 {offsets = [0, 0], sizes = [5, 64], strides = [1, 1]} : vector<5x192xf32> to vector<5x64xf32>
    %239 = vector.extract_strided_slice %237 {offsets = [0, 0], sizes = [5, 64], strides = [1, 1]} : vector<5x192xf32> to vector<5x64xf32>
    %240 = arith.addf %238, %239 : vector<5x64xf32>
    %241 = arith.negf %240 : vector<5x64xf32>
    %242 = math.exp %241 : vector<5x64xf32>
    %cst_94 = arith.constant 1.000000e+00 : f32
    %243 = vector.broadcast %cst_94 : f32 to vector<5x64xf32>
    %244 = arith.addf %243, %242 : vector<5x64xf32>
    %245 = arith.divf %243, %244 : vector<5x64xf32>
    %246 = vector.extract_strided_slice %228 {offsets = [0, 64], sizes = [5, 64], strides = [1, 1]} : vector<5x192xf32> to vector<5x64xf32>
    %247 = vector.extract_strided_slice %237 {offsets = [0, 64], sizes = [5, 64], strides = [1, 1]} : vector<5x192xf32> to vector<5x64xf32>
    %248 = arith.addf %246, %247 : vector<5x64xf32>
    %249 = arith.negf %248 : vector<5x64xf32>
    %250 = math.exp %249 : vector<5x64xf32>
    %cst_95 = arith.constant 1.000000e+00 : f32
    %251 = vector.broadcast %cst_95 : f32 to vector<5x64xf32>
    %252 = arith.addf %251, %250 : vector<5x64xf32>
    %253 = arith.divf %251, %252 : vector<5x64xf32>
    %254 = vector.extract_strided_slice %228 {offsets = [0, 128], sizes = [5, 64], strides = [1, 1]} : vector<5x192xf32> to vector<5x64xf32>
    %255 = vector.extract_strided_slice %237 {offsets = [0, 128], sizes = [5, 64], strides = [1, 1]} : vector<5x192xf32> to vector<5x64xf32>
    %256 = arith.mulf %245, %255 : vector<5x64xf32>
    %257 = arith.addf %254, %256 : vector<5x64xf32>
    %258 = math.tanh %257 : vector<5x64xf32>
    %cst_96 = arith.constant 1.000000e+00 : f32
    %259 = vector.broadcast %cst_96 : f32 to vector<5x64xf32>
    %260 = arith.subf %259, %253 : vector<5x64xf32>
    %261 = arith.mulf %260, %258 : vector<5x64xf32>
    %262 = arith.mulf %253, %173 : vector<5x64xf32>
    %263 = arith.addf %261, %262 : vector<5x64xf32>
    %cst_97 = arith.constant dense<0.000000e+00> : vector<5xf32>
    %264 = vector.multi_reduction <add>, %263, %cst_97 [1] : vector<5x64xf32> to vector<5xf32>
    %265 = vector.shape_cast %264 : vector<5xf32> to vector<5x1xf32>
    %cst_98 = arith.constant 6.400000e+01 : f32
    %266 = vector.broadcast %cst_98 : f32 to vector<5x1xf32>
    %267 = arith.divf %265, %266 : vector<5x1xf32>
    %268 = vector.broadcast %267 : vector<5x1xf32> to vector<5x64xf32>
    %269 = arith.subf %263, %268 : vector<5x64xf32>
    %270 = arith.mulf %269, %269 : vector<5x64xf32>
    %cst_99 = arith.constant dense<0.000000e+00> : vector<5xf32>
    %271 = vector.multi_reduction <add>, %270, %cst_99 [1] : vector<5x64xf32> to vector<5xf32>
    %272 = vector.shape_cast %271 : vector<5xf32> to vector<5x1xf32>
    %cst_100 = arith.constant 6.400000e+01 : f32
    %273 = vector.broadcast %cst_100 : f32 to vector<5x1xf32>
    %274 = arith.divf %272, %273 : vector<5x1xf32>
    %275 = vector.broadcast %267 : vector<5x1xf32> to vector<5x64xf32>
    %276 = arith.subf %263, %275 : vector<5x64xf32>
    %cst_101 = arith.constant 9.99999974E-6 : f32
    %277 = vector.broadcast %cst_101 : f32 to vector<5x1xf32>
    %278 = arith.addf %274, %277 : vector<5x1xf32>
    %279 = math.rsqrt %278 : vector<5x1xf32>
    %280 = vector.broadcast %279 : vector<5x1xf32> to vector<5x64xf32>
    %281 = arith.mulf %276, %280 : vector<5x64xf32>
    %282 = arith.mulf %281, %38 : vector<5x64xf32>
    %283 = arith.addf %282, %40 : vector<5x64xf32>
    %c0_102 = arith.constant 0 : index
    %c0_103 = arith.constant 0 : index
    %284 = vector.load %arg12[%c0_102, %c0_103] : memref<64x256xf32, #tpu.memory_space<vmem>>, vector<64x256xf32>
    %cst_104 = arith.constant dense<0.000000e+00> : vector<5x256xf32>
    %285 = tpu.matmul %283, %284, %cst_104 {dimension_numbers = #tpu.dot_dimension_numbers<[1], [0], [0], [1], [0, 0, 1, 1], [], []>} : vector<5x64xf32>, vector<64x256xf32>, vector<5x256xf32> -> vector<5x256xf32>
    %286 = vector.extract_strided_slice %285 {offsets = [0, 128], sizes = [5, 128], strides = [1, 1]} : vector<5x256xf32> to vector<5x128xf32>
    %287 = vector.extract_strided_slice %285 {offsets = [0, 0], sizes = [5, 128], strides = [1, 1]} : vector<5x256xf32> to vector<5x128xf32>
    %288 = vector.shape_cast %2 : vector<5x1xi1> to vector<5x1xi1>
    %289 = vector.broadcast %288 : vector<5x1xi1> to vector<5x128xi1>
    %290 = arith.select %289, %286, %287 : vector<5x128xi1>, vector<5x128xf32>
    %c0_105 = arith.constant 0 : index
    %c0_106 = arith.constant 0 : index
    %291 = vector.load %arg13[%c0_105, %c0_106] : memref<5x128xf32, #tpu.memory_space<vmem>>, vector<5x128xf32>
    %292 = arith.addf %290, %291 : vector<5x128xf32>
    %cst_107 = arith.constant 0.000000e+00 : f32
    %293 = vector.broadcast %cst_107 : f32 to vector<5x128xf32>
    %294 = arith.maximumf %292, %293 : vector<5x128xf32>
    %c0_108 = arith.constant 0 : index
    %c0_109 = arith.constant 0 : index
    %295 = vector.load %arg14[%c0_108, %c0_109] : memref<128x128xf32, #tpu.memory_space<vmem>>, vector<128x128xf32>
    %cst_110 = arith.constant dense<0.000000e+00> : vector<5x128xf32>
    %296 = tpu.matmul %294, %295, %cst_110 {dimension_numbers = #tpu.dot_dimension_numbers<[1], [0], [0], [1], [0, 0, 1, 1], [], []>} : vector<5x128xf32>, vector<128x128xf32>, vector<5x128xf32> -> vector<5x128xf32>
    %297 = vector.extract_strided_slice %296 {offsets = [0, 64], sizes = [5, 64], strides = [1, 1]} : vector<5x128xf32> to vector<5x64xf32>
    %298 = vector.extract_strided_slice %296 {offsets = [0, 0], sizes = [5, 64], strides = [1, 1]} : vector<5x128xf32> to vector<5x64xf32>
    %299 = vector.shape_cast %2 : vector<5x1xi1> to vector<5x1xi1>
    %300 = vector.broadcast %299 : vector<5x1xi1> to vector<5x64xi1>
    %301 = arith.select %300, %297, %298 : vector<5x64xi1>, vector<5x64xf32>
    %302 = arith.addf %263, %301 : vector<5x64xf32>
    %c0_111 = arith.constant 0 : index
    %c0_112 = arith.constant 0 : index
    %303 = vector.load %arg15[%c0_111, %c0_112] : memref<5x64xf32, #tpu.memory_space<vmem>>, vector<5x64xf32>
    %304 = arith.addf %302, %303 : vector<5x64xf32>
    %cst_113 = arith.constant dense<0.000000e+00> : vector<5xf32>
    %305 = vector.multi_reduction <add>, %304, %cst_113 [1] : vector<5x64xf32> to vector<5xf32>
    %306 = vector.shape_cast %305 : vector<5xf32> to vector<5x1xf32>
    %cst_114 = arith.constant 6.400000e+01 : f32
    %307 = vector.broadcast %cst_114 : f32 to vector<5x1xf32>
    %308 = arith.divf %306, %307 : vector<5x1xf32>
    %309 = vector.broadcast %308 : vector<5x1xf32> to vector<5x64xf32>
    %310 = arith.subf %304, %309 : vector<5x64xf32>
    %311 = arith.mulf %310, %310 : vector<5x64xf32>
    %cst_115 = arith.constant dense<0.000000e+00> : vector<5xf32>
    %312 = vector.multi_reduction <add>, %311, %cst_115 [1] : vector<5x64xf32> to vector<5xf32>
    %313 = vector.shape_cast %312 : vector<5xf32> to vector<5x1xf32>
    %cst_116 = arith.constant 6.400000e+01 : f32
    %314 = vector.broadcast %cst_116 : f32 to vector<5x1xf32>
    %315 = arith.divf %313, %314 : vector<5x1xf32>
    %316 = vector.broadcast %308 : vector<5x1xf32> to vector<5x64xf32>
    %317 = arith.subf %304, %316 : vector<5x64xf32>
    %cst_117 = arith.constant 9.99999974E-6 : f32
    %318 = vector.broadcast %cst_117 : f32 to vector<5x1xf32>
    %319 = arith.addf %315, %318 : vector<5x1xf32>
    %320 = math.rsqrt %319 : vector<5x1xf32>
    %321 = vector.broadcast %320 : vector<5x1xf32> to vector<5x64xf32>
    %322 = arith.mulf %317, %321 : vector<5x64xf32>
    %323 = arith.mulf %322, %34 : vector<5x64xf32>
    %324 = arith.addf %323, %36 : vector<5x64xf32>
    %c0_118 = arith.constant 0 : index
    %c0_119 = arith.constant 0 : index
    %325 = vector.load %arg6[%c0_118, %c0_119] : memref<64x128xf32, #tpu.memory_space<vmem>>, vector<64x128xf32>
    %cst_120 = arith.constant dense<0.000000e+00> : vector<5x128xf32>
    %326 = tpu.matmul %324, %325, %cst_120 {dimension_numbers = #tpu.dot_dimension_numbers<[1], [0], [0], [1], [0, 0, 1, 1], [], []>} : vector<5x64xf32>, vector<64x128xf32>, vector<5x128xf32> -> vector<5x128xf32>
    %327 = vector.extract_strided_slice %326 {offsets = [0, 64], sizes = [5, 64], strides = [1, 1]} : vector<5x128xf32> to vector<5x64xf32>
    %328 = vector.extract_strided_slice %326 {offsets = [0, 0], sizes = [5, 64], strides = [1, 1]} : vector<5x128xf32> to vector<5x64xf32>
    %329 = vector.shape_cast %2 : vector<5x1xi1> to vector<5x1xi1>
    %330 = vector.broadcast %329 : vector<5x1xi1> to vector<5x64xi1>
    %331 = arith.select %330, %327, %328 : vector<5x64xi1>, vector<5x64xf32>
    %cst_121 = arith.constant dense<0.000000e+00> : vector<5x64xf32>
    %332 = tpu.matmul %331, %31, %cst_121 {dimension_numbers = #tpu.dot_dimension_numbers<[1], [1], [0], [0], [0, 0, 1, 0], [], []>} : vector<5x64xf32>, vector<64x64xf32>, vector<5x64xf32> -> vector<5x64xf32>
    %cst_122 = arith.constant dense<0xFF800000> : vector<64xf32>
    %333 = vector.multi_reduction <maximumf>, %332, %cst_122 [0] : vector<5x64xf32> to vector<64xf32>
    %334 = vector.shape_cast %333 : vector<64xf32> to vector<1x64xf32>
    %335 = vector.broadcast %334 : vector<1x64xf32> to vector<5x64xf32>
    %336 = arith.subf %332, %335 : vector<5x64xf32>
    %337 = math.exp %336 : vector<5x64xf32>
    %cst_123 = arith.constant dense<0.000000e+00> : vector<64xf32>
    %338 = vector.multi_reduction <add>, %337, %cst_123 [0] : vector<5x64xf32> to vector<64xf32>
    %339 = vector.shape_cast %338 : vector<64xf32> to vector<1x64xf32>
    %340 = tpu.reciprocal %339 {approx = true} : vector<1x64xf32> -> vector<1x64xf32>
    %341 = vector.broadcast %340 : vector<1x64xf32> to vector<5x64xf32>
    %342 = arith.mulf %337, %341 : vector<5x64xf32>
    %cst_124 = arith.constant 9.99999993E-9 : f32
    %343 = vector.broadcast %cst_124 : f32 to vector<5x64xf32>
    %344 = arith.addf %342, %343 : vector<5x64xf32>
    %cst_125 = arith.constant dense<0.000000e+00> : vector<5xf32>
    %345 = vector.multi_reduction <add>, %344, %cst_125 [1] : vector<5x64xf32> to vector<5xf32>
    %346 = vector.shape_cast %345 : vector<5xf32> to vector<5x1xf32>
    %347 = tpu.reciprocal %346 {approx = true} : vector<5x1xf32> -> vector<5x1xf32>
    %348 = vector.broadcast %347 : vector<5x1xf32> to vector<5x64xf32>
    %349 = arith.mulf %344, %348 : vector<5x64xf32>
    %cst_126 = arith.constant dense<0.000000e+00> : vector<5x64xf32>
    %350 = tpu.matmul %349, %32, %cst_126 {dimension_numbers = #tpu.dot_dimension_numbers<[1], [0], [0], [1], [0, 0, 1, 1], [], []>} : vector<5x64xf32>, vector<64x64xf32>, vector<5x64xf32> -> vector<5x64xf32>
    %c0_127 = arith.constant 0 : index
    %c0_128 = arith.constant 0 : index
    %351 = vector.load %arg7[%c0_127, %c0_128] : memref<64x384xf32, #tpu.memory_space<vmem>>, vector<64x384xf32>
    %cst_129 = arith.constant dense<0.000000e+00> : vector<5x384xf32>
    %352 = tpu.matmul %350, %351, %cst_129 {dimension_numbers = #tpu.dot_dimension_numbers<[1], [0], [0], [1], [0, 0, 1, 1], [], []>} : vector<5x64xf32>, vector<64x384xf32>, vector<5x384xf32> -> vector<5x384xf32>
    %353 = vector.extract_strided_slice %352 {offsets = [0, 192], sizes = [5, 192], strides = [1, 1]} : vector<5x384xf32> to vector<5x192xf32>
    %354 = vector.extract_strided_slice %352 {offsets = [0, 0], sizes = [5, 192], strides = [1, 1]} : vector<5x384xf32> to vector<5x192xf32>
    %355 = vector.shape_cast %2 : vector<5x1xi1> to vector<5x1xi1>
    %356 = vector.broadcast %355 : vector<5x1xi1> to vector<5x192xi1>
    %357 = arith.select %356, %353, %354 : vector<5x192xi1>, vector<5x192xf32>
    %c0_130 = arith.constant 0 : index
    %c0_131 = arith.constant 0 : index
    %358 = vector.load %arg9[%c0_130, %c0_131] : memref<5x192xf32, #tpu.memory_space<vmem>>, vector<5x192xf32>
    %359 = arith.addf %357, %358 : vector<5x192xf32>
    %c0_132 = arith.constant 0 : index
    %c0_133 = arith.constant 0 : index
    %360 = vector.load %arg8[%c0_132, %c0_133] : memref<64x384xf32, #tpu.memory_space<vmem>>, vector<64x384xf32>
    %cst_134 = arith.constant dense<0.000000e+00> : vector<5x384xf32>
    %361 = tpu.matmul %304, %360, %cst_134 {dimension_numbers = #tpu.dot_dimension_numbers<[1], [0], [0], [1], [0, 0, 1, 1], [], []>} : vector<5x64xf32>, vector<64x384xf32>, vector<5x384xf32> -> vector<5x384xf32>
    %362 = vector.extract_strided_slice %361 {offsets = [0, 192], sizes = [5, 192], strides = [1, 1]} : vector<5x384xf32> to vector<5x192xf32>
    %363 = vector.extract_strided_slice %361 {offsets = [0, 0], sizes = [5, 192], strides = [1, 1]} : vector<5x384xf32> to vector<5x192xf32>
    %364 = vector.shape_cast %2 : vector<5x1xi1> to vector<5x1xi1>
    %365 = vector.broadcast %364 : vector<5x1xi1> to vector<5x192xi1>
    %366 = arith.select %365, %362, %363 : vector<5x192xi1>, vector<5x192xf32>
    %c0_135 = arith.constant 0 : index
    %c0_136 = arith.constant 0 : index
    %367 = vector.load %arg10[%c0_135, %c0_136] : memref<5x192xf32, #tpu.memory_space<vmem>>, vector<5x192xf32>
    %368 = arith.addf %366, %367 : vector<5x192xf32>
    %369 = vector.extract_strided_slice %359 {offsets = [0, 0], sizes = [5, 64], strides = [1, 1]} : vector<5x192xf32> to vector<5x64xf32>
    %370 = vector.extract_strided_slice %368 {offsets = [0, 0], sizes = [5, 64], strides = [1, 1]} : vector<5x192xf32> to vector<5x64xf32>
    %371 = arith.addf %369, %370 : vector<5x64xf32>
    %372 = arith.negf %371 : vector<5x64xf32>
    %373 = math.exp %372 : vector<5x64xf32>
    %cst_137 = arith.constant 1.000000e+00 : f32
    %374 = vector.broadcast %cst_137 : f32 to vector<5x64xf32>
    %375 = arith.addf %374, %373 : vector<5x64xf32>
    %376 = arith.divf %374, %375 : vector<5x64xf32>
    %377 = vector.extract_strided_slice %359 {offsets = [0, 64], sizes = [5, 64], strides = [1, 1]} : vector<5x192xf32> to vector<5x64xf32>
    %378 = vector.extract_strided_slice %368 {offsets = [0, 64], sizes = [5, 64], strides = [1, 1]} : vector<5x192xf32> to vector<5x64xf32>
    %379 = arith.addf %377, %378 : vector<5x64xf32>
    %380 = arith.negf %379 : vector<5x64xf32>
    %381 = math.exp %380 : vector<5x64xf32>
    %cst_138 = arith.constant 1.000000e+00 : f32
    %382 = vector.broadcast %cst_138 : f32 to vector<5x64xf32>
    %383 = arith.addf %382, %381 : vector<5x64xf32>
    %384 = arith.divf %382, %383 : vector<5x64xf32>
    %385 = vector.extract_strided_slice %359 {offsets = [0, 128], sizes = [5, 64], strides = [1, 1]} : vector<5x192xf32> to vector<5x64xf32>
    %386 = vector.extract_strided_slice %368 {offsets = [0, 128], sizes = [5, 64], strides = [1, 1]} : vector<5x192xf32> to vector<5x64xf32>
    %387 = arith.mulf %376, %386 : vector<5x64xf32>
    %388 = arith.addf %385, %387 : vector<5x64xf32>
    %389 = math.tanh %388 : vector<5x64xf32>
    %cst_139 = arith.constant 1.000000e+00 : f32
    %390 = vector.broadcast %cst_139 : f32 to vector<5x64xf32>
    %391 = arith.subf %390, %384 : vector<5x64xf32>
    %392 = arith.mulf %391, %389 : vector<5x64xf32>
    %393 = arith.mulf %384, %304 : vector<5x64xf32>
    %394 = arith.addf %392, %393 : vector<5x64xf32>
    %cst_140 = arith.constant dense<0.000000e+00> : vector<5xf32>
    %395 = vector.multi_reduction <add>, %394, %cst_140 [1] : vector<5x64xf32> to vector<5xf32>
    %396 = vector.shape_cast %395 : vector<5xf32> to vector<5x1xf32>
    %cst_141 = arith.constant 6.400000e+01 : f32
    %397 = vector.broadcast %cst_141 : f32 to vector<5x1xf32>
    %398 = arith.divf %396, %397 : vector<5x1xf32>
    %399 = vector.broadcast %398 : vector<5x1xf32> to vector<5x64xf32>
    %400 = arith.subf %394, %399 : vector<5x64xf32>
    %401 = arith.mulf %400, %400 : vector<5x64xf32>
    %cst_142 = arith.constant dense<0.000000e+00> : vector<5xf32>
    %402 = vector.multi_reduction <add>, %401, %cst_142 [1] : vector<5x64xf32> to vector<5xf32>
    %403 = vector.shape_cast %402 : vector<5xf32> to vector<5x1xf32>
    %cst_143 = arith.constant 6.400000e+01 : f32
    %404 = vector.broadcast %cst_143 : f32 to vector<5x1xf32>
    %405 = arith.divf %403, %404 : vector<5x1xf32>
    %406 = vector.broadcast %398 : vector<5x1xf32> to vector<5x64xf32>
    %407 = arith.subf %394, %406 : vector<5x64xf32>
    %cst_144 = arith.constant 9.99999974E-6 : f32
    %408 = vector.broadcast %cst_144 : f32 to vector<5x1xf32>
    %409 = arith.addf %405, %408 : vector<5x1xf32>
    %410 = math.rsqrt %409 : vector<5x1xf32>
    %411 = vector.broadcast %410 : vector<5x1xf32> to vector<5x64xf32>
    %412 = arith.mulf %407, %411 : vector<5x64xf32>
    %413 = arith.mulf %412, %38 : vector<5x64xf32>
    %414 = arith.addf %413, %40 : vector<5x64xf32>
    %c0_145 = arith.constant 0 : index
    %c0_146 = arith.constant 0 : index
    %415 = vector.load %arg12[%c0_145, %c0_146] : memref<64x256xf32, #tpu.memory_space<vmem>>, vector<64x256xf32>
    %cst_147 = arith.constant dense<0.000000e+00> : vector<5x256xf32>
    %416 = tpu.matmul %414, %415, %cst_147 {dimension_numbers = #tpu.dot_dimension_numbers<[1], [0], [0], [1], [0, 0, 1, 1], [], []>} : vector<5x64xf32>, vector<64x256xf32>, vector<5x256xf32> -> vector<5x256xf32>
    %417 = vector.extract_strided_slice %416 {offsets = [0, 128], sizes = [5, 128], strides = [1, 1]} : vector<5x256xf32> to vector<5x128xf32>
    %418 = vector.extract_strided_slice %416 {offsets = [0, 0], sizes = [5, 128], strides = [1, 1]} : vector<5x256xf32> to vector<5x128xf32>
    %419 = vector.shape_cast %2 : vector<5x1xi1> to vector<5x1xi1>
    %420 = vector.broadcast %419 : vector<5x1xi1> to vector<5x128xi1>
    %421 = arith.select %420, %417, %418 : vector<5x128xi1>, vector<5x128xf32>
    %c0_148 = arith.constant 0 : index
    %c0_149 = arith.constant 0 : index
    %422 = vector.load %arg13[%c0_148, %c0_149] : memref<5x128xf32, #tpu.memory_space<vmem>>, vector<5x128xf32>
    %423 = arith.addf %421, %422 : vector<5x128xf32>
    %cst_150 = arith.constant 0.000000e+00 : f32
    %424 = vector.broadcast %cst_150 : f32 to vector<5x128xf32>
    %425 = arith.maximumf %423, %424 : vector<5x128xf32>
    %c0_151 = arith.constant 0 : index
    %c0_152 = arith.constant 0 : index
    %426 = vector.load %arg14[%c0_151, %c0_152] : memref<128x128xf32, #tpu.memory_space<vmem>>, vector<128x128xf32>
    %cst_153 = arith.constant dense<0.000000e+00> : vector<5x128xf32>
    %427 = tpu.matmul %425, %426, %cst_153 {dimension_numbers = #tpu.dot_dimension_numbers<[1], [0], [0], [1], [0, 0, 1, 1], [], []>} : vector<5x128xf32>, vector<128x128xf32>, vector<5x128xf32> -> vector<5x128xf32>
    %428 = vector.extract_strided_slice %427 {offsets = [0, 64], sizes = [5, 64], strides = [1, 1]} : vector<5x128xf32> to vector<5x64xf32>
    %429 = vector.extract_strided_slice %427 {offsets = [0, 0], sizes = [5, 64], strides = [1, 1]} : vector<5x128xf32> to vector<5x64xf32>
    %430 = vector.shape_cast %2 : vector<5x1xi1> to vector<5x1xi1>
    %431 = vector.broadcast %430 : vector<5x1xi1> to vector<5x64xi1>
    %432 = arith.select %431, %428, %429 : vector<5x64xi1>, vector<5x64xf32>
    %433 = arith.addf %394, %432 : vector<5x64xf32>
    %c0_154 = arith.constant 0 : index
    %c0_155 = arith.constant 0 : index
    %434 = vector.load %arg15[%c0_154, %c0_155] : memref<5x64xf32, #tpu.memory_space<vmem>>, vector<5x64xf32>
    %435 = arith.addf %433, %434 : vector<5x64xf32>
    %c0_156 = arith.constant 0 : index
    %c0_157 = arith.constant 0 : index
    %c0_158 = arith.constant 0 : index
    %436 = vector.load %arg16[%c0_156, %c0_157, %c0_158] : memref<1x5x64xf32, #tpu.memory_space<vmem>>, vector<1x5x64xf32>
    %437 = vector.shape_cast %436 : vector<1x5x64xf32> to vector<5x64xf32>
    %438 = vector.shape_cast %435 : vector<5x64xf32> to vector<1x5x64xf32>
    tpu.vector_store %arg16[%c0_156, %c0_157, %c0_158], %438 {strides = array<i32>} : memref<1x5x64xf32, #tpu.memory_space<vmem>>, vector<1x5x64xf32>,
    %c0_159 = arith.constant 0 : index
    %c0_160 = arith.constant 0 : index
    %c0_161 = arith.constant 0 : index
    %439 = vector.load %arg17[%c0_159, %c0_160, %c0_161] : memref<1x5x64xf32, #tpu.memory_space<vmem>>, vector<1x5x64xf32>
    %440 = vector.shape_cast %439 : vector<1x5x64xf32> to vector<5x64xf32>
    %441 = vector.shape_cast %344 : vector<5x64xf32> to vector<1x5x64xf32>
    tpu.vector_store %arg17[%c0_159, %c0_160, %c0_161], %441 {strides = array<i32>} : memref<1x5x64xf32, #tpu.memory_space<vmem>>, vector<1x5x64xf32>,
    return
  }
  func.func @transform_0(%arg0: i32) -> (i32, i32, i32) {
    %c0_i32 = arith.constant 0 : i32
    %c0_i32_0 = arith.constant 0 : i32
    %c0_i32_1 = arith.constant 0 : i32
    return %arg0, %c0_i32, %c0_i32_0 : i32, i32, i32
  }
  func.func @transform_1(%arg0: i32) -> (i32, i32, i32) {
    %c0_i32 = arith.constant 0 : i32
    %c0_i32_0 = arith.constant 0 : i32
    %c0_i32_1 = arith.constant 0 : i32
    return %arg0, %c0_i32, %c0_i32_0 : i32, i32, i32
  }
  func.func @transform_2(%arg0: i32) -> (i32, i32) {
    %c0_i32 = arith.constant 0 : i32
    %c0_i32_0 = arith.constant 0 : i32
    %c0_i32_1 = arith.constant 0 : i32
    return %c0_i32, %c0_i32_0 : i32, i32
  }
  func.func @transform_3(%arg0: i32) -> (i32, i32) {
    %c0_i32 = arith.constant 0 : i32
    %c0_i32_0 = arith.constant 0 : i32
    %c0_i32_1 = arith.constant 0 : i32
    return %c0_i32, %c0_i32_0 : i32, i32
  }
  func.func @transform_4(%arg0: i32) -> (i32, i32, i32) {
    %c0_i32 = arith.constant 0 : i32
    %c0_i32_0 = arith.constant 0 : i32
    %c0_i32_1 = arith.constant 0 : i32
    %c0_i32_2 = arith.constant 0 : i32
    return %c0_i32, %c0_i32_0, %c0_i32_1 : i32, i32, i32
  }
  func.func @transform_5(%arg0: i32) -> (i32, i32) {
    %c0_i32 = arith.constant 0 : i32
    %c0_i32_0 = arith.constant 0 : i32
    %c0_i32_1 = arith.constant 0 : i32
    return %c0_i32, %c0_i32_0 : i32, i32
  }
  func.func @transform_6(%arg0: i32) -> (i32, i32) {
    %c0_i32 = arith.constant 0 : i32
    %c0_i32_0 = arith.constant 0 : i32
    %c0_i32_1 = arith.constant 0 : i32
    return %c0_i32, %c0_i32_0 : i32, i32
  }
  func.func @transform_7(%arg0: i32) -> (i32, i32) {
    %c0_i32 = arith.constant 0 : i32
    %c0_i32_0 = arith.constant 0 : i32
    %c0_i32_1 = arith.constant 0 : i32
    return %c0_i32, %c0_i32_0 : i32, i32
  }
  func.func @transform_8(%arg0: i32) -> (i32, i32) {
    %c0_i32 = arith.constant 0 : i32
    %c0_i32_0 = arith.constant 0 : i32
    %c0_i32_1 = arith.constant 0 : i32
    return %c0_i32, %c0_i32_0 : i32, i32
  }
  func.func @transform_9(%arg0: i32) -> (i32, i32) {
    %c0_i32 = arith.constant 0 : i32
    %c0_i32_0 = arith.constant 0 : i32
    %c0_i32_1 = arith.constant 0 : i32
    return %c0_i32, %c0_i32_0 : i32, i32
  }
  func.func @transform_10(%arg0: i32) -> (i32, i32, i32) {
    %c0_i32 = arith.constant 0 : i32
    %c0_i32_0 = arith.constant 0 : i32
    %c0_i32_1 = arith.constant 0 : i32
    %c0_i32_2 = arith.constant 0 : i32
    return %c0_i32, %c0_i32_0, %c0_i32_1 : i32, i32, i32
  }
  func.func @transform_11(%arg0: i32) -> (i32, i32) {
    %c0_i32 = arith.constant 0 : i32
    %c0_i32_0 = arith.constant 0 : i32
    %c0_i32_1 = arith.constant 0 : i32
    return %c0_i32, %c0_i32_0 : i32, i32
  }
  func.func @transform_12(%arg0: i32) -> (i32, i32) {
    %c0_i32 = arith.constant 0 : i32
    %c0_i32_0 = arith.constant 0 : i32
    %c0_i32_1 = arith.constant 0 : i32
    return %c0_i32, %c0_i32_0 : i32, i32
  }
  func.func @transform_13(%arg0: i32) -> (i32, i32) {
    %c0_i32 = arith.constant 0 : i32
    %c0_i32_0 = arith.constant 0 : i32
    %c0_i32_1 = arith.constant 0 : i32
    return %c0_i32, %c0_i32_0 : i32, i32
  }
  func.func @transform_14(%arg0: i32) -> (i32, i32) {
    %c0_i32 = arith.constant 0 : i32
    %c0_i32_0 = arith.constant 0 : i32
    %c0_i32_1 = arith.constant 0 : i32
    return %c0_i32, %c0_i32_0 : i32, i32
  }
  func.func @transform_15(%arg0: i32) -> (i32, i32, i32) {
    %c0_i32 = arith.constant 0 : i32
    %c0_i32_0 = arith.constant 0 : i32
    %c0_i32_1 = arith.constant 0 : i32
    return %arg0, %c0_i32, %c0_i32_0 : i32, i32, i32
  }
  func.func @transform_16(%arg0: i32) -> (i32, i32, i32) {
    %c0_i32 = arith.constant 0 : i32
    %c0_i32_0 = arith.constant 0 : i32
    %c0_i32_1 = arith.constant 0 : i32
    return %arg0, %c0_i32, %c0_i32_0 : i32, i32, i32
  }
}

</mosaic_0001>

<llo_original>
// kernel: tpu_custom_call.1
$region0: #{tpu_custom_call.1}
  #allocation0 [shape = 'u32[]', space=smem, size = 0x4, offset = 0x4, fixed_abs, tag = 'smem constant byte address 0x4 - core index']
  #allocation1 [shape = 'u32[144,128]{1,0:T(1,128)}', space=vmem, size = 0x12000, scoped, tag = 'internal scratch']
  %s0 = inlined_call_operand.hbm [shape: f32[2,64,64], index: 0, kind: input, shape index: {}]
  %s1 = inlined_call_operand.vmem [shape: f32[2,5,64], index: 1, kind: input, shape index: {}]
  %s2 = inlined_call_operand.hbm [shape: f32[2,64], index: 2, kind: input, shape index: {}]
  %s3 = inlined_call_operand.vmem [shape: f32[64,128], index: 3, kind: input, shape index: {}]
  %s4 = inlined_call_operand.vmem [shape: f32[2,5,64], index: 4, kind: input, shape index: {}]
  %s5 = inlined_call_operand.hbm [shape: f32[64,128], index: 5, kind: input, shape index: {}]
  %s6 = inlined_call_operand.hbm [shape: f32[64,384], index: 6, kind: input, shape index: {}]
  %s7 = inlined_call_operand.hbm [shape: f32[64,384], index: 7, kind: input, shape index: {}]
  %s8 = inlined_call_operand.vmem [shape: f32[5,192], index: 8, kind: input, shape index: {}]
  %s9 = inlined_call_operand.vmem [shape: f32[5,192], index: 9, kind: input, shape index: {}]
  %s10 = inlined_call_operand.vmem [shape: f32[2,5,64], index: 10, kind: input, shape index: {}]
  %s11 = inlined_call_operand.hbm [shape: f32[64,256], index: 11, kind: input, shape index: {}]
  %s12 = inlined_call_operand.vmem [shape: f32[5,128], index: 12, kind: input, shape index: {}]
  %s13 = inlined_call_operand.hbm [shape: f32[128,128], index: 13, kind: input, shape index: {}]
  %s14 = inlined_call_operand.vmem [shape: f32[5,64], index: 14, kind: input, shape index: {}]
  %s15 = inlined_call_operand.vmem [shape: f32[2,5,64], index: 15, kind: output, shape index: {0}]
  %s16 = inlined_call_operand.vmem [shape: f32[2,5,64], index: 16, kind: output, shape index: {1}]
  %17 = xla_tuple %s15, %s16
  %s18 = sld [smem:[#allocation0]]
  $region129: #{tpu_custom_call.1} parent=0
    _
  %s20 = ssub.s32 1, %s18
  %s21 = scalar_select 0, %s20, %s18
  $region1: #{tpu_custom_call.1} parent=0
    #allocation2 [shape = 'u8[65536]{0}', space=vmem, size = 0x10000, scoped, tag = 'input window, operand 0']
    #allocation3 [shape = 's32[2]{0}', space=sflag, size = 0x8, scoped, tag = 'scoped memory for tpu_custom_call.1']
    #allocation4 [shape = 'u8[1024]{0}', space=vmem, size = 0x400, scoped, tag = 'input window, operand 2, single buffered']
    #allocation5 [shape = 's32[1]{0}', space=sflag, size = 0x4, scoped, tag = 'scoped memory for tpu_custom_call.1']
    #allocation6 [shape = 'u8[32768]{0}', space=vmem, size = 0x8000, scoped, tag = 'input window, operand 5, single buffered']
    #allocation7 [shape = 'u8[98304]{0}', space=vmem, size = 0x18000, scoped, tag = 'input window, operand 6, single buffered']
    #allocation8 [shape = 's32[1]{0}', space=sflag, size = 0x4, scoped, tag = 'scoped memory for tpu_custom_call.1']
    #allocation9 [shape = 'u8[98304]{0}', space=vmem, size = 0x18000, scoped, tag = 'input window, operand 7, single buffered']
    #allocation10 [shape = 'u8[65536]{0}', space=vmem, size = 0x10000, scoped, tag = 'input window, operand 11, single buffered']
    #allocation11 [shape = 's32[1]{0}', space=sflag, size = 0x4, scoped, tag = 'scoped memory for tpu_custom_call.1']
    #allocation12 [shape = 'u8[65536]{0}', space=vmem, size = 0x10000, scoped, tag = 'input window, operand 13, single buffered']
    %22 = vsyncpa [#allocation3], 0
    %s23 = scalar_lea.sflag [#allocation3], 1
    %24 = vsyncpa %s23, 0
    %25 = vsyncpa [#allocation5], 0
    %26 = vsyncpa [#allocation8], 0
    %27 = vsyncpa [#allocation11], 0
    loop: start=0, step=1, limit=4
    $region2: #{tpu_custom_call.1} parent=1 // loop_pre_header
      _
    $region3: #{tpu_custom_call.1} parent=1 // loop_header
      %s29 = sphi 0, %s33
      %p30 = scmp.ge.s32.totalorder %s29, 4
      %s39 = sphi 0, %s41
      %s42 = sphi 0, %s39
      %s43 = sphi 0, %s42
      %s59 = sphi 0, %s43
      %s65 = sphi 0, %s67
      %s68 = sphi 0, %s65
      %s69 = sphi 0, %s68
      %s85 = sphi 0, %s69
      %s89 = sphi 0, %s89
      %s91 = sphi 0, %s89
      %s92 = sphi 0, %s91
      %s106 = sphi 0, %s92
      %s110 = sphi 0, %s110
      %s112 = sphi 0, %s110
      %s113 = sphi 0, %s112
      %s127 = sphi 0, %s113
      %s131 = sphi 0, %s131
      %s133 = sphi 0, %s131
      %s134 = sphi 0, %s133
      %s148 = sphi 0, %s134
      %s152 = sphi 0, %s152
      %s154 = sphi 0, %s152
      %s155 = sphi 0, %s154
      %s169 = sphi 0, %s155
      %s173 = sphi 0, %s173
      %s175 = sphi 0, %s173
      %s176 = sphi 0, %s175
      %s190 = sphi 0, %s176
      %s194 = sphi 0, %s194
      %s196 = sphi 0, %s194
      %s197 = sphi 0, %s196
      %s211 = sphi 0, %s197
      %s215 = sphi 0, %s215
      %s217 = sphi 0, %s215
      %s218 = sphi 0, %s217
      %s232 = sphi 0, %s218
      %s236 = sphi 0, %s236
      %s238 = sphi 0, %s236
      %s239 = sphi 0, %s238
      %s253 = sphi 0, %s239
      %s257 = sphi 0, %s257
      %s259 = sphi 0, %s257
      %s260 = sphi 0, %s259
      %s274 = sphi 0, %s260
      %s278 = sphi 0, %s278
      %s280 = sphi 0, %s278
      %s281 = sphi 0, %s280
      %s295 = sphi 0, %s281
      %s299 = sphi 0, %s299
      %s301 = sphi 0, %s299
      %s302 = sphi 0, %s301
      %s316 = sphi 0, %s302
      %s320 = sphi 0, %s320
      %s322 = sphi 0, %s320
      %s323 = sphi 0, %s322
      %s337 = sphi 0, %s323
      %s341 = sphi 0, %s341
      %s343 = sphi 0, %s341
      %s344 = sphi 0, %s343
      %s358 = sphi 0, %s344
      %s364 = sphi 0, %s366
      %s367 = sphi 0, %s364
      %s368 = sphi 0, %s367
      %s384 = sphi 0, %s368
      %s390 = sphi 0, %s392
      %s393 = sphi 0, %s390
      %s394 = sphi 0, %s393
      %s410 = sphi 0, %s394
    $region4: #{tpu_custom_call.1} parent=1 // loop_header_branch
      %32 = sbr.rel (%p30) target = $region8
    $region5: #{tpu_custom_call.1} parent=1 // loop_body
      %s34 = ssub.s32 %s29, 1
      %s35 = ssub.s32 %s29, 2
      %s36 = sadd.s32 %s29, 1
      %s37 = ssub.s32 %s29, %s36
      %p38 = scmp.eq.s32.totalorder %s37, 0
      %s40 = sadd.s32 %s39, 1
      %s41 = scalar_select %p38, %s39, %s40
      %p44 = pneg %p38
      %p45 = scmp.eq.s32.totalorder %s29, 1
      %p46 = por %p44, %p45
      %p47 = scmp.ne.s32.totalorder %s39, %s42
      %p48 = scmp.eq.s32.totalorder %s29, 0
      %p49 = por %p47, %p48
      %p50 = scmp.ne.s32.totalorder %s39, %s42
      %p51 = scmp.eq.s32.totalorder %s34, 1
      %p52 = por %p50, %p51
      %p53 = scmp.ne.s32.totalorder %s42, %s43
      %p54 = scmp.eq.s32.totalorder %s34, 0
      %p55 = por %p53, %p54
      %p56 = scmp.ne.s32.totalorder %s42, %s43
      %p57 = scmp.eq.s32.totalorder %s35, 1
      %p58 = por %p56, %p57
      %p60 = scmp.ne.s32.totalorder %s43, %s59
      %p61 = scmp.eq.s32.totalorder %s35, 0
      %p62 = por %p60, %p61
      %s63 = ssub.s32 %s29, %s36
      %p64 = scmp.eq.s32.totalorder %s63, 0
      %s66 = sadd.s32 %s65, 1
      %s67 = scalar_select %p64, %s65, %s66
      %p70 = pneg %p64
      %p71 = scmp.eq.s32.totalorder %s29, 1
      %p72 = por %p70, %p71
      %p73 = scmp.ne.s32.totalorder %s65, %s68
      %p74 = scmp.eq.s32.totalorder %s29, 0
      %p75 = por %p73, %p74
      %p76 = scmp.ne.s32.totalorder %s65, %s68
      %p77 = scmp.eq.s32.totalorder %s34, 1
      %p78 = por %p76, %p77
      %p79 = scmp.ne.s32.totalorder %s68, %s69
      %p80 = scmp.eq.s32.totalorder %s34, 0
      %p81 = por %p79, %p80
      %p82 = scmp.ne.s32.totalorder %s68, %s69
      %p83 = scmp.eq.s32.totalorder %s35, 1
      %p84 = por %p82, %p83
      %p86 = scmp.ne.s32.totalorder %s69, %s85
      %p87 = scmp.eq.s32.totalorder %s35, 0
      %p88 = por %p86, %p87
      %s90 = sadd.s32 %s89, 1
      %p93 = scmp.eq.s32.totalorder %s29, 1
      %p94 = scmp.ne.s32.totalorder %s89, %s91
      %p95 = scmp.eq.s32.totalorder %s29, 0
      %p96 = por %p94, %p95
      %p97 = scmp.ne.s32.totalorder %s89, %s91
      %p98 = scmp.eq.s32.totalorder %s34, 1
      %p99 = por %p97, %p98
      %p100 = scmp.ne.s32.totalorder %s91, %s92
      %p101 = scmp.eq.s32.totalorder %s34, 0
      %p102 = por %p100, %p101
      %p103 = scmp.ne.s32.totalorder %s91, %s92
      %p104 = scmp.eq.s32.totalorder %s35, 1
      %p105 = por %p103, %p104
      %p107 = scmp.ne.s32.totalorder %s92, %s106
      %p108 = scmp.eq.s32.totalorder %s35, 0
      %p109 = por %p107, %p108
      %s111 = sadd.s32 %s110, 1
      %p114 = scmp.eq.s32.totalorder %s29, 1
      %p115 = scmp.ne.s32.totalorder %s110, %s112
      %p116 = scmp.eq.s32.totalorder %s29, 0
      %p117 = por %p115, %p116
      %p118 = scmp.ne.s32.totalorder %s110, %s112
      %p119 = scmp.eq.s32.totalorder %s34, 1
      %p120 = por %p118, %p119
      %p121 = scmp.ne.s32.totalorder %s112, %s113
      %p122 = scmp.eq.s32.totalorder %s34, 0
      %p123 = por %p121, %p122
      %p124 = scmp.ne.s32.totalorder %s112, %s113
      %p125 = scmp.eq.s32.totalorder %s35, 1
      %p126 = por %p124, %p125
      %p128 = scmp.ne.s32.totalorder %s113, %s127
      %p129 = scmp.eq.s32.totalorder %s35, 0
      %p130 = por %p128, %p129
      %s132 = sadd.s32 %s131, 1
      %p135 = scmp.eq.s32.totalorder %s29, 1
      %p136 = scmp.ne.s32.totalorder %s131, %s133
      %p137 = scmp.eq.s32.totalorder %s29, 0
      %p138 = por %p136, %p137
      %p139 = scmp.ne.s32.totalorder %s131, %s133
      %p140 = scmp.eq.s32.totalorder %s34, 1
      %p141 = por %p139, %p140
      %p142 = scmp.ne.s32.totalorder %s133, %s134
      %p143 = scmp.eq.s32.totalorder %s34, 0
      %p144 = por %p142, %p143
      %p145 = scmp.ne.s32.totalorder %s133, %s134
      %p146 = scmp.eq.s32.totalorder %s35, 1
      %p147 = por %p145, %p146
      %p149 = scmp.ne.s32.totalorder %s134, %s148
      %p150 = scmp.eq.s32.totalorder %s35, 0
      %p151 = por %p149, %p150
      %s153 = sadd.s32 %s152, 1
      %p156 = scmp.eq.s32.totalorder %s29, 1
      %p157 = scmp.ne.s32.totalorder %s152, %s154
      %p158 = scmp.eq.s32.totalorder %s29, 0
      %p159 = por %p157, %p158
      %p160 = scmp.ne.s32.totalorder %s152, %s154
      %p161 = scmp.eq.s32.totalorder %s34, 1
      %p162 = por %p160, %p161
      %p163 = scmp.ne.s32.totalorder %s154, %s155
      %p164 = scmp.eq.s32.totalorder %s34, 0
      %p165 = por %p163, %p164
      %p166 = scmp.ne.s32.totalorder %s154, %s155
      %p167 = scmp.eq.s32.totalorder %s35, 1
      %p168 = por %p166, %p167
      %p170 = scmp.ne.s32.totalorder %s155, %s169
      %p171 = scmp.eq.s32.totalorder %s35, 0
      %p172 = por %p170, %p171
      %s174 = sadd.s32 %s173, 1
      %p177 = scmp.eq.s32.totalorder %s29, 1
      %p178 = scmp.ne.s32.totalorder %s173, %s175
      %p179 = scmp.eq.s32.totalorder %s29, 0
      %p180 = por %p178, %p179
      %p181 = scmp.ne.s32.totalorder %s173, %s175
      %p182 = scmp.eq.s32.totalorder %s34, 1
      %p183 = por %p181, %p182
      %p184 = scmp.ne.s32.totalorder %s175, %s176
      %p185 = scmp.eq.s32.totalorder %s34, 0
      %p186 = por %p184, %p185
      %p187 = scmp.ne.s32.totalorder %s175, %s176
      %p188 = scmp.eq.s32.totalorder %s35, 1
      %p189 = por %p187, %p188
      %p191 = scmp.ne.s32.totalorder %s176, %s190
      %p192 = scmp.eq.s32.totalorder %s35, 0
      %p193 = por %p191, %p192
      %s195 = sadd.s32 %s194, 1
      %p198 = scmp.eq.s32.totalorder %s29, 1
      %p199 = scmp.ne.s32.totalorder %s194, %s196
      %p200 = scmp.eq.s32.totalorder %s29, 0
      %p201 = por %p199, %p200
      %p202 = scmp.ne.s32.totalorder %s194, %s196
      %p203 = scmp.eq.s32.totalorder %s34, 1
      %p204 = por %p202, %p203
      %p205 = scmp.ne.s32.totalorder %s196, %s197
      %p206 = scmp.eq.s32.totalorder %s34, 0
      %p207 = por %p205, %p206
      %p208 = scmp.ne.s32.totalorder %s196, %s197
      %p209 = scmp.eq.s32.totalorder %s35, 1
      %p210 = por %p208, %p209
      %p212 = scmp.ne.s32.totalorder %s197, %s211
      %p213 = scmp.eq.s32.totalorder %s35, 0
      %p214 = por %p212, %p213
      %s216 = sadd.s32 %s215, 1
      %p219 = scmp.eq.s32.totalorder %s29, 1
      %p220 = scmp.ne.s32.totalorder %s215, %s217
      %p221 = scmp.eq.s32.totalorder %s29, 0
      %p222 = por %p220, %p221
      %p223 = scmp.ne.s32.totalorder %s215, %s217
      %p224 = scmp.eq.s32.totalorder %s34, 1
      %p225 = por %p223, %p224
      %p226 = scmp.ne.s32.totalorder %s217, %s218
      %p227 = scmp.eq.s32.totalorder %s34, 0
      %p228 = por %p226, %p227
      %p229 = scmp.ne.s32.totalorder %s217, %s218
      %p230 = scmp.eq.s32.totalorder %s35, 1
      %p231 = por %p229, %p230
      %p233 = scmp.ne.s32.totalorder %s218, %s232
      %p234 = scmp.eq.s32.totalorder %s35, 0
      %p235 = por %p233, %p234
      %s237 = sadd.s32 %s236, 1
      %p240 = scmp.eq.s32.totalorder %s29, 1
      %p241 = scmp.ne.s32.totalorder %s236, %s238
      %p242 = scmp.eq.s32.totalorder %s29, 0
      %p243 = por %p241, %p242
      %p244 = scmp.ne.s32.totalorder %s236, %s238
      %p245 = scmp.eq.s32.totalorder %s34, 1
      %p246 = por %p244, %p245
      %p247 = scmp.ne.s32.totalorder %s238, %s239
      %p248 = scmp.eq.s32.totalorder %s34, 0
      %p249 = por %p247, %p248
      %p250 = scmp.ne.s32.totalorder %s238, %s239
      %p251 = scmp.eq.s32.totalorder %s35, 1
      %p252 = por %p250, %p251
      %p254 = scmp.ne.s32.totalorder %s239, %s253
      %p255 = scmp.eq.s32.totalorder %s35, 0
      %p256 = por %p254, %p255
      %s258 = sadd.s32 %s257, 1
      %p261 = scmp.eq.s32.totalorder %s29, 1
      %p262 = scmp.ne.s32.totalorder %s257, %s259
      %p263 = scmp.eq.s32.totalorder %s29, 0
      %p264 = por %p262, %p263
      %p265 = scmp.ne.s32.totalorder %s257, %s259
      %p266 = scmp.eq.s32.totalorder %s34, 1
      %p267 = por %p265, %p266
      %p268 = scmp.ne.s32.totalorder %s259, %s260
      %p269 = scmp.eq.s32.totalorder %s34, 0
      %p270 = por %p268, %p269
      %p271 = scmp.ne.s32.totalorder %s259, %s260
      %p272 = scmp.eq.s32.totalorder %s35, 1
      %p273 = por %p271, %p272
      %p275 = scmp.ne.s32.totalorder %s260, %s274
      %p276 = scmp.eq.s32.totalorder %s35, 0
      %p277 = por %p275, %p276
      %s279 = sadd.s32 %s278, 1
      %p282 = scmp.eq.s32.totalorder %s29, 1
      %p283 = scmp.ne.s32.totalorder %s278, %s280
      %p284 = scmp.eq.s32.totalorder %s29, 0
      %p285 = por %p283, %p284
      %p286 = scmp.ne.s32.totalorder %s278, %s280
      %p287 = scmp.eq.s32.totalorder %s34, 1
      %p288 = por %p286, %p287
      %p289 = scmp.ne.s32.totalorder %s280, %s281
      %p290 = scmp.eq.s32.totalorder %s34, 0
      %p291 = por %p289, %p290
      %p292 = scmp.ne.s32.totalorder %s280, %s281
      %p293 = scmp.eq.s32.totalorder %s35, 1
      %p294 = por %p292, %p293
      %p296 = scmp.ne.s32.totalorder %s281, %s295
      %p297 = scmp.eq.s32.totalorder %s35, 0
      %p298 = por %p296, %p297
      %s300 = sadd.s32 %s299, 1
      %p303 = scmp.eq.s32.totalorder %s29, 1
      %p304 = scmp.ne.s32.totalorder %s299, %s301
      %p305 = scmp.eq.s32.totalorder %s29, 0
      %p306 = por %p304, %p305
      %p307 = scmp.ne.s32.totalorder %s299, %s301
      %p308 = scmp.eq.s32.totalorder %s34, 1
      %p309 = por %p307, %p308
      %p310 = scmp.ne.s32.totalorder %s301, %s302
      %p311 = scmp.eq.s32.totalorder %s34, 0
      %p312 = por %p310, %p311
      %p313 = scmp.ne.s32.totalorder %s301, %s302
      %p314 = scmp.eq.s32.totalorder %s35, 1
      %p315 = por %p313, %p314
      %p317 = scmp.ne.s32.totalorder %s302, %s316
      %p318 = scmp.eq.s32.totalorder %s35, 0
      %p319 = por %p317, %p318
      %s321 = sadd.s32 %s320, 1
      %p324 = scmp.eq.s32.totalorder %s29, 1
      %p325 = scmp.ne.s32.totalorder %s320, %s322
      %p326 = scmp.eq.s32.totalorder %s29, 0
      %p327 = por %p325, %p326
      %p328 = scmp.ne.s32.totalorder %s320, %s322
      %p329 = scmp.eq.s32.totalorder %s34, 1
      %p330 = por %p328, %p329
      %p331 = scmp.ne.s32.totalorder %s322, %s323
      %p332 = scmp.eq.s32.totalorder %s34, 0
      %p333 = por %p331, %p332
      %p334 = scmp.ne.s32.totalorder %s322, %s323
      %p335 = scmp.eq.s32.totalorder %s35, 1
      %p336 = por %p334, %p335
      %p338 = scmp.ne.s32.totalorder %s323, %s337
      %p339 = scmp.eq.s32.totalorder %s35, 0
      %p340 = por %p338, %p339
      %s342 = sadd.s32 %s341, 1
      %p345 = scmp.eq.s32.totalorder %s29, 1
      %p346 = scmp.ne.s32.totalorder %s341, %s343
      %p347 = scmp.eq.s32.totalorder %s29, 0
      %p348 = por %p346, %p347
      %p349 = scmp.ne.s32.totalorder %s341, %s343
      %p350 = scmp.eq.s32.totalorder %s34, 1
      %p351 = por %p349, %p350
      %p352 = scmp.ne.s32.totalorder %s343, %s344
      %p353 = scmp.eq.s32.totalorder %s34, 0
      %p354 = por %p352, %p353
      %p355 = scmp.ne.s32.totalorder %s343, %s344
      %p356 = scmp.eq.s32.totalorder %s35, 1
      %p357 = por %p355, %p356
      %p359 = scmp.ne.s32.totalorder %s344, %s358
      %p360 = scmp.eq.s32.totalorder %s35, 0
      %p361 = por %p359, %p360
      %s362 = ssub.s32 %s29, %s36
      %p363 = scmp.eq.s32.totalorder %s362, 0
      %s365 = sadd.s32 %s364, 1
      %s366 = scalar_select %p363, %s364, %s365
      %p369 = pneg %p363
      %p370 = scmp.eq.s32.totalorder %s29, 1
      %p371 = por %p369, %p370
      %p372 = scmp.ne.s32.totalorder %s364, %s367
      %p373 = scmp.eq.s32.totalorder %s29, 0
      %p374 = por %p372, %p373
      %p375 = scmp.ne.s32.totalorder %s364, %s367
      %p376 = scmp.eq.s32.totalorder %s34, 1
      %p377 = por %p375, %p376
      %p378 = scmp.ne.s32.totalorder %s367, %s368
      %p379 = scmp.eq.s32.totalorder %s34, 0
      %p380 = por %p378, %p379
      %p381 = scmp.ne.s32.totalorder %s367, %s368
      %p382 = scmp.eq.s32.totalorder %s35, 1
      %p383 = por %p381, %p382
      %p385 = scmp.ne.s32.totalorder %s368, %s384
      %p386 = scmp.eq.s32.totalorder %s35, 0
      %p387 = por %p385, %p386
      %s388 = ssub.s32 %s29, %s36
      %p389 = scmp.eq.s32.totalorder %s388, 0
      %s391 = sadd.s32 %s390, 1
      %s392 = scalar_select %p389, %s390, %s391
      %p395 = pneg %p389
      %p396 = scmp.eq.s32.totalorder %s29, 1
      %p397 = por %p395, %p396
      %p398 = scmp.ne.s32.totalorder %s390, %s393
      %p399 = scmp.eq.s32.totalorder %s29, 0
      %p400 = por %p398, %p399
      %p401 = scmp.ne.s32.totalorder %s390, %s393
      %p402 = scmp.eq.s32.totalorder %s34, 1
      %p403 = por %p401, %p402
      %p404 = scmp.ne.s32.totalorder %s393, %s394
      %p405 = scmp.eq.s32.totalorder %s34, 0
      %p406 = por %p404, %p405
      %p407 = scmp.ne.s32.totalorder %s393, %s394
      %p408 = scmp.eq.s32.totalorder %s35, 1
      %p409 = por %p407, %p408
      %p411 = scmp.ne.s32.totalorder %s394, %s410
      %p412 = scmp.eq.s32.totalorder %s35, 0
      %p413 = por %p411, %p412
      %p414 = scmp.le.s32.totalorder 1, %s29
      %p415 = scmp.lt.s32.totalorder %s29, 3
      %p416 = pnand %p414, %p415
      %p417 = pneg %p416
      // Predicated region
      $region9: #{tpu_custom_call.1} parent=5 // pred_check
        _
      $region10: #{tpu_custom_call.1} parent=5 // pred_check_branch
        %419 = sbr.rel (%p416) target = $region12
      $region11: #{tpu_custom_call.1} parent=5 // pred_region
        %s420 = ssub.s32 %s29, 1
        // Predicated region
        $region13: #{tpu_custom_call.1} parent=11 // pred_check
          %p421 = pneg %p102
        $region14: #{tpu_custom_call.1} parent=11 // pred_check_branch
          %423 = sbr.rel (%p421) target = $region16
        $region15: #{tpu_custom_call.1} parent=11 // pred_region
          %s425 = ssub.s32 32, 32
          %426 = vsyncadd [#allocation5], %s425
          %s428 = sshll.u32 [#allocation4], 4
          %s429 = int_to_ptr.vmem [resolvable:$true] %s428
          %431 = dma.hbm_to_vmem [thread:$0]  %s2, 32, %s429, [#allocation5]
        $region16: #{tpu_custom_call.1} parent=11 // pred_fallthru
          _
        // Predicated region
        $region17: #{tpu_custom_call.1} parent=11 // pred_check
          %p432 = pneg %p123
        $region18: #{tpu_custom_call.1} parent=11 // pred_check_branch
          %434 = sbr.rel (%p432) target = $region20
        $region19: #{tpu_custom_call.1} parent=11 // pred_region
          _
        $region20: #{tpu_custom_call.1} parent=11 // pred_fallthru
          _
        // Predicated region
        $region21: #{tpu_custom_call.1} parent=11 // pred_check
          %p435 = pneg %p144
        $region22: #{tpu_custom_call.1} parent=11 // pred_check_branch
          %437 = sbr.rel (%p435) target = $region24
        $region23: #{tpu_custom_call.1} parent=11 // pred_region
          _
        $region24: #{tpu_custom_call.1} parent=11 // pred_fallthru
          _
        // Predicated region
        $region25: #{tpu_custom_call.1} parent=11 // pred_check
          %p438 = pneg %p165
        $region26: #{tpu_custom_call.1} parent=11 // pred_check_branch
          %440 = sbr.rel (%p438) target = $region28
        $region27: #{tpu_custom_call.1} parent=11 // pred_region
          %s442 = ssub.s32 1024, 1024
          %443 = vsyncadd [#allocation5], %s442
          %s444 = sshll.u32 [#allocation6], 4
          %s445 = int_to_ptr.vmem [resolvable:$true] %s444
          %450 = dma.hbm_to_vmem [thread:$0]  %s5, 1024, %s445, [#allocation5], 128, 128, 8
        $region28: #{tpu_custom_call.1} parent=11 // pred_fallthru
          _
        // Predicated region
        $region29: #{tpu_custom_call.1} parent=11 // pred_check
          %p451 = pneg %p186
        $region30: #{tpu_custom_call.1} parent=11 // pred_check_branch
          %453 = sbr.rel (%p451) target = $region32
        $region31: #{tpu_custom_call.1} parent=11 // pred_region
          %s455 = ssub.s32 3072, 3072
          %456 = vsyncadd [#allocation8], %s455
          %s457 = sshll.u32 [#allocation7], 4
          %s458 = int_to_ptr.vmem [resolvable:$true] %s457
          %463 = dma.hbm_to_vmem [thread:$0]  %s6, 3072, %s458, [#allocation8], 384, 384, 24
        $region32: #{tpu_custom_call.1} parent=11 // pred_fallthru
          _
        // Predicated region
        $region33: #{tpu_custom_call.1} parent=11 // pred_check
          %p464 = pneg %p207
        $region34: #{tpu_custom_call.1} parent=11 // pred_check_branch
          %466 = sbr.rel (%p464) target = $region36
        $region35: #{tpu_custom_call.1} parent=11 // pred_region
          %s468 = ssub.s32 3072, 3072
          %469 = vsyncadd [#allocation8], %s468
          %s470 = sshll.u32 [#allocation9], 4
          %s471 = int_to_ptr.vmem [resolvable:$true] %s470
          %476 = dma.hbm_to_vmem [thread:$0]  %s7, 3072, %s471, [#allocation8], 384, 384, 24
        $region36: #{tpu_custom_call.1} parent=11 // pred_fallthru
          _
        // Predicated region
        $region37: #{tpu_custom_call.1} parent=11 // pred_check
          %p477 = pneg %p228
        $region38: #{tpu_custom_call.1} parent=11 // pred_check_branch
          %479 = sbr.rel (%p477) target = $region40
        $region39: #{tpu_custom_call.1} parent=11 // pred_region
          _
        $region40: #{tpu_custom_call.1} parent=11 // pred_fallthru
          _
        // Predicated region
        $region41: #{tpu_custom_call.1} parent=11 // pred_check
          %p480 = pneg %p249
        $region42: #{tpu_custom_call.1} parent=11 // pred_check_branch
          %482 = sbr.rel (%p480) target = $region44
        $region43: #{tpu_custom_call.1} parent=11 // pred_region
          _
        $region44: #{tpu_custom_call.1} parent=11 // pred_fallthru
          _
        // Predicated region
        $region45: #{tpu_custom_call.1} parent=11 // pred_check
          %p483 = pneg %p270
        $region46: #{tpu_custom_call.1} parent=11 // pred_check_branch
          %485 = sbr.rel (%p483) target = $region48
        $region47: #{tpu_custom_call.1} parent=11 // pred_region
          _
        $region48: #{tpu_custom_call.1} parent=11 // pred_fallthru
          _
        // Predicated region
        $region49: #{tpu_custom_call.1} parent=11 // pred_check
          %p486 = pneg %p291
        $region50: #{tpu_custom_call.1} parent=11 // pred_check_branch
          %488 = sbr.rel (%p486) target = $region52
        $region51: #{tpu_custom_call.1} parent=11 // pred_region
          %s490 = ssub.s32 2048, 2048
          %491 = vsyncadd [#allocation11], %s490
          %s492 = sshll.u32 [#allocation10], 4
          %s493 = int_to_ptr.vmem [resolvable:$true] %s492
          %498 = dma.hbm_to_vmem [thread:$0]  %s11, 2048, %s493, [#allocation11], 256, 256, 16
        $region52: #{tpu_custom_call.1} parent=11 // pred_fallthru
          _
        // Predicated region
        $region53: #{tpu_custom_call.1} parent=11 // pred_check
          %p499 = pneg %p312
        $region54: #{tpu_custom_call.1} parent=11 // pred_check_branch
          %501 = sbr.rel (%p499) target = $region56
        $region55: #{tpu_custom_call.1} parent=11 // pred_region
          _
        $region56: #{tpu_custom_call.1} parent=11 // pred_fallthru
          _
        // Predicated region
        $region57: #{tpu_custom_call.1} parent=11 // pred_check
          %p502 = pneg %p333
        $region58: #{tpu_custom_call.1} parent=11 // pred_check_branch
          %504 = sbr.rel (%p502) target = $region60
        $region59: #{tpu_custom_call.1} parent=11 // pred_region
          %s506 = ssub.s32 2048, 2048
          %507 = vsyncadd [#allocation11], %s506
          %s508 = sshll.u32 [#allocation12], 4
          %s509 = int_to_ptr.vmem [resolvable:$true] %s508
          %514 = dma.hbm_to_vmem [thread:$0]  %s13, 2048, %s509, [#allocation11], 128, 128, 8
        $region60: #{tpu_custom_call.1} parent=11 // pred_fallthru
          _
        // Predicated region
        $region61: #{tpu_custom_call.1} parent=11 // pred_check
          %p515 = pneg %p354
        $region62: #{tpu_custom_call.1} parent=11 // pred_check_branch
          %517 = sbr.rel (%p515) target = $region64
        $region63: #{tpu_custom_call.1} parent=11 // pred_region
          _
        $region64: #{tpu_custom_call.1} parent=11 // pred_fallthru
          _
      $region12: #{tpu_custom_call.1} parent=5 // pred_fallthru
        _
      %p518 = scmp.lt.s32.totalorder %s29, 2
      // Predicated region
      $region65: #{tpu_custom_call.1} parent=5 // pred_check
        %p519 = pneg %p518
      $region66: #{tpu_custom_call.1} parent=5 // pred_check_branch
        %521 = sbr.rel (%p519) target = $region68
      $region67: #{tpu_custom_call.1} parent=5 // pred_region
        // Predicated region
        $region69: #{tpu_custom_call.1} parent=67 // pred_check
          %p522 = pneg %p49
        $region70: #{tpu_custom_call.1} parent=67 // pred_check_branch
          %524 = sbr.rel (%p522) target = $region72
        $region71: #{tpu_custom_call.1} parent=67 // pred_region
          %s525 = sand.u32 %s39, 1
          %s526 = scalar_lea.sflag [#allocation3], %s525
          %s527 = sand.u32 %s39, 1
          %s528 = smul.addr %s527, 64
          %s529 = scalar_lea.vmem [#allocation2], %s528
          %s531 = ssub.s32 1024, 1024
          %532 = vsyncadd %s526, %s531
          %s533 = smul.addr %s29, 8
          %s534 = smul.addr %s533, 128
          %s535 = scalar_lea.hbm %s0, %s534
          %s536 = sshll.u32 %s529, 4
          %s537 = int_to_ptr.vmem [resolvable:$true] %s536
          %542 = dma.hbm_to_vmem [thread:$0]  %s535, 1024, %s537, %s526, 128, 128, 8
        $region72: #{tpu_custom_call.1} parent=67 // pred_fallthru
          _
        // Predicated region
        $region73: #{tpu_custom_call.1} parent=67 // pred_check
          %p543 = pneg %p75
        $region74: #{tpu_custom_call.1} parent=67 // pred_check_branch
          %545 = sbr.rel (%p543) target = $region76
        $region75: #{tpu_custom_call.1} parent=67 // pred_region
          %p546 = scmp.lt.s32.totalorder %s29, 1
          %s547 = scalar_select %p546, %s29, 1
          %s548 = smul.addr %s547, 8
          %s549 = scalar_lea.vmem %s1, %s548
        $region76: #{tpu_custom_call.1} parent=67 // pred_fallthru
          _
      $region68: #{tpu_custom_call.1} parent=5 // pred_fallthru
        _
      %p550 = scmp.le.s32.totalorder 1, %s29
      %p551 = scmp.lt.s32.totalorder %s29, 3
      %p552 = pnand %p550, %p551
      %p553 = pneg %p552
      // Predicated region
      $region77: #{tpu_custom_call.1} parent=5 // pred_check
        _
      $region78: #{tpu_custom_call.1} parent=5 // pred_check_branch
        %555 = sbr.rel (%p552) target = $region80
      $region79: #{tpu_custom_call.1} parent=5 // pred_region
        %s556 = ssub.s32 %s29, 1
        %s557 = sand.u32 %s42, 1
        %s558 = scalar_lea.sflag [#allocation3], %s557
        %s559 = sand.u32 %s42, 1
        %s560 = smul.addr %s559, 64
        %s561 = scalar_lea.vmem [#allocation2], %s560
        // Predicated region
        $region81: #{tpu_custom_call.1} parent=79 // pred_check
          %p562 = pneg %p55
        $region82: #{tpu_custom_call.1} parent=79 // pred_check_branch
          %564 = sbr.rel (%p562) target = $region84
        $region83: #{tpu_custom_call.1} parent=79 // pred_region
          %565 = dma.done %s558, 1024
        $region84: #{tpu_custom_call.1} parent=79 // pred_fallthru
          _
        // Predicated region
        $region85: #{tpu_custom_call.1} parent=79 // pred_check
          %p566 = pneg %p102
        $region86: #{tpu_custom_call.1} parent=79 // pred_check_branch
          %568 = sbr.rel (%p566) target = $region88
        $region87: #{tpu_custom_call.1} parent=79 // pred_region
          %569 = dma.done [#allocation5], 32
        $region88: #{tpu_custom_call.1} parent=79 // pred_fallthru
          _
        // Predicated region
        $region89: #{tpu_custom_call.1} parent=79 // pred_check
          %p570 = pneg %p165
        $region90: #{tpu_custom_call.1} parent=79 // pred_check_branch
          %572 = sbr.rel (%p570) target = $region92
        $region91: #{tpu_custom_call.1} parent=79 // pred_region
          %573 = dma.done [#allocation5], 1024
        $region92: #{tpu_custom_call.1} parent=79 // pred_fallthru
          _
        // Predicated region
        $region93: #{tpu_custom_call.1} parent=79 // pred_check
          %p574 = pneg %p186
        $region94: #{tpu_custom_call.1} parent=79 // pred_check_branch
          %576 = sbr.rel (%p574) target = $region96
        $region95: #{tpu_custom_call.1} parent=79 // pred_region
          %577 = dma.done [#allocation8], 3072
        $region96: #{tpu_custom_call.1} parent=79 // pred_fallthru
          _
        // Predicated region
        $region97: #{tpu_custom_call.1} parent=79 // pred_check
          %p578 = pneg %p207
        $region98: #{tpu_custom_call.1} parent=79 // pred_check_branch
          %580 = sbr.rel (%p578) target = $region100
        $region99: #{tpu_custom_call.1} parent=79 // pred_region
          %581 = dma.done [#allocation8], 3072
        $region100: #{tpu_custom_call.1} parent=79 // pred_fallthru
          _
        // Predicated region
        $region101: #{tpu_custom_call.1} parent=79 // pred_check
          %p582 = pneg %p291
        $region102: #{tpu_custom_call.1} parent=79 // pred_check_branch
          %584 = sbr.rel (%p582) target = $region104
        $region103: #{tpu_custom_call.1} parent=79 // pred_region
          %585 = dma.done [#allocation11], 2048
        $region104: #{tpu_custom_call.1} parent=79 // pred_fallthru
          _
        // Predicated region
        $region105: #{tpu_custom_call.1} parent=79 // pred_check
          %p586 = pneg %p333
        $region106: #{tpu_custom_call.1} parent=79 // pred_check_branch
          %588 = sbr.rel (%p586) target = $region108
        $region107: #{tpu_custom_call.1} parent=79 // pred_region
          %589 = dma.done [#allocation11], 2048
        $region108: #{tpu_custom_call.1} parent=79 // pred_fallthru
          _
        %s590 = sand.u32 %s42, 1
        %s591 = scalar_lea.sflag [#allocation3], %s590
        %s592 = sand.u32 %s42, 1
        %s593 = smul.addr %s592, 64
        %s594 = scalar_lea.vmem [#allocation2], %s593
        %p595 = pneg %p55
        %p596 = pneg %p52
        %p597 = scmp.lt.s32.totalorder %s34, 1
        %s598 = scalar_select %p597, %s34, 1
        %s599 = smul.addr %s598, 8
        %s600 = scalar_lea.vmem %s1, %s599
        %p601 = pneg %p81
        %p602 = pneg %p78
        %p603 = pneg %p102
        %p604 = pneg %p99
        %p605 = pneg %p123
        %p606 = pneg %p120
        %p607 = pneg %p144
        %p608 = pneg %p141
        %p609 = pneg %p165
        %p610 = pneg %p162
        %p611 = pneg %p186
        %p612 = pneg %p183
        %p613 = pneg %p207
        %p614 = pneg %p204
        %p615 = pneg %p228
        %p616 = pneg %p225
        %p617 = pneg %p249
        %p618 = pneg %p246
        %p619 = pneg %p270
        %p620 = pneg %p267
        %p621 = pneg %p291
        %p622 = pneg %p288
        %p623 = pneg %p312
        %p624 = pneg %p309
        %p625 = pneg %p333
        %p626 = pneg %p330
        %p627 = pneg %p354
        %p628 = pneg %p351
        %p629 = pneg %p380
        %p630 = pneg %p377
        %p631 = scmp.lt.s32.totalorder %s34, 1
        %s632 = scalar_select %p631, %s34, 1
        %s633 = smul.addr %s632, 8
        %s634 = scalar_lea.vmem %s15, %s633
        %p635 = pneg %p406
        %p636 = pneg %p403
        %p637 = scmp.lt.s32.totalorder %s34, 1
        %s638 = scalar_select %p637, %s34, 1
        %s639 = smul.addr %s638, 8
        %s640 = scalar_lea.vmem %s16, %s639
        %p641 = scmp.lt.s32.totalorder %s34, 1
        %s642 = scalar_select %p641, %s34, 1
        %s643 = smul.addr %s642, 8
        %s644 = scalar_lea.vmem %s1, %s643
        %p645 = scmp.lt.s32.totalorder %s34, 1
        %s646 = scalar_select %p645, %s34, 1
        %s647 = smul.addr %s646, 8
        %s648 = scalar_lea.vmem %s15, %s647
        %p649 = scmp.lt.s32.totalorder %s34, 1
        %s650 = scalar_select %p649, %s34, 1
        %s651 = smul.addr %s650, 8
        %s652 = scalar_lea.vmem %s16, %s651
        %v653 = vlaneseq
        %v654 = vshrl.u32 %v653, 7
        %vm655 = vcmp.eq.s32.totalorder %v654, 0
        %v656 = vld [vmem:[%s561] sm:$0xff]
        %v657 = vld [vmem:[%s561 + $0x8] sm:$0xff]
        %v658 = vld [vmem:[%s561 + $0x10] sm:$0xff]
        %v659 = vld [vmem:[%s561 + $0x18] sm:$0xff]
        %v660 = vld [vmem:[%s561 + $0x20] sm:$0xff]
        %v661 = vld [vmem:[%s561 + $0x28] sm:$0xff]
        %v662 = vld [vmem:[%s561 + $0x30] sm:$0xff]
        %v663 = vld [vmem:[%s561 + $0x38] sm:$0xff]
        %v664 = vld [vmem:[#allocation4] sm:$0x1]
        %v665 = vld [vmem:[#allocation4 + $0x1] sm:$0x1]
        %vm666 = vcmask 523264
        %v667 = vsel %vm666, %v656, 0.0
        %668 = vadd.xlane.f32.xlu0 %v667
        %v669 = vpop.xlane.xlu0 %668
        %v670 = vsel %vm666, %v657, 0.0
        %671 = vadd.xlane.f32.xlu0 %v670
        %v672 = vpop.xlane.xlu0 %671
        %v673 = vsel %vm666, %v658, 0.0
        %674 = vadd.xlane.f32.xlu0 %v673
        %v675 = vpop.xlane.xlu0 %674
        %v676 = vsel %vm666, %v659, 0.0
        %677 = vadd.xlane.f32.xlu0 %v676
        %v678 = vpop.xlane.xlu0 %677
        %v679 = vsel %vm666, %v660, 0.0
        %680 = vadd.xlane.f32.xlu0 %v679
        %v681 = vpop.xlane.xlu0 %680
        %v682 = vsel %vm666, %v661, 0.0
        %683 = vadd.xlane.f32.xlu0 %v682
        %v684 = vpop.xlane.xlu0 %683
        %v685 = vsel %vm666, %v662, 0.0
        %686 = vadd.xlane.f32.xlu0 %v685
        %v687 = vpop.xlane.xlu0 %686
        %v688 = vsel %vm666, %v663, 0.0
        %689 = vadd.xlane.f32.xlu0 %v688
        %v690 = vpop.xlane.xlu0 %689
        %v691 = vrcp.pop 64.0
        %v692 = vmul.f32 %v669, %v691
        %v693 = vmul.f32 %v672, %v691
        %v694 = vmul.f32 %v675, %v691
        %v695 = vmul.f32 %v678, %v691
        %v696 = vmul.f32 %v681, %v691
        %v697 = vmul.f32 %v684, %v691
        %v698 = vmul.f32 %v687, %v691
        %v699 = vmul.f32 %v690, %v691
        %v700 = vsub.f32 %v656, %v692
        %v701 = vsub.f32 %v657, %v693
        %v702 = vsub.f32 %v658, %v694
        %v703 = vsub.f32 %v659, %v695
        %v704 = vsub.f32 %v660, %v696
        %v705 = vsub.f32 %v661, %v697
        %v706 = vsub.f32 %v662, %v698
        %v707 = vsub.f32 %v663, %v699
        %v708 = vmul.f32 %v700, %v700
        %v709 = vmul.f32 %v701, %v701
        %v710 = vmul.f32 %v702, %v702
        %v711 = vmul.f32 %v703, %v703
        %v712 = vmul.f32 %v704, %v704
        %v713 = vmul.f32 %v705, %v705
        %v714 = vmul.f32 %v706, %v706
        %v715 = vmul.f32 %v707, %v707
        %v716 = vsel %vm666, %v708, 0.0
        %717 = vadd.xlane.f32.xlu0 %v716
        %v718 = vpop.xlane.xlu0 %717
        %v719 = vsel %vm666, %v709, 0.0
        %720 = vadd.xlane.f32.xlu0 %v719
        %v721 = vpop.xlane.xlu0 %720
        %v722 = vsel %vm666, %v710, 0.0
        %723 = vadd.xlane.f32.xlu0 %v722
        %v724 = vpop.xlane.xlu0 %723
        %v725 = vsel %vm666, %v711, 0.0
        %726 = vadd.xlane.f32.xlu0 %v725
        %v727 = vpop.xlane.xlu0 %726
        %v728 = vsel %vm666, %v712, 0.0
        %729 = vadd.xlane.f32.xlu0 %v728
        %v730 = vpop.xlane.xlu0 %729
        %v731 = vsel %vm666, %v713, 0.0
        %732 = vadd.xlane.f32.xlu0 %v731
        %v733 = vpop.xlane.xlu0 %732
        %v734 = vsel %vm666, %v714, 0.0
        %735 = vadd.xlane.f32.xlu0 %v734
        %v736 = vpop.xlane.xlu0 %735
        %v737 = vsel %vm666, %v715, 0.0
        %738 = vadd.xlane.f32.xlu0 %v737
        %v739 = vpop.xlane.xlu0 %738
        %v740 = vmul.f32 %v718, %v691
        %v741 = vmul.f32 %v721, %v691
        %v742 = vmul.f32 %v724, %v691
        %v743 = vmul.f32 %v727, %v691
        %v744 = vmul.f32 %v730, %v691
        %v745 = vmul.f32 %v733, %v691
        %v746 = vmul.f32 %v736, %v691
        %v747 = vmul.f32 %v739, %v691
        %v748 = vadd.f32 %v740, 1e-05
        %v749 = vadd.f32 %v741, 1e-05
        %v750 = vadd.f32 %v742, 1e-05
        %v751 = vadd.f32 %v743, 1e-05
        %v752 = vadd.f32 %v744, 1e-05
        %v753 = vadd.f32 %v745, 1e-05
        %v754 = vadd.f32 %v746, 1e-05
        %v755 = vadd.f32 %v747, 1e-05
        %v756 = vrsqrt.pop %v748
        %v757 = vrsqrt.pop %v749
        %v758 = vrsqrt.pop %v750
        %v759 = vrsqrt.pop %v751
        %v760 = vrsqrt.pop %v752
        %v761 = vrsqrt.pop %v753
        %v762 = vrsqrt.pop %v754
        %v763 = vrsqrt.pop %v755
        %v764 = vmul.f32 %v700, %v756
        %v765 = vmul.f32 %v701, %v757
        %v766 = vmul.f32 %v702, %v758
        %v767 = vmul.f32 %v703, %v759
        %v768 = vmul.f32 %v704, %v760
        %v769 = vmul.f32 %v705, %v761
        %v770 = vmul.f32 %v706, %v762
        %v771 = vmul.f32 %v707, %v763
        %v772 = vlaneseq
        %v773 = vshrl.u32 %v772, 7
        %v774 = vsub.s32 0, %v773
        %v775 = vrot.slane %v664, %v774
        %v776 = vmul.f32 %v764, %v775
        %v777 = vmul.f32 %v765, %v775
        %v778 = vmul.f32 %v766, %v775
        %v779 = vmul.f32 %v767, %v775
        %v780 = vmul.f32 %v768, %v775
        %v781 = vmul.f32 %v769, %v775
        %v782 = vmul.f32 %v770, %v775
        %v783 = vmul.f32 %v771, %v775
        %v784 = vlaneseq
        %v785 = vshrl.u32 %v784, 7
        %v786 = vsub.s32 0, %v785
        %v787 = vrot.slane %v665, %v786
        %v788 = vadd.f32 %v776, %v787
        %v789 = vadd.f32 %v777, %v787
        %v790 = vadd.f32 %v778, %v787
        %v791 = vadd.f32 %v779, %v787
        %v792 = vadd.f32 %v780, %v787
        %v793 = vadd.f32 %v781, %v787
        %v794 = vadd.f32 %v782, %v787
        %v795 = vadd.f32 %v783, %v787
        %v796 = vld [vmem:[%s3] sm:$0xff]
        %v797 = vld [vmem:[%s3 + $0x8] sm:$0xff]
        %v798 = vld [vmem:[%s3 + $0x10] sm:$0xff]
        %v799 = vld [vmem:[%s3 + $0x18] sm:$0xff]
        %v800 = vld [vmem:[%s3 + $0x20] sm:$0xff]
        %v801 = vld [vmem:[%s3 + $0x28] sm:$0xff]
        %v802 = vld [vmem:[%s3 + $0x30] sm:$0xff]
        %v803 = vld [vmem:[%s3 + $0x38] sm:$0xff]
        %v805 = vsel %vm666, %v788, 0
        %v808 = vsel %vm666, %v789, 0
        %v811 = vsel %vm666, %v790, 0
        %v814 = vsel %vm666, %v791, 0
        %v817 = vsel %vm666, %v792, 0
        %v820 = vsel %vm666, %v793, 0
        %v823 = vsel %vm666, %v794, 0
        %v826 = vsel %vm666, %v795, 0
        %828 = vmatprep.subr.mxu0 0.0
        %829 = vmatpush1.msra.mxu0 %v796
        %830 = vmatprep.subr.mxu0 0.0
        %831 = vmatpush1.msra.mxu0 %v797
        %832 = vmatprep.subr.mxu0 0.0
        %833 = vmatpush1.msra.mxu0 %v798
        %834 = vmatprep.subr.mxu0 0.0
        %835 = vmatpush1.msra.mxu0 %v799
        %836 = vmatprep.subr.mxu0 0.0
        %837 = vmatpush1.msra.mxu0 %v800
        %838 = vmatprep.subr.mxu0 0.0
        %839 = vmatpush1.msra.mxu0 %v801
        %840 = vmatprep.subr.mxu0 0.0
        %841 = vmatpush1.msra.mxu0 %v802
        %842 = vmatprep.subr.mxu0 0.0
        %843 = vmatpush1.msra.mxu0 %v803
        %844 = vmatprep.subr.mxu0 0.0
        %845 = vmatpush1.msra.mxu0 0.0
        %846 = vmatprep.subr.mxu0 0.0
        %847 = vmatpush1.msra.mxu0 0.0
        %848 = vmatprep.subr.mxu0 0.0
        %849 = vmatpush1.msra.mxu0 0.0
        %850 = vmatprep.subr.mxu0 0.0
        %851 = vmatpush1.msra.mxu0 0.0
        %852 = vmatprep.subr.mxu0 0.0
        %853 = vmatpush1.msra.mxu0 0.0
        %854 = vmatprep.subr.mxu0 0.0
        %855 = vmatpush1.msra.mxu0 0.0
        %856 = vmatprep.subr.mxu0 0.0
        %857 = vmatpush1.msra.mxu0 0.0
        %858 = vmatprep.subr.mxu0 0.0
        %859 = vmatpush1.msra.mxu0 0.0
        %860 = vmatprep.subr.mxu0 0.0
        %861 = vmatpush1.msra.mxu0 0.0
        %862 = vmatprep.subr.mxu0 0.0
        %863 = vmatpush1.msra.mxu0 0.0
        %864 = vmatprep.subr.mxu0 0.0
        %865 = vmatpush1.msra.mxu0 0.0
        %866 = vmatprep.subr.mxu0 0.0
        %867 = vmatpush1.msra.mxu0 0.0
        %868 = vmatprep.subr.mxu0 0.0
        %869 = vmatpush1.msra.mxu0 0.0
        %870 = vmatprep.subr.mxu0 0.0
        %871 = vmatpush1.msra.mxu0 0.0
        %872 = vmatprep.subr.mxu0 0.0
        %873 = vmatpush1.msra.mxu0 0.0
        %874 = vmatprep.subr.mxu0 0.0
        %875 = vmatpush1.msra.mxu0 0.0
        %876 = vmatprep.subr.mxu0 0.0
        %877 = vmatpush1.msra.mxu0 0.0
        %878 = vmatprep.subr.mxu0 0.0
        %879 = vmatpush1.msra.mxu0 0.0
        %880 = vmatprep.subr.mxu0 0.0
        %881 = vmatpush1.msra.mxu0 0.0
        %882 = vmatprep.subr.mxu0 0.0
        %883 = vmatpush1.msra.mxu0 0.0
        %884 = vmatprep.subr.mxu0 0.0
        %885 = vmatpush1.msra.mxu0 0.0
        %886 = vmatprep.subr.mxu0 0.0
        %887 = vmatpush1.msra.mxu0 0.0
        %888 = vmatprep.subr.mxu0 0.0
        %889 = vmatpush1.msra.mxu0 0.0
        %890 = vmatprep.subr.mxu0 0.0
        %891 = vmatpush1.msra.mxu0 0.0
        %892 = vmatprep.mubr.f32.mxu0 0.0
        %893 = vmatmul.mubr.f32.gmra.mrb[0].mxu0 %v805
        %v894 = vpop.f32.mrb[0].mxu0
        %v895 = vadd.f32 0.0, %v894
        %v896 = vpop.f32.mrb[0].mxu0
        %897 = vmatprep.mubr.f32.mxu0 0.0
        %898 = vmatmul.mubr.f32.gmra.mrb[0].mxu0 %v808
        %v899 = vpop.f32.mrb[0].mxu0
        %v900 = vadd.f32 0.0, %v899
        %v901 = vpop.f32.mrb[0].mxu0
        %902 = vmatprep.mubr.f32.mxu0 0.0
        %903 = vmatmul.mubr.f32.gmra.mrb[0].mxu0 %v811
        %v904 = vpop.f32.mrb[0].mxu0
        %v905 = vadd.f32 0.0, %v904
        %v906 = vpop.f32.mrb[0].mxu0
        %907 = vmatprep.mubr.f32.mxu0 0.0
        %908 = vmatmul.mubr.f32.gmra.mrb[0].mxu0 %v814
        %v909 = vpop.f32.mrb[0].mxu0
        %v910 = vadd.f32 0.0, %v909
        %v911 = vpop.f32.mrb[0].mxu0
        %912 = vmatprep.mubr.f32.mxu0 0.0
        %913 = vmatmul.mubr.f32.gmra.mrb[0].mxu0 %v817
        %v914 = vpop.f32.mrb[0].mxu0
        %v915 = vadd.f32 0.0, %v914
        %v916 = vpop.f32.mrb[0].mxu0
        %917 = vmatprep.mubr.f32.mxu0 0.0
        %918 = vmatmul.mubr.f32.gmra.mrb[0].mxu0 %v820
        %v919 = vpop.f32.mrb[0].mxu0
        %v920 = vadd.f32 0.0, %v919
        %v921 = vpop.f32.mrb[0].mxu0
        %922 = vmatprep.mubr.f32.mxu0 0.0
        %923 = vmatmul.mubr.f32.gmra.mrb[0].mxu0 %v823
        %v924 = vpop.f32.mrb[0].mxu0
        %v925 = vadd.f32 0.0, %v924
        %v926 = vpop.f32.mrb[0].mxu0
        %927 = vmatprep.mubr.f32.mxu0 0.0
        %928 = vmatmul.mubr.f32.gmra.mrb[0].mxu0 %v826
        %v929 = vpop.f32.mrb[0].mxu0
        %v930 = vadd.f32 0.0, %v929
        %v931 = vpop.f32.mrb[0].mxu0
        %932 = vdwg.mxu0
        %v933 = vld [vmem:[%s4] sm:$0x1f]
        %s934 = scalar_lea.vmem %s4, 8
        %v935 = vld [vmem:[%s934] sm:$0x1f]
        %v936 = vld [vmem:[%s10] sm:$0x1f]
        %s937 = scalar_lea.vmem %s10, 8
        %v938 = vld [vmem:[%s937] sm:$0x1f]
        %v939 = vld [vmem:[%s644] sm:$0x1f]
        %vm940 = vcmask 520192
        %v941 = vsel %vm940, %v939, 0.0
        %942 = vadd.xlane.f32.xlu0 %v941
        %v943 = vpop.xlane.xlu0 %942
        %v944 = vmul.f32 %v943, %v691
        %v945 = vsub.f32 %v939, %v944
        %v946 = vmul.f32 %v945, %v945
        %v947 = vsel %vm940, %v946, 0.0
        %948 = vadd.xlane.f32.xlu0 %v947
        %v949 = vpop.xlane.xlu0 %948
        %v950 = vmul.f32 %v949, %v691
        %v951 = vadd.f32 %v950, 1e-05
        %v952 = vrsqrt.pop %v951
        %v953 = vmul.f32 %v945, %v952
        %v954 = vmul.f32 %v953, %v933
        %v955 = vadd.f32 %v954, %v935
        %v956 = vld [vmem:[#allocation6] sm:$0xff]
        %v957 = vld [vmem:[#allocation6 + $0x8] sm:$0xff]
        %v958 = vld [vmem:[#allocation6 + $0x10] sm:$0xff]
        %v959 = vld [vmem:[#allocation6 + $0x18] sm:$0xff]
        %v960 = vld [vmem:[#allocation6 + $0x20] sm:$0xff]
        %v961 = vld [vmem:[#allocation6 + $0x28] sm:$0xff]
        %v962 = vld [vmem:[#allocation6 + $0x30] sm:$0xff]
        %v963 = vld [vmem:[#allocation6 + $0x38] sm:$0xff]
        %v965 = vsel %vm666, %v955, 0
        %967 = vmatprep.subr.mxu0 0.0
        %968 = vmatpush1.msra.mxu0 %v956
        %969 = vmatprep.subr.mxu0 0.0
        %970 = vmatpush1.msra.mxu0 %v957
        %971 = vmatprep.subr.mxu0 0.0
        %972 = vmatpush1.msra.mxu0 %v958
        %973 = vmatprep.subr.mxu0 0.0
        %974 = vmatpush1.msra.mxu0 %v959
        %975 = vmatprep.subr.mxu0 0.0
        %976 = vmatpush1.msra.mxu0 %v960
        %977 = vmatprep.subr.mxu0 0.0
        %978 = vmatpush1.msra.mxu0 %v961
        %979 = vmatprep.subr.mxu0 0.0
        %980 = vmatpush1.msra.mxu0 %v962
        %981 = vmatprep.subr.mxu0 0.0
        %982 = vmatpush1.msra.mxu0 %v963
        %983 = vmatprep.subr.mxu0 0.0
        %984 = vmatpush1.msra.mxu0 0.0
        %985 = vmatprep.subr.mxu0 0.0
        %986 = vmatpush1.msra.mxu0 0.0
        %987 = vmatprep.subr.mxu0 0.0
        %988 = vmatpush1.msra.mxu0 0.0
        %989 = vmatprep.subr.mxu0 0.0
        %990 = vmatpush1.msra.mxu0 0.0
        %991 = vmatprep.subr.mxu0 0.0
        %992 = vmatpush1.msra.mxu0 0.0
        %993 = vmatprep.subr.mxu0 0.0
        %994 = vmatpush1.msra.mxu0 0.0
        %995 = vmatprep.subr.mxu0 0.0
        %996 = vmatpush1.msra.mxu0 0.0
        %997 = vmatprep.subr.mxu0 0.0
        %998 = vmatpush1.msra.mxu0 0.0
        %999 = vmatprep.subr.mxu0 0.0
        %1000 = vmatpush1.msra.mxu0 0.0
        %1001 = vmatprep.subr.mxu0 0.0
        %1002 = vmatpush1.msra.mxu0 0.0
        %1003 = vmatprep.subr.mxu0 0.0
        %1004 = vmatpush1.msra.mxu0 0.0
        %1005 = vmatprep.subr.mxu0 0.0
        %1006 = vmatpush1.msra.mxu0 0.0
        %1007 = vmatprep.subr.mxu0 0.0
        %1008 = vmatpush1.msra.mxu0 0.0
        %1009 = vmatprep.subr.mxu0 0.0
        %1010 = vmatpush1.msra.mxu0 0.0
        %1011 = vmatprep.subr.mxu0 0.0
        %1012 = vmatpush1.msra.mxu0 0.0
        %1013 = vmatprep.subr.mxu0 0.0
        %1014 = vmatpush1.msra.mxu0 0.0
        %1015 = vmatprep.subr.mxu0 0.0
        %1016 = vmatpush1.msra.mxu0 0.0
        %1017 = vmatprep.subr.mxu0 0.0
        %1018 = vmatpush1.msra.mxu0 0.0
        %1019 = vmatprep.subr.mxu0 0.0
        %1020 = vmatpush1.msra.mxu0 0.0
        %1021 = vmatprep.subr.mxu0 0.0
        %1022 = vmatpush1.msra.mxu0 0.0
        %1023 = vmatprep.subr.mxu0 0.0
        %1024 = vmatpush1.msra.mxu0 0.0
        %1025 = vmatprep.subr.mxu0 0.0
        %1026 = vmatpush1.msra.mxu0 0.0
        %1027 = vmatprep.subr.mxu0 0.0
        %1028 = vmatpush1.msra.mxu0 0.0
        %1029 = vmatprep.subr.mxu0 0.0
        %1030 = vmatpush1.msra.mxu0 0.0
        %1031 = vmatprep.mubr.f32.mxu0 0.0
        %1032 = vmatmul.mubr.f32.gmra.mrb[0].mxu0 %v965
        %v1033 = vpop.f32.mrb[0].mxu0
        %v1034 = vadd.f32 0.0, %v1033
        %v1035 = vpop.f32.mrb[0].mxu0
        %1036 = vdwg.mxu0
        %v1037 = vsel %vm655, 1, 0
        %vm1038 = vcmp.eq.s32.totalorder %v1037, 1
        %1040 = vrot.lane.b32.xlu0 %v1034, 64
        %v1041 = vpop.permute.xlu0 %1040
        %v1043 = vsel %vm1038, %v1034, %v1041
        %1045 = vrot.lane.b32.xlu0 %v1043, 64
        %v1046 = vpop.permute.xlu0 %1045
        %v1047 = vsel %vm666, %v1046, 0
        %v1050 = vsel %vm666, %v895, 0
        %v1053 = vsel %vm666, %v900, 0
        %v1056 = vsel %vm666, %v905, 0
        %v1059 = vsel %vm666, %v910, 0
        %v1062 = vsel %vm666, %v915, 0
        %v1065 = vsel %vm666, %v920, 0
        %v1068 = vsel %vm666, %v925, 0
        %v1071 = vsel %vm666, %v930, 0
        %1073 = vmatprep.subr.mxu0 0.0
        %1074 = vmatpush1.xpose.msra.mxu0 %v1050
        %1075 = vmatprep.subr.mxu0 0.0
        %1076 = vmatpush1.xpose.msra.mxu0 %v1053
        %1077 = vmatprep.subr.mxu0 0.0
        %1078 = vmatpush1.xpose.msra.mxu0 %v1056
        %1079 = vmatprep.subr.mxu0 0.0
        %1080 = vmatpush1.xpose.msra.mxu0 %v1059
        %1081 = vmatprep.subr.mxu0 0.0
        %1082 = vmatpush1.xpose.msra.mxu0 %v1062
        %1083 = vmatprep.subr.mxu0 0.0
        %1084 = vmatpush1.xpose.msra.mxu0 %v1065
        %1085 = vmatprep.subr.mxu0 0.0
        %1086 = vmatpush1.xpose.msra.mxu0 %v1068
        %1087 = vmatprep.subr.mxu0 0.0
        %1088 = vmatpush1.xpose.msra.mxu0 %v1071
        %1089 = vmatprep.subr.mxu0 0.0
        %1090 = vmatpush1.xpose.msra.mxu0 0.0
        %1091 = vmatprep.subr.mxu0 0.0
        %1092 = vmatpush1.xpose.msra.mxu0 0.0
        %1093 = vmatprep.subr.mxu0 0.0
        %1094 = vmatpush1.xpose.msra.mxu0 0.0
        %1095 = vmatprep.subr.mxu0 0.0
        %1096 = vmatpush1.xpose.msra.mxu0 0.0
        %1097 = vmatprep.subr.mxu0 0.0
        %1098 = vmatpush1.xpose.msra.mxu0 0.0
        %1099 = vmatprep.subr.mxu0 0.0
        %1100 = vmatpush1.xpose.msra.mxu0 0.0
        %1101 = vmatprep.subr.mxu0 0.0
        %1102 = vmatpush1.xpose.msra.mxu0 0.0
        %1103 = vmatprep.subr.mxu0 0.0
        %1104 = vmatpush1.xpose.msra.mxu0 0.0
        %1105 = vmatprep.subr.mxu0 0.0
        %1106 = vmatpush1.xpose.msra.mxu0 0.0
        %1107 = vmatprep.subr.mxu0 0.0
        %1108 = vmatpush1.xpose.msra.mxu0 0.0
        %1109 = vmatprep.subr.mxu0 0.0
        %1110 = vmatpush1.xpose.msra.mxu0 0.0
        %1111 = vmatprep.subr.mxu0 0.0
        %1112 = vmatpush1.xpose.msra.mxu0 0.0
        %1113 = vmatprep.subr.mxu0 0.0
        %1114 = vmatpush1.xpose.msra.mxu0 0.0
        %1115 = vmatprep.subr.mxu0 0.0
        %1116 = vmatpush1.xpose.msra.mxu0 0.0
        %1117 = vmatprep.subr.mxu0 0.0
        %1118 = vmatpush1.xpose.msra.mxu0 0.0
        %1119 = vmatprep.subr.mxu0 0.0
        %1120 = vmatpush1.xpose.msra.mxu0 0.0
        %1121 = vmatprep.subr.mxu0 0.0
        %1122 = vmatpush1.xpose.msra.mxu0 0.0
        %1123 = vmatprep.subr.mxu0 0.0
        %1124 = vmatpush1.xpose.msra.mxu0 0.0
        %1125 = vmatprep.subr.mxu0 0.0
        %1126 = vmatpush1.xpose.msra.mxu0 0.0
        %1127 = vmatprep.subr.mxu0 0.0
        %1128 = vmatpush1.xpose.msra.mxu0 0.0
        %1129 = vmatprep.subr.mxu0 0.0
        %1130 = vmatpush1.xpose.msra.mxu0 0.0
        %1131 = vmatprep.subr.mxu0 0.0
        %1132 = vmatpush1.xpose.msra.mxu0 0.0
        %1133 = vmatprep.subr.mxu0 0.0
        %1134 = vmatpush1.xpose.msra.mxu0 0.0
        %1135 = vmatprep.subr.mxu0 0.0
        %1136 = vmatpush1.xpose.msra.mxu0 0.0
        %1137 = vmatprep.mubr.f32.mxu0 0.0
        %1138 = vmatmul.mubr.f32.gmra.mrb[0].mxu0 %v1047
        %v1139 = vpop.f32.mrb[0].mxu0
        %v1140 = vadd.f32 0.0, %v1139
        %v1141 = vpop.f32.mrb[0].mxu0
        %1142 = vdwg.mxu0
        %v1143 = vsel %vm940, %v1140, -inf
        %v1144 = vrot.slane %v1143, 4
        %v1145 = vmax.f32 %v1143, %v1144
        %v1146 = vrot.slane %v1145, 2
        %v1147 = vmax.f32 %v1145, %v1146
        %v1148 = vrot.slane %v1147, 1
        %v1149 = vmax.f32 %v1147, %v1148
        %v1150 = vsub.f32 %v1140, %v1149
        %v1151 = vmul.f32 %v1150, 1.442695
        %v1152 = vpow.pop %v1151
        %v1153 = vsel %vm940, %v1152, 0.0
        %v1154 = vrot.slane %v1153, 4
        %v1155 = vadd.f32 %v1153, %v1154
        %v1156 = vrot.slane %v1155, 2
        %v1157 = vadd.f32 %v1155, %v1156
        %v1158 = vrot.slane %v1157, 1
        %v1159 = vadd.f32 %v1157, %v1158
        %v1160 = vrcp.pop %v1159
        %v1161 = vmul.f32 %v1152, %v1160
        %v1162 = vadd.f32 %v1161, 1e-08
        %v1163 = vsel %vm940, %v1162, 0.0
        %1164 = vadd.xlane.f32.xlu0 %v1163
        %v1165 = vpop.xlane.xlu0 %1164
        %v1166 = vrcp.pop %v1165
        %v1167 = vmul.f32 %v1162, %v1166
        %1168 = vrot.lane.b32.xlu0 %v895, 64
        %v1169 = vpop.permute.xlu0 %1168
        %1170 = vrot.lane.b32.xlu0 %v900, 64
        %v1171 = vpop.permute.xlu0 %1170
        %1172 = vrot.lane.b32.xlu0 %v905, 64
        %v1173 = vpop.permute.xlu0 %1172
        %1174 = vrot.lane.b32.xlu0 %v910, 64
        %v1175 = vpop.permute.xlu0 %1174
        %1176 = vrot.lane.b32.xlu0 %v915, 64
        %v1177 = vpop.permute.xlu0 %1176
        %1178 = vrot.lane.b32.xlu0 %v920, 64
        %v1179 = vpop.permute.xlu0 %1178
        %1180 = vrot.lane.b32.xlu0 %v925, 64
        %v1181 = vpop.permute.xlu0 %1180
        %1182 = vrot.lane.b32.xlu0 %v930, 64
        %v1183 = vpop.permute.xlu0 %1182
        %v1193 = vsel %vm666, %v1167, 0
        %1195 = vmatprep.subr.mxu0 0.0
        %1196 = vmatpush1.msra.mxu0 %v1169
        %1197 = vmatprep.subr.mxu0 0.0
        %1198 = vmatpush1.msra.mxu0 %v1171
        %1199 = vmatprep.subr.mxu0 0.0
        %1200 = vmatpush1.msra.mxu0 %v1173
        %1201 = vmatprep.subr.mxu0 0.0
        %1202 = vmatpush1.msra.mxu0 %v1175
        %1203 = vmatprep.subr.mxu0 0.0
        %1204 = vmatpush1.msra.mxu0 %v1177
        %1205 = vmatprep.subr.mxu0 0.0
        %1206 = vmatpush1.msra.mxu0 %v1179
        %1207 = vmatprep.subr.mxu0 0.0
        %1208 = vmatpush1.msra.mxu0 %v1181
        %1209 = vmatprep.subr.mxu0 0.0
        %1210 = vmatpush1.msra.mxu0 %v1183
        %1211 = vmatprep.subr.mxu0 0.0
        %1212 = vmatpush1.msra.mxu0 0.0
        %1213 = vmatprep.subr.mxu0 0.0
        %1214 = vmatpush1.msra.mxu0 0.0
        %1215 = vmatprep.subr.mxu0 0.0
        %1216 = vmatpush1.msra.mxu0 0.0
        %1217 = vmatprep.subr.mxu0 0.0
        %1218 = vmatpush1.msra.mxu0 0.0
        %1219 = vmatprep.subr.mxu0 0.0
        %1220 = vmatpush1.msra.mxu0 0.0
        %1221 = vmatprep.subr.mxu0 0.0
        %1222 = vmatpush1.msra.mxu0 0.0
        %1223 = vmatprep.subr.mxu0 0.0
        %1224 = vmatpush1.msra.mxu0 0.0
        %1225 = vmatprep.subr.mxu0 0.0
        %1226 = vmatpush1.msra.mxu0 0.0
        %1227 = vmatprep.subr.mxu0 0.0
        %1228 = vmatpush1.msra.mxu0 0.0
        %1229 = vmatprep.subr.mxu0 0.0
        %1230 = vmatpush1.msra.mxu0 0.0
        %1231 = vmatprep.subr.mxu0 0.0
        %1232 = vmatpush1.msra.mxu0 0.0
        %1233 = vmatprep.subr.mxu0 0.0
        %1234 = vmatpush1.msra.mxu0 0.0
        %1235 = vmatprep.subr.mxu0 0.0
        %1236 = vmatpush1.msra.mxu0 0.0
        %1237 = vmatprep.subr.mxu0 0.0
        %1238 = vmatpush1.msra.mxu0 0.0
        %1239 = vmatprep.subr.mxu0 0.0
        %1240 = vmatpush1.msra.mxu0 0.0
        %1241 = vmatprep.subr.mxu0 0.0
        %1242 = vmatpush1.msra.mxu0 0.0
        %1243 = vmatprep.subr.mxu0 0.0
        %1244 = vmatpush1.msra.mxu0 0.0
        %1245 = vmatprep.subr.mxu0 0.0
        %1246 = vmatpush1.msra.mxu0 0.0
        %1247 = vmatprep.subr.mxu0 0.0
        %1248 = vmatpush1.msra.mxu0 0.0
        %1249 = vmatprep.subr.mxu0 0.0
        %1250 = vmatpush1.msra.mxu0 0.0
        %1251 = vmatprep.subr.mxu0 0.0
        %1252 = vmatpush1.msra.mxu0 0.0
        %1253 = vmatprep.subr.mxu0 0.0
        %1254 = vmatpush1.msra.mxu0 0.0
        %1255 = vmatprep.subr.mxu0 0.0
        %1256 = vmatpush1.msra.mxu0 0.0
        %1257 = vmatprep.subr.mxu0 0.0
        %1258 = vmatpush1.msra.mxu0 0.0
        %1259 = vmatprep.mubr.f32.mxu0 0.0
        %1260 = vmatmul.mubr.f32.gmra.mrb[0].mxu0 %v1193
        %v1261 = vpop.f32.mrb[0].mxu0
        %v1262 = vadd.f32 0.0, %v1261
        %v1263 = vpop.f32.mrb[0].mxu0
        %1264 = vdwg.mxu0
        %v1265 = vld [vmem:[#allocation7] sm:$0xff]
        %v1266 = vld [vmem:[#allocation7 + $0x8] sm:$0xff]
        %v1267 = vld [vmem:[#allocation7 + $0x10] sm:$0xff]
        %v1268 = vld [vmem:[#allocation7 + $0x18] sm:$0xff]
        %v1269 = vld [vmem:[#allocation7 + $0x20] sm:$0xff]
        %v1270 = vld [vmem:[#allocation7 + $0x28] sm:$0xff]
        %v1271 = vld [vmem:[#allocation7 + $0x30] sm:$0xff]
        %v1272 = vld [vmem:[#allocation7 + $0x38] sm:$0xff]
        %v1273 = vld [vmem:[#allocation7 + $0x40] sm:$0xff]
        %v1274 = vld [vmem:[#allocation7 + $0x48] sm:$0xff]
        %v1275 = vld [vmem:[#allocation7 + $0x50] sm:$0xff]
        %v1276 = vld [vmem:[#allocation7 + $0x58] sm:$0xff]
        %v1277 = vld [vmem:[#allocation7 + $0x60] sm:$0xff]
        %v1278 = vld [vmem:[#allocation7 + $0x68] sm:$0xff]
        %v1279 = vld [vmem:[#allocation7 + $0x70] sm:$0xff]
        %v1280 = vld [vmem:[#allocation7 + $0x78] sm:$0xff]
        %v1281 = vld [vmem:[#allocation7 + $0x80] sm:$0xff]
        %v1282 = vld [vmem:[#allocation7 + $0x88] sm:$0xff]
        %v1283 = vld [vmem:[#allocation7 + $0x90] sm:$0xff]
        %v1284 = vld [vmem:[#allocation7 + $0x98] sm:$0xff]
        %v1285 = vld [vmem:[#allocation7 + $0xa0] sm:$0xff]
        %v1286 = vld [vmem:[#allocation7 + $0xa8] sm:$0xff]
        %v1287 = vld [vmem:[#allocation7 + $0xb0] sm:$0xff]
        %v1288 = vld [vmem:[#allocation7 + $0xb8] sm:$0xff]
        %v1290 = vsel %vm666, %v1262, 0
        %1292 = vmatprep.subr.mxu0 %v1266
        %1293 = vmatpush1.msra.mxu0 %v1265
        %1294 = vmatprep.subr.mxu0 %v1269
        %1295 = vmatpush1.msra.mxu0 %v1268
        %1296 = vmatprep.subr.mxu0 %v1272
        %1297 = vmatpush1.msra.mxu0 %v1271
        %1298 = vmatprep.subr.mxu0 %v1275
        %1299 = vmatpush1.msra.mxu0 %v1274
        %1300 = vmatprep.subr.mxu0 %v1278
        %1301 = vmatpush1.msra.mxu0 %v1277
        %1302 = vmatprep.subr.mxu0 %v1281
        %1303 = vmatpush1.msra.mxu0 %v1280
        %1304 = vmatprep.subr.mxu0 %v1284
        %1305 = vmatpush1.msra.mxu0 %v1283
        %1306 = vmatprep.subr.mxu0 %v1287
        %1307 = vmatpush1.msra.mxu0 %v1286
        %1308 = vmatprep.subr.mxu0 0.0
        %1309 = vmatpush1.msra.mxu0 0.0
        %1310 = vmatprep.subr.mxu0 0.0
        %1311 = vmatpush1.msra.mxu0 0.0
        %1312 = vmatprep.subr.mxu0 0.0
        %1313 = vmatpush1.msra.mxu0 0.0
        %1314 = vmatprep.subr.mxu0 0.0
        %1315 = vmatpush1.msra.mxu0 0.0
        %1316 = vmatprep.subr.mxu0 0.0
        %1317 = vmatpush1.msra.mxu0 0.0
        %1318 = vmatprep.subr.mxu0 0.0
        %1319 = vmatpush1.msra.mxu0 0.0
        %1320 = vmatprep.subr.mxu0 0.0
        %1321 = vmatpush1.msra.mxu0 0.0
        %1322 = vmatprep.subr.mxu0 0.0
        %1323 = vmatpush1.msra.mxu0 0.0
        %1324 = vmatprep.subr.mxu0 0.0
        %1325 = vmatpush1.msra.mxu0 0.0
        %1326 = vmatprep.subr.mxu0 0.0
        %1327 = vmatpush1.msra.mxu0 0.0
        %1328 = vmatprep.subr.mxu0 0.0
        %1329 = vmatpush1.msra.mxu0 0.0
        %1330 = vmatprep.subr.mxu0 0.0
        %1331 = vmatpush1.msra.mxu0 0.0
        %1332 = vmatprep.subr.mxu0 0.0
        %1333 = vmatpush1.msra.mxu0 0.0
        %1334 = vmatprep.subr.mxu0 0.0
        %1335 = vmatpush1.msra.mxu0 0.0
        %1336 = vmatprep.subr.mxu0 0.0
        %1337 = vmatpush1.msra.mxu0 0.0
        %1338 = vmatprep.subr.mxu0 0.0
        %1339 = vmatpush1.msra.mxu0 0.0
        %1340 = vmatprep.subr.mxu0 0.0
        %1341 = vmatpush1.msra.mxu0 0.0
        %1342 = vmatprep.subr.mxu0 0.0
        %1343 = vmatpush1.msra.mxu0 0.0
        %1344 = vmatprep.subr.mxu0 0.0
        %1345 = vmatpush1.msra.mxu0 0.0
        %1346 = vmatprep.subr.mxu0 0.0
        %1347 = vmatpush1.msra.mxu0 0.0
        %1348 = vmatprep.subr.mxu0 0.0
        %1349 = vmatpush1.msra.mxu0 0.0
        %1350 = vmatprep.subr.mxu0 0.0
        %1351 = vmatpush1.msra.mxu0 0.0
        %1352 = vmatprep.subr.mxu0 0.0
        %1353 = vmatpush1.msra.mxu0 0.0
        %1354 = vmatprep.subr.mxu0 0.0
        %1355 = vmatpush1.msra.mxu0 0.0
        %1356 = vmatprep.mubr.f32.mxu0 0.0
        %1357 = vmatmul.mubr.f32.gmra.mrb[0].mxu0 %v1290
        %v1358 = vpop.f32.mrb[0].mxu0
        %v1359 = vadd.f32 0.0, %v1358
        %v1360 = vpop.f32.mrb[0].mxu0
        %v1361 = vadd.f32 0.0, %v1360
        %1362 = vdwg.mxu0
        %1363 = vmatprep.subr.mxu0 0.0
        %1364 = vmatpush1.msra.mxu0 %v1267
        %1365 = vmatprep.subr.mxu0 0.0
        %1366 = vmatpush1.msra.mxu0 %v1270
        %1367 = vmatprep.subr.mxu0 0.0
        %1368 = vmatpush1.msra.mxu0 %v1273
        %1369 = vmatprep.subr.mxu0 0.0
        %1370 = vmatpush1.msra.mxu0 %v1276
        %1371 = vmatprep.subr.mxu0 0.0
        %1372 = vmatpush1.msra.mxu0 %v1279
        %1373 = vmatprep.subr.mxu0 0.0
        %1374 = vmatpush1.msra.mxu0 %v1282
        %1375 = vmatprep.subr.mxu0 0.0
        %1376 = vmatpush1.msra.mxu0 %v1285
        %1377 = vmatprep.subr.mxu0 0.0
        %1378 = vmatpush1.msra.mxu0 %v1288
        %1379 = vmatprep.subr.mxu0 0.0
        %1380 = vmatpush1.msra.mxu0 0.0
        %1381 = vmatprep.subr.mxu0 0.0
        %1382 = vmatpush1.msra.mxu0 0.0
        %1383 = vmatprep.subr.mxu0 0.0
        %1384 = vmatpush1.msra.mxu0 0.0
        %1385 = vmatprep.subr.mxu0 0.0
        %1386 = vmatpush1.msra.mxu0 0.0
        %1387 = vmatprep.subr.mxu0 0.0
        %1388 = vmatpush1.msra.mxu0 0.0
        %1389 = vmatprep.subr.mxu0 0.0
        %1390 = vmatpush1.msra.mxu0 0.0
        %1391 = vmatprep.subr.mxu0 0.0
        %1392 = vmatpush1.msra.mxu0 0.0
        %1393 = vmatprep.subr.mxu0 0.0
        %1394 = vmatpush1.msra.mxu0 0.0
        %1395 = vmatprep.subr.mxu0 0.0
        %1396 = vmatpush1.msra.mxu0 0.0
        %1397 = vmatprep.subr.mxu0 0.0
        %1398 = vmatpush1.msra.mxu0 0.0
        %1399 = vmatprep.subr.mxu0 0.0
        %1400 = vmatpush1.msra.mxu0 0.0
        %1401 = vmatprep.subr.mxu0 0.0
        %1402 = vmatpush1.msra.mxu0 0.0
        %1403 = vmatprep.subr.mxu0 0.0
        %1404 = vmatpush1.msra.mxu0 0.0
        %1405 = vmatprep.subr.mxu0 0.0
        %1406 = vmatpush1.msra.mxu0 0.0
        %1407 = vmatprep.subr.mxu0 0.0
        %1408 = vmatpush1.msra.mxu0 0.0
        %1409 = vmatprep.subr.mxu0 0.0
        %1410 = vmatpush1.msra.mxu0 0.0
        %1411 = vmatprep.subr.mxu0 0.0
        %1412 = vmatpush1.msra.mxu0 0.0
        %1413 = vmatprep.subr.mxu0 0.0
        %1414 = vmatpush1.msra.mxu0 0.0
        %1415 = vmatprep.subr.mxu0 0.0
        %1416 = vmatpush1.msra.mxu0 0.0
        %1417 = vmatprep.subr.mxu0 0.0
        %1418 = vmatpush1.msra.mxu0 0.0
        %1419 = vmatprep.subr.mxu0 0.0
        %1420 = vmatpush1.msra.mxu0 0.0
        %1421 = vmatprep.subr.mxu0 0.0
        %1422 = vmatpush1.msra.mxu0 0.0
        %1423 = vmatprep.subr.mxu0 0.0
        %1424 = vmatpush1.msra.mxu0 0.0
        %1425 = vmatprep.subr.mxu0 0.0
        %1426 = vmatpush1.msra.mxu0 0.0
        %1427 = vmatprep.mubr.f32.mxu0 0.0
        %1428 = vmatmul.mubr.f32.gmra.mrb[0].mxu0 %v1290
        %v1429 = vpop.f32.mrb[0].mxu0
        %v1430 = vadd.f32 0.0, %v1429
        %v1431 = vpop.f32.mrb[0].mxu0
        %1432 = vdwg.mxu0
        %1435 = vrot.lane.b32.xlu0 %v1359, 64
        %v1436 = vpop.permute.xlu0 %1435
        %1437 = vrot.lane.b32.xlu0 %v1361, 64
        %v1438 = vpop.permute.xlu0 %1437
        %v1439 = vsel %vm666, %v1436, %v1438
        %v1442 = vsel %vm1038, %v1361, %v1436
        %v1443 = vsel %vm1038, %v1430, %v1439
        %v1444 = vld [vmem:[%s8] sm:$0x1f]
        %v1445 = vld [vmem:[%s8 + $0x8] sm:$0x1f]
        %1448 = vrot.lane.b32.xlu0 %v1444, 64
        %v1449 = vpop.permute.xlu0 %1448
        %1450 = vrot.lane.b32.xlu0 %v1445, 64
        %v1451 = vpop.permute.xlu0 %1450
        %v1452 = vsel %vm666, %v1449, %v1451
        %v1455 = vadd.f32 %v1442, %v1449
        %v1456 = vadd.f32 %v1443, %v1452
        %v1457 = vld [vmem:[#allocation9] sm:$0xff]
        %v1458 = vld [vmem:[#allocation9 + $0x8] sm:$0xff]
        %v1459 = vld [vmem:[#allocation9 + $0x10] sm:$0xff]
        %v1460 = vld [vmem:[#allocation9 + $0x18] sm:$0xff]
        %v1461 = vld [vmem:[#allocation9 + $0x20] sm:$0xff]
        %v1462 = vld [vmem:[#allocation9 + $0x28] sm:$0xff]
        %v1463 = vld [vmem:[#allocation9 + $0x30] sm:$0xff]
        %v1464 = vld [vmem:[#allocation9 + $0x38] sm:$0xff]
        %v1465 = vld [vmem:[#allocation9 + $0x40] sm:$0xff]
        %v1466 = vld [vmem:[#allocation9 + $0x48] sm:$0xff]
        %v1467 = vld [vmem:[#allocation9 + $0x50] sm:$0xff]
        %v1468 = vld [vmem:[#allocation9 + $0x58] sm:$0xff]
        %v1469 = vld [vmem:[#allocation9 + $0x60] sm:$0xff]
        %v1470 = vld [vmem:[#allocation9 + $0x68] sm:$0xff]
        %v1471 = vld [vmem:[#allocation9 + $0x70] sm:$0xff]
        %v1472 = vld [vmem:[#allocation9 + $0x78] sm:$0xff]
        %v1473 = vld [vmem:[#allocation9 + $0x80] sm:$0xff]
        %v1474 = vld [vmem:[#allocation9 + $0x88] sm:$0xff]
        %v1475 = vld [vmem:[#allocation9 + $0x90] sm:$0xff]
        %v1476 = vld [vmem:[#allocation9 + $0x98] sm:$0xff]
        %v1477 = vld [vmem:[#allocation9 + $0xa0] sm:$0xff]
        %v1478 = vld [vmem:[#allocation9 + $0xa8] sm:$0xff]
        %v1479 = vld [vmem:[#allocation9 + $0xb0] sm:$0xff]
        %v1480 = vld [vmem:[#allocation9 + $0xb8] sm:$0xff]
        %v1482 = vsel %vm666, %v939, 0
        %1484 = vmatprep.subr.mxu0 %v1458
        %1485 = vmatpush1.msra.mxu0 %v1457
        %1486 = vmatprep.subr.mxu0 %v1461
        %1487 = vmatpush1.msra.mxu0 %v1460
        %1488 = vmatprep.subr.mxu0 %v1464
        %1489 = vmatpush1.msra.mxu0 %v1463
        %1490 = vmatprep.subr.mxu0 %v1467
        %1491 = vmatpush1.msra.mxu0 %v1466
        %1492 = vmatprep.subr.mxu0 %v1470
        %1493 = vmatpush1.msra.mxu0 %v1469
        %1494 = vmatprep.subr.mxu0 %v1473
        %1495 = vmatpush1.msra.mxu0 %v1472
        %1496 = vmatprep.subr.mxu0 %v1476
        %1497 = vmatpush1.msra.mxu0 %v1475
        %1498 = vmatprep.subr.mxu0 %v1479
        %1499 = vmatpush1.msra.mxu0 %v1478
        %1500 = vmatprep.subr.mxu0 0.0
        %1501 = vmatpush1.msra.mxu0 0.0
        %1502 = vmatprep.subr.mxu0 0.0
        %1503 = vmatpush1.msra.mxu0 0.0
        %1504 = vmatprep.subr.mxu0 0.0
        %1505 = vmatpush1.msra.mxu0 0.0
        %1506 = vmatprep.subr.mxu0 0.0
        %1507 = vmatpush1.msra.mxu0 0.0
        %1508 = vmatprep.subr.mxu0 0.0
        %1509 = vmatpush1.msra.mxu0 0.0
        %1510 = vmatprep.subr.mxu0 0.0
        %1511 = vmatpush1.msra.mxu0 0.0
        %1512 = vmatprep.subr.mxu0 0.0
        %1513 = vmatpush1.msra.mxu0 0.0
        %1514 = vmatprep.subr.mxu0 0.0
        %1515 = vmatpush1.msra.mxu0 0.0
        %1516 = vmatprep.subr.mxu0 0.0
        %1517 = vmatpush1.msra.mxu0 0.0
        %1518 = vmatprep.subr.mxu0 0.0
        %1519 = vmatpush1.msra.mxu0 0.0
        %1520 = vmatprep.subr.mxu0 0.0
        %1521 = vmatpush1.msra.mxu0 0.0
        %1522 = vmatprep.subr.mxu0 0.0
        %1523 = vmatpush1.msra.mxu0 0.0
        %1524 = vmatprep.subr.mxu0 0.0
        %1525 = vmatpush1.msra.mxu0 0.0
        %1526 = vmatprep.subr.mxu0 0.0
        %1527 = vmatpush1.msra.mxu0 0.0
        %1528 = vmatprep.subr.mxu0 0.0
        %1529 = vmatpush1.msra.mxu0 0.0
        %1530 = vmatprep.subr.mxu0 0.0
        %1531 = vmatpush1.msra.mxu0 0.0
        %1532 = vmatprep.subr.mxu0 0.0
        %1533 = vmatpush1.msra.mxu0 0.0
        %1534 = vmatprep.subr.mxu0 0.0
        %1535 = vmatpush1.msra.mxu0 0.0
        %1536 = vmatprep.subr.mxu0 0.0
        %1537 = vmatpush1.msra.mxu0 0.0
        %1538 = vmatprep.subr.mxu0 0.0
        %1539 = vmatpush1.msra.mxu0 0.0
        %1540 = vmatprep.subr.mxu0 0.0
        %1541 = vmatpush1.msra.mxu0 0.0
        %1542 = vmatprep.subr.mxu0 0.0
        %1543 = vmatpush1.msra.mxu0 0.0
        %1544 = vmatprep.subr.mxu0 0.0
        %1545 = vmatpush1.msra.mxu0 0.0
        %1546 = vmatprep.subr.mxu0 0.0
        %1547 = vmatpush1.msra.mxu0 0.0
        %1548 = vmatprep.mubr.f32.mxu0 0.0
        %1549 = vmatmul.mubr.f32.gmra.mrb[0].mxu0 %v1482
        %v1550 = vpop.f32.mrb[0].mxu0
        %v1551 = vadd.f32 0.0, %v1550
        %v1552 = vpop.f32.mrb[0].mxu0
        %v1553 = vadd.f32 0.0, %v1552
        %1554 = vdwg.mxu0
        %1555 = vmatprep.subr.mxu0 0.0
        %1556 = vmatpush1.msra.mxu0 %v1459
        %1557 = vmatprep.subr.mxu0 0.0
        %1558 = vmatpush1.msra.mxu0 %v1462
        %1559 = vmatprep.subr.mxu0 0.0
        %1560 = vmatpush1.msra.mxu0 %v1465
        %1561 = vmatprep.subr.mxu0 0.0
        %1562 = vmatpush1.msra.mxu0 %v1468
        %1563 = vmatprep.subr.mxu0 0.0
        %1564 = vmatpush1.msra.mxu0 %v1471
        %1565 = vmatprep.subr.mxu0 0.0
        %1566 = vmatpush1.msra.mxu0 %v1474
        %1567 = vmatprep.subr.mxu0 0.0
        %1568 = vmatpush1.msra.mxu0 %v1477
        %1569 = vmatprep.subr.mxu0 0.0
        %1570 = vmatpush1.msra.mxu0 %v1480
        %1571 = vmatprep.subr.mxu0 0.0
        %1572 = vmatpush1.msra.mxu0 0.0
        %1573 = vmatprep.subr.mxu0 0.0
        %1574 = vmatpush1.msra.mxu0 0.0
        %1575 = vmatprep.subr.mxu0 0.0
        %1576 = vmatpush1.msra.mxu0 0.0
        %1577 = vmatprep.subr.mxu0 0.0
        %1578 = vmatpush1.msra.mxu0 0.0
        %1579 = vmatprep.subr.mxu0 0.0
        %1580 = vmatpush1.msra.mxu0 0.0
        %1581 = vmatprep.subr.mxu0 0.0
        %1582 = vmatpush1.msra.mxu0 0.0
        %1583 = vmatprep.subr.mxu0 0.0
        %1584 = vmatpush1.msra.mxu0 0.0
        %1585 = vmatprep.subr.mxu0 0.0
        %1586 = vmatpush1.msra.mxu0 0.0
        %1587 = vmatprep.subr.mxu0 0.0
        %1588 = vmatpush1.msra.mxu0 0.0
        %1589 = vmatprep.subr.mxu0 0.0
        %1590 = vmatpush1.msra.mxu0 0.0
        %1591 = vmatprep.subr.mxu0 0.0
        %1592 = vmatpush1.msra.mxu0 0.0
        %1593 = vmatprep.subr.mxu0 0.0
        %1594 = vmatpush1.msra.mxu0 0.0
        %1595 = vmatprep.subr.mxu0 0.0
        %1596 = vmatpush1.msra.mxu0 0.0
        %1597 = vmatprep.subr.mxu0 0.0
        %1598 = vmatpush1.msra.mxu0 0.0
        %1599 = vmatprep.subr.mxu0 0.0
        %1600 = vmatpush1.msra.mxu0 0.0
        %1601 = vmatprep.subr.mxu0 0.0
        %1602 = vmatpush1.msra.mxu0 0.0
        %1603 = vmatprep.subr.mxu0 0.0
        %1604 = vmatpush1.msra.mxu0 0.0
        %1605 = vmatprep.subr.mxu0 0.0
        %1606 = vmatpush1.msra.mxu0 0.0
        %1607 = vmatprep.subr.mxu0 0.0
        %1608 = vmatpush1.msra.mxu0 0.0
        %1609 = vmatprep.subr.mxu0 0.0
        %1610 = vmatpush1.msra.mxu0 0.0
        %1611 = vmatprep.subr.mxu0 0.0
        %1612 = vmatpush1.msra.mxu0 0.0
        %1613 = vmatprep.subr.mxu0 0.0
        %1614 = vmatpush1.msra.mxu0 0.0
        %1615 = vmatprep.subr.mxu0 0.0
        %1616 = vmatpush1.msra.mxu0 0.0
        %1617 = vmatprep.subr.mxu0 0.0
        %1618 = vmatpush1.msra.mxu0 0.0
        %1619 = vmatprep.mubr.f32.mxu0 0.0
        %1620 = vmatmul.mubr.f32.gmra.mrb[0].mxu0 %v1482
        %v1621 = vpop.f32.mrb[0].mxu0
        %v1622 = vadd.f32 0.0, %v1621
        %v1623 = vpop.f32.mrb[0].mxu0
        %1624 = vdwg.mxu0
        %1627 = vrot.lane.b32.xlu0 %v1551, 64
        %v1628 = vpop.permute.xlu0 %1627
        %1629 = vrot.lane.b32.xlu0 %v1553, 64
        %v1630 = vpop.permute.xlu0 %1629
        %v1631 = vsel %vm666, %v1628, %v1630
        %v1634 = vsel %vm1038, %v1553, %v1628
        %v1635 = vsel %vm1038, %v1622, %v1631
        %v1636 = vld [vmem:[%s9] sm:$0x1f]
        %v1637 = vld [vmem:[%s9 + $0x8] sm:$0x1f]
        %1640 = vrot.lane.b32.xlu0 %v1636, 64
        %v1641 = vpop.permute.xlu0 %1640
        %1642 = vrot.lane.b32.xlu0 %v1637, 64
        %v1643 = vpop.permute.xlu0 %1642
        %v1644 = vsel %vm666, %v1641, %v1643
        %v1647 = vadd.f32 %v1634, %v1641
        %v1648 = vadd.f32 %v1635, %v1644
        %v1649 = vadd.f32 %v1455, %v1647
        %v1650 = vxor.u32 %v1649, 2147483648
        %v1651 = vmul.f32 %v1650, 1.442695
        %v1652 = vpow.pop %v1651
        %v1653 = vadd.f32 %v1652, 1.0
        %v1654 = vrcp.pop %v1653
        %v1655 = vmul.f32 1.0, %v1654
        %v1656 = vadd.f32 %v1456, %v1648
        %v1657 = vxor.u32 %v1656, 2147483648
        %v1658 = vmul.f32 %v1657, 1.442695
        %v1659 = vpow.pop %v1658
        %v1660 = vadd.f32 %v1659, 1.0
        %v1661 = vrcp.pop %v1660
        %v1662 = vmul.f32 1.0, %v1661
        %v1663 = vmul.f32 %v1655, %v1648
        %v1664 = vadd.f32 %v1456, %v1663
        %v1665 = vtanh.pop %v1664
        %v1666 = vsub.f32 1.0, %v1662
        %1668 = vrot.lane.b32.xlu0 %v1665, 64
        %v1669 = vpop.permute.xlu0 %1668
        %v1671 = vmul.f32 %v1666, %v1669
        %v1672 = vmul.f32 %v1662, %v939
        %v1673 = vadd.f32 %v1671, %v1672
        %v1674 = vsel %vm940, %v1673, 0.0
        %1675 = vadd.xlane.f32.xlu0 %v1674
        %v1676 = vpop.xlane.xlu0 %1675
        %v1677 = vmul.f32 %v1676, %v691
        %v1678 = vsub.f32 %v1673, %v1677
        %v1679 = vmul.f32 %v1678, %v1678
        %v1680 = vsel %vm940, %v1679, 0.0
        %1681 = vadd.xlane.f32.xlu0 %v1680
        %v1682 = vpop.xlane.xlu0 %1681
        %v1683 = vmul.f32 %v1682, %v691
        %v1684 = vadd.f32 %v1683, 1e-05
        %v1685 = vrsqrt.pop %v1684
        %v1686 = vmul.f32 %v1678, %v1685
        %v1687 = vmul.f32 %v1686, %v936
        %v1688 = vadd.f32 %v1687, %v938
        %v1689 = vld [vmem:[#allocation10] sm:$0xff]
        %v1690 = vld [vmem:[#allocation10 + $0x8] sm:$0xff]
        %v1691 = vld [vmem:[#allocation10 + $0x10] sm:$0xff]
        %v1692 = vld [vmem:[#allocation10 + $0x18] sm:$0xff]
        %v1693 = vld [vmem:[#allocation10 + $0x20] sm:$0xff]
        %v1694 = vld [vmem:[#allocation10 + $0x28] sm:$0xff]
        %v1695 = vld [vmem:[#allocation10 + $0x30] sm:$0xff]
        %v1696 = vld [vmem:[#allocation10 + $0x38] sm:$0xff]
        %v1697 = vld [vmem:[#allocation10 + $0x40] sm:$0xff]
        %v1698 = vld [vmem:[#allocation10 + $0x48] sm:$0xff]
        %v1699 = vld [vmem:[#allocation10 + $0x50] sm:$0xff]
        %v1700 = vld [vmem:[#allocation10 + $0x58] sm:$0xff]
        %v1701 = vld [vmem:[#allocation10 + $0x60] sm:$0xff]
        %v1702 = vld [vmem:[#allocation10 + $0x68] sm:$0xff]
        %v1703 = vld [vmem:[#allocation10 + $0x70] sm:$0xff]
        %v1704 = vld [vmem:[#allocation10 + $0x78] sm:$0xff]
        %v1706 = vsel %vm666, %v1688, 0
        %1708 = vmatprep.subr.mxu0 %v1690
        %1709 = vmatpush1.msra.mxu0 %v1689
        %1710 = vmatprep.subr.mxu0 %v1692
        %1711 = vmatpush1.msra.mxu0 %v1691
        %1712 = vmatprep.subr.mxu0 %v1694
        %1713 = vmatpush1.msra.mxu0 %v1693
        %1714 = vmatprep.subr.mxu0 %v1696
        %1715 = vmatpush1.msra.mxu0 %v1695
        %1716 = vmatprep.subr.mxu0 %v1698
        %1717 = vmatpush1.msra.mxu0 %v1697
        %1718 = vmatprep.subr.mxu0 %v1700
        %1719 = vmatpush1.msra.mxu0 %v1699
        %1720 = vmatprep.subr.mxu0 %v1702
        %1721 = vmatpush1.msra.mxu0 %v1701
        %1722 = vmatprep.subr.mxu0 %v1704
        %1723 = vmatpush1.msra.mxu0 %v1703
        %1724 = vmatprep.subr.mxu0 0.0
        %1725 = vmatpush1.msra.mxu0 0.0
        %1726 = vmatprep.subr.mxu0 0.0
        %1727 = vmatpush1.msra.mxu0 0.0
        %1728 = vmatprep.subr.mxu0 0.0
        %1729 = vmatpush1.msra.mxu0 0.0
        %1730 = vmatprep.subr.mxu0 0.0
        %1731 = vmatpush1.msra.mxu0 0.0
        %1732 = vmatprep.subr.mxu0 0.0
        %1733 = vmatpush1.msra.mxu0 0.0
        %1734 = vmatprep.subr.mxu0 0.0
        %1735 = vmatpush1.msra.mxu0 0.0
        %1736 = vmatprep.subr.mxu0 0.0
        %1737 = vmatpush1.msra.mxu0 0.0
        %1738 = vmatprep.subr.mxu0 0.0
        %1739 = vmatpush1.msra.mxu0 0.0
        %1740 = vmatprep.subr.mxu0 0.0
        %1741 = vmatpush1.msra.mxu0 0.0
        %1742 = vmatprep.subr.mxu0 0.0
        %1743 = vmatpush1.msra.mxu0 0.0
        %1744 = vmatprep.subr.mxu0 0.0
        %1745 = vmatpush1.msra.mxu0 0.0
        %1746 = vmatprep.subr.mxu0 0.0
        %1747 = vmatpush1.msra.mxu0 0.0
        %1748 = vmatprep.subr.mxu0 0.0
        %1749 = vmatpush1.msra.mxu0 0.0
        %1750 = vmatprep.subr.mxu0 0.0
        %1751 = vmatpush1.msra.mxu0 0.0
        %1752 = vmatprep.subr.mxu0 0.0
        %1753 = vmatpush1.msra.mxu0 0.0
        %1754 = vmatprep.subr.mxu0 0.0
        %1755 = vmatpush1.msra.mxu0 0.0
        %1756 = vmatprep.subr.mxu0 0.0
        %1757 = vmatpush1.msra.mxu0 0.0
        %1758 = vmatprep.subr.mxu0 0.0
        %1759 = vmatpush1.msra.mxu0 0.0
        %1760 = vmatprep.subr.mxu0 0.0
        %1761 = vmatpush1.msra.mxu0 0.0
        %1762 = vmatprep.subr.mxu0 0.0
        %1763 = vmatpush1.msra.mxu0 0.0
        %1764 = vmatprep.subr.mxu0 0.0
        %1765 = vmatpush1.msra.mxu0 0.0
        %1766 = vmatprep.subr.mxu0 0.0
        %1767 = vmatpush1.msra.mxu0 0.0
        %1768 = vmatprep.subr.mxu0 0.0
        %1769 = vmatpush1.msra.mxu0 0.0
        %1770 = vmatprep.subr.mxu0 0.0
        %1771 = vmatpush1.msra.mxu0 0.0
        %1772 = vmatprep.mubr.f32.mxu0 0.0
        %1773 = vmatmul.mubr.f32.gmra.mrb[0].mxu0 %v1706
        %v1774 = vpop.f32.mrb[0].mxu0
        %v1775 = vadd.f32 0.0, %v1774
        %v1776 = vpop.f32.mrb[0].mxu0
        %v1777 = vadd.f32 0.0, %v1776
        %1778 = vdwg.mxu0
        %v1779 = vsel %vm1038, %v1777, %v1775
        %v1780 = vld [vmem:[%s12] sm:$0x1f]
        %v1781 = vadd.f32 %v1779, %v1780
        %v1782 = vmax.f32 %v1781, 0.0
        %v1783 = vld [vmem:[#allocation12] sm:$0xff]
        %v1784 = vld [vmem:[#allocation12 + $0x8] sm:$0xff]
        %v1785 = vld [vmem:[#allocation12 + $0x10] sm:$0xff]
        %v1786 = vld [vmem:[#allocation12 + $0x18] sm:$0xff]
        %v1787 = vld [vmem:[#allocation12 + $0x20] sm:$0xff]
        %v1788 = vld [vmem:[#allocation12 + $0x28] sm:$0xff]
        %v1789 = vld [vmem:[#allocation12 + $0x30] sm:$0xff]
        %v1790 = vld [vmem:[#allocation12 + $0x38] sm:$0xff]
        %v1791 = vld [vmem:[#allocation12 + $0x40] sm:$0xff]
        %v1792 = vld [vmem:[#allocation12 + $0x48] sm:$0xff]
        %v1793 = vld [vmem:[#allocation12 + $0x50] sm:$0xff]
        %v1794 = vld [vmem:[#allocation12 + $0x58] sm:$0xff]
        %v1795 = vld [vmem:[#allocation12 + $0x60] sm:$0xff]
        %v1796 = vld [vmem:[#allocation12 + $0x68] sm:$0xff]
        %v1797 = vld [vmem:[#allocation12 + $0x70] sm:$0xff]
        %v1798 = vld [vmem:[#allocation12 + $0x78] sm:$0xff]
        %1799 = vmatprep.subr.mxu0 0.0
        %1800 = vmatpush1.msra.mxu0 %v1783
        %1801 = vmatprep.subr.mxu0 0.0
        %1802 = vmatpush1.msra.mxu0 %v1784
        %1803 = vmatprep.subr.mxu0 0.0
        %1804 = vmatpush1.msra.mxu0 %v1785
        %1805 = vmatprep.subr.mxu0 0.0
        %1806 = vmatpush1.msra.mxu0 %v1786
        %1807 = vmatprep.subr.mxu0 0.0
        %1808 = vmatpush1.msra.mxu0 %v1787
        %1809 = vmatprep.subr.mxu0 0.0
        %1810 = vmatpush1.msra.mxu0 %v1788
        %1811 = vmatprep.subr.mxu0 0.0
        %1812 = vmatpush1.msra.mxu0 %v1789
        %1813 = vmatprep.subr.mxu0 0.0
        %1814 = vmatpush1.msra.mxu0 %v1790
        %1815 = vmatprep.subr.mxu0 0.0
        %1816 = vmatpush1.msra.mxu0 %v1791
        %1817 = vmatprep.subr.mxu0 0.0
        %1818 = vmatpush1.msra.mxu0 %v1792
        %1819 = vmatprep.subr.mxu0 0.0
        %1820 = vmatpush1.msra.mxu0 %v1793
        %1821 = vmatprep.subr.mxu0 0.0
        %1822 = vmatpush1.msra.mxu0 %v1794
        %1823 = vmatprep.subr.mxu0 0.0
        %1824 = vmatpush1.msra.mxu0 %v1795
        %1825 = vmatprep.subr.mxu0 0.0
        %1826 = vmatpush1.msra.mxu0 %v1796
        %1827 = vmatprep.subr.mxu0 0.0
        %1828 = vmatpush1.msra.mxu0 %v1797
        %1829 = vmatprep.subr.mxu0 0.0
        %1830 = vmatpush1.msra.mxu0 %v1798
        %1831 = vmatprep.subr.mxu0 0.0
        %1832 = vmatpush1.msra.mxu0 0.0
        %1833 = vmatprep.subr.mxu0 0.0
        %1834 = vmatpush1.msra.mxu0 0.0
        %1835 = vmatprep.subr.mxu0 0.0
        %1836 = vmatpush1.msra.mxu0 0.0
        %1837 = vmatprep.subr.mxu0 0.0
        %1838 = vmatpush1.msra.mxu0 0.0
        %1839 = vmatprep.subr.mxu0 0.0
        %1840 = vmatpush1.msra.mxu0 0.0
        %1841 = vmatprep.subr.mxu0 0.0
        %1842 = vmatpush1.msra.mxu0 0.0
        %1843 = vmatprep.subr.mxu0 0.0
        %1844 = vmatpush1.msra.mxu0 0.0
        %1845 = vmatprep.subr.mxu0 0.0
        %1846 = vmatpush1.msra.mxu0 0.0
        %1847 = vmatprep.subr.mxu0 0.0
        %1848 = vmatpush1.msra.mxu0 0.0
        %1849 = vmatprep.subr.mxu0 0.0
        %1850 = vmatpush1.msra.mxu0 0.0
        %1851 = vmatprep.subr.mxu0 0.0
        %1852 = vmatpush1.msra.mxu0 0.0
        %1853 = vmatprep.subr.mxu0 0.0
        %1854 = vmatpush1.msra.mxu0 0.0
        %1855 = vmatprep.subr.mxu0 0.0
        %1856 = vmatpush1.msra.mxu0 0.0
        %1857 = vmatprep.subr.mxu0 0.0
        %1858 = vmatpush1.msra.mxu0 0.0
        %1859 = vmatprep.subr.mxu0 0.0
        %1860 = vmatpush1.msra.mxu0 0.0
        %1861 = vmatprep.subr.mxu0 0.0
        %1862 = vmatpush1.msra.mxu0 0.0
        %1863 = vmatprep.mubr.f32.mxu0 0.0
        %1864 = vmatmul.mubr.f32.gmra.mrb[0].mxu0 %v1782
        %v1865 = vpop.f32.mrb[0].mxu0
        %v1866 = vadd.f32 0.0, %v1865
        %v1867 = vpop.f32.mrb[0].mxu0
        %1868 = vdwg.mxu0
        %1870 = vrot.lane.b32.xlu0 %v1866, 64
        %v1871 = vpop.permute.xlu0 %1870
        %v1873 = vsel %vm1038, %v1866, %v1871
        %1875 = vrot.lane.b32.xlu0 %v1873, 64
        %v1876 = vpop.permute.xlu0 %1875
        %v1878 = vadd.f32 %v1673, %v1876
        %v1879 = vld [vmem:[%s14] sm:$0x1f]
        %v1880 = vadd.f32 %v1878, %v1879
        %v1881 = vsel %vm940, %v1880, 0.0
        %1882 = vadd.xlane.f32.xlu0 %v1881
        %v1883 = vpop.xlane.xlu0 %1882
        %v1884 = vmul.f32 %v1883, %v691
        %v1885 = vsub.f32 %v1880, %v1884
        %v1886 = vmul.f32 %v1885, %v1885
        %v1887 = vsel %vm940, %v1886, 0.0
        %1888 = vadd.xlane.f32.xlu0 %v1887
        %v1889 = vpop.xlane.xlu0 %1888
        %v1890 = vmul.f32 %v1889, %v691
        %v1891 = vadd.f32 %v1890, 1e-05
        %v1892 = vrsqrt.pop %v1891
        %v1893 = vmul.f32 %v1885, %v1892
        %v1894 = vmul.f32 %v1893, %v933
        %v1895 = vadd.f32 %v1894, %v935
        %v1897 = vsel %vm666, %v1895, 0
        %1899 = vmatprep.subr.mxu0 0.0
        %1900 = vmatpush1.msra.mxu0 %v956
        %1901 = vmatprep.subr.mxu0 0.0
        %1902 = vmatpush1.msra.mxu0 %v957
        %1903 = vmatprep.subr.mxu0 0.0
        %1904 = vmatpush1.msra.mxu0 %v958
        %1905 = vmatprep.subr.mxu0 0.0
        %1906 = vmatpush1.msra.mxu0 %v959
        %1907 = vmatprep.subr.mxu0 0.0
        %1908 = vmatpush1.msra.mxu0 %v960
        %1909 = vmatprep.subr.mxu0 0.0
        %1910 = vmatpush1.msra.mxu0 %v961
        %1911 = vmatprep.subr.mxu0 0.0
        %1912 = vmatpush1.msra.mxu0 %v962
        %1913 = vmatprep.subr.mxu0 0.0
        %1914 = vmatpush1.msra.mxu0 %v963
        %1915 = vmatprep.subr.mxu0 0.0
        %1916 = vmatpush1.msra.mxu0 0.0
        %1917 = vmatprep.subr.mxu0 0.0
        %1918 = vmatpush1.msra.mxu0 0.0
        %1919 = vmatprep.subr.mxu0 0.0
        %1920 = vmatpush1.msra.mxu0 0.0
        %1921 = vmatprep.subr.mxu0 0.0
        %1922 = vmatpush1.msra.mxu0 0.0
        %1923 = vmatprep.subr.mxu0 0.0
        %1924 = vmatpush1.msra.mxu0 0.0
        %1925 = vmatprep.subr.mxu0 0.0
        %1926 = vmatpush1.msra.mxu0 0.0
        %1927 = vmatprep.subr.mxu0 0.0
        %1928 = vmatpush1.msra.mxu0 0.0
        %1929 = vmatprep.subr.mxu0 0.0
        %1930 = vmatpush1.msra.mxu0 0.0
        %1931 = vmatprep.subr.mxu0 0.0
        %1932 = vmatpush1.msra.mxu0 0.0
        %1933 = vmatprep.subr.mxu0 0.0
        %1934 = vmatpush1.msra.mxu0 0.0
        %1935 = vmatprep.subr.mxu0 0.0
        %1936 = vmatpush1.msra.mxu0 0.0
        %1937 = vmatprep.subr.mxu0 0.0
        %1938 = vmatpush1.msra.mxu0 0.0
        %1939 = vmatprep.subr.mxu0 0.0
        %1940 = vmatpush1.msra.mxu0 0.0
        %1941 = vmatprep.subr.mxu0 0.0
        %1942 = vmatpush1.msra.mxu0 0.0
        %1943 = vmatprep.subr.mxu0 0.0
        %1944 = vmatpush1.msra.mxu0 0.0
        %1945 = vmatprep.subr.mxu0 0.0
        %1946 = vmatpush1.msra.mxu0 0.0
        %1947 = vmatprep.subr.mxu0 0.0
        %1948 = vmatpush1.msra.mxu0 0.0
        %1949 = vmatprep.subr.mxu0 0.0
        %1950 = vmatpush1.msra.mxu0 0.0
        %1951 = vmatprep.subr.mxu0 0.0
        %1952 = vmatpush1.msra.mxu0 0.0
        %1953 = vmatprep.subr.mxu0 0.0
        %1954 = vmatpush1.msra.mxu0 0.0
        %1955 = vmatprep.subr.mxu0 0.0
        %1956 = vmatpush1.msra.mxu0 0.0
        %1957 = vmatprep.subr.mxu0 0.0
        %1958 = vmatpush1.msra.mxu0 0.0
        %1959 = vmatprep.subr.mxu0 0.0
        %1960 = vmatpush1.msra.mxu0 0.0
        %1961 = vmatprep.subr.mxu0 0.0
        %1962 = vmatpush1.msra.mxu0 0.0
        %1963 = vmatprep.mubr.f32.mxu0 0.0
        %1964 = vmatmul.mubr.f32.gmra.mrb[0].mxu0 %v1897
        %v1965 = vpop.f32.mrb[0].mxu0
        %v1966 = vadd.f32 0.0, %v1965
        %v1967 = vpop.f32.mrb[0].mxu0
        %1968 = vdwg.mxu0
        %1970 = vrot.lane.b32.xlu0 %v1966, 64
        %v1971 = vpop.permute.xlu0 %1970
        %v1973 = vsel %vm1038, %v1966, %v1971
        %1975 = vrot.lane.b32.xlu0 %v1973, 64
        %v1976 = vpop.permute.xlu0 %1975
        %v1977 = vsel %vm666, %v1976, 0
        %1979 = vmatprep.subr.mxu0 0.0
        %1980 = vmatpush1.xpose.msra.mxu0 %v1050
        %1981 = vmatprep.subr.mxu0 0.0
        %1982 = vmatpush1.xpose.msra.mxu0 %v1053
        %1983 = vmatprep.subr.mxu0 0.0
        %1984 = vmatpush1.xpose.msra.mxu0 %v1056
        %1985 = vmatprep.subr.mxu0 0.0
        %1986 = vmatpush1.xpose.msra.mxu0 %v1059
        %1987 = vmatprep.subr.mxu0 0.0
        %1988 = vmatpush1.xpose.msra.mxu0 %v1062
        %1989 = vmatprep.subr.mxu0 0.0
        %1990 = vmatpush1.xpose.msra.mxu0 %v1065
        %1991 = vmatprep.subr.mxu0 0.0
        %1992 = vmatpush1.xpose.msra.mxu0 %v1068
        %1993 = vmatprep.subr.mxu0 0.0
        %1994 = vmatpush1.xpose.msra.mxu0 %v1071
        %1995 = vmatprep.subr.mxu0 0.0
        %1996 = vmatpush1.xpose.msra.mxu0 0.0
        %1997 = vmatprep.subr.mxu0 0.0
        %1998 = vmatpush1.xpose.msra.mxu0 0.0
        %1999 = vmatprep.subr.mxu0 0.0
        %2000 = vmatpush1.xpose.msra.mxu0 0.0
        %2001 = vmatprep.subr.mxu0 0.0
        %2002 = vmatpush1.xpose.msra.mxu0 0.0
        %2003 = vmatprep.subr.mxu0 0.0
        %2004 = vmatpush1.xpose.msra.mxu0 0.0
        %2005 = vmatprep.subr.mxu0 0.0
        %2006 = vmatpush1.xpose.msra.mxu0 0.0
        %2007 = vmatprep.subr.mxu0 0.0
        %2008 = vmatpush1.xpose.msra.mxu0 0.0
        %2009 = vmatprep.subr.mxu0 0.0
        %2010 = vmatpush1.xpose.msra.mxu0 0.0
        %2011 = vmatprep.subr.mxu0 0.0
        %2012 = vmatpush1.xpose.msra.mxu0 0.0
        %2013 = vmatprep.subr.mxu0 0.0
        %2014 = vmatpush1.xpose.msra.mxu0 0.0
        %2015 = vmatprep.subr.mxu0 0.0
        %2016 = vmatpush1.xpose.msra.mxu0 0.0
        %2017 = vmatprep.subr.mxu0 0.0
        %2018 = vmatpush1.xpose.msra.mxu0 0.0
        %2019 = vmatprep.subr.mxu0 0.0
        %2020 = vmatpush1.xpose.msra.mxu0 0.0
        %2021 = vmatprep.subr.mxu0 0.0
        %2022 = vmatpush1.xpose.msra.mxu0 0.0
        %2023 = vmatprep.subr.mxu0 0.0
        %2024 = vmatpush1.xpose.msra.mxu0 0.0
        %2025 = vmatprep.subr.mxu0 0.0
        %2026 = vmatpush1.xpose.msra.mxu0 0.0
        %2027 = vmatprep.subr.mxu0 0.0
        %2028 = vmatpush1.xpose.msra.mxu0 0.0
        %2029 = vmatprep.subr.mxu0 0.0
        %2030 = vmatpush1.xpose.msra.mxu0 0.0
        %2031 = vmatprep.subr.mxu0 0.0
        %2032 = vmatpush1.xpose.msra.mxu0 0.0
        %2033 = vmatprep.subr.mxu0 0.0
        %2034 = vmatpush1.xpose.msra.mxu0 0.0
        %2035 = vmatprep.subr.mxu0 0.0
        %2036 = vmatpush1.xpose.msra.mxu0 0.0
        %2037 = vmatprep.subr.mxu0 0.0
        %2038 = vmatpush1.xpose.msra.mxu0 0.0
        %2039 = vmatprep.subr.mxu0 0.0
        %2040 = vmatpush1.xpose.msra.mxu0 0.0
        %2041 = vmatprep.subr.mxu0 0.0
        %2042 = vmatpush1.xpose.msra.mxu0 0.0
        %2043 = vmatprep.mubr.f32.mxu0 0.0
        %2044 = vmatmul.mubr.f32.gmra.mrb[0].mxu0 %v1977
        %v2045 = vpop.f32.mrb[0].mxu0
        %v2046 = vadd.f32 0.0, %v2045
        %v2047 = vpop.f32.mrb[0].mxu0
        %2048 = vdwg.mxu0
        %v2049 = vsel %vm940, %v2046, -inf
        %v2050 = vrot.slane %v2049, 4
        %v2051 = vmax.f32 %v2049, %v2050
        %v2052 = vrot.slane %v2051, 2
        %v2053 = vmax.f32 %v2051, %v2052
        %v2054 = vrot.slane %v2053, 1
        %v2055 = vmax.f32 %v2053, %v2054
        %v2056 = vsub.f32 %v2046, %v2055
        %v2057 = vmul.f32 %v2056, 1.442695
        %v2058 = vpow.pop %v2057
        %v2059 = vsel %vm940, %v2058, 0.0
        %v2060 = vrot.slane %v2059, 4
        %v2061 = vadd.f32 %v2059, %v2060
        %v2062 = vrot.slane %v2061, 2
        %v2063 = vadd.f32 %v2061, %v2062
        %v2064 = vrot.slane %v2063, 1
        %v2065 = vadd.f32 %v2063, %v2064
        %v2066 = vrcp.pop %v2065
        %v2067 = vmul.f32 %v2058, %v2066
        %v2068 = vadd.f32 %v2067, 1e-08
        %v2069 = vsel %vm940, %v2068, 0.0
        %2070 = vadd.xlane.f32.xlu0 %v2069
        %v2071 = vpop.xlane.xlu0 %2070
        %v2072 = vrcp.pop %v2071
        %v2073 = vmul.f32 %v2068, %v2072
        %v2075 = vsel %vm666, %v2073, 0
        %2077 = vmatprep.subr.mxu0 0.0
        %2078 = vmatpush1.msra.mxu0 %v1169
        %2079 = vmatprep.subr.mxu0 0.0
        %2080 = vmatpush1.msra.mxu0 %v1171
        %2081 = vmatprep.subr.mxu0 0.0
        %2082 = vmatpush1.msra.mxu0 %v1173
        %2083 = vmatprep.subr.mxu0 0.0
        %2084 = vmatpush1.msra.mxu0 %v1175
        %2085 = vmatprep.subr.mxu0 0.0
        %2086 = vmatpush1.msra.mxu0 %v1177
        %2087 = vmatprep.subr.mxu0 0.0
        %2088 = vmatpush1.msra.mxu0 %v1179
        %2089 = vmatprep.subr.mxu0 0.0
        %2090 = vmatpush1.msra.mxu0 %v1181
        %2091 = vmatprep.subr.mxu0 0.0
        %2092 = vmatpush1.msra.mxu0 %v1183
        %2093 = vmatprep.subr.mxu0 0.0
        %2094 = vmatpush1.msra.mxu0 0.0
        %2095 = vmatprep.subr.mxu0 0.0
        %2096 = vmatpush1.msra.mxu0 0.0
        %2097 = vmatprep.subr.mxu0 0.0
        %2098 = vmatpush1.msra.mxu0 0.0
        %2099 = vmatprep.subr.mxu0 0.0
        %2100 = vmatpush1.msra.mxu0 0.0
        %2101 = vmatprep.subr.mxu0 0.0
        %2102 = vmatpush1.msra.mxu0 0.0
        %2103 = vmatprep.subr.mxu0 0.0
        %2104 = vmatpush1.msra.mxu0 0.0
        %2105 = vmatprep.subr.mxu0 0.0
        %2106 = vmatpush1.msra.mxu0 0.0
        %2107 = vmatprep.subr.mxu0 0.0
        %2108 = vmatpush1.msra.mxu0 0.0
        %2109 = vmatprep.subr.mxu0 0.0
        %2110 = vmatpush1.msra.mxu0 0.0
        %2111 = vmatprep.subr.mxu0 0.0
        %2112 = vmatpush1.msra.mxu0 0.0
        %2113 = vmatprep.subr.mxu0 0.0
        %2114 = vmatpush1.msra.mxu0 0.0
        %2115 = vmatprep.subr.mxu0 0.0
        %2116 = vmatpush1.msra.mxu0 0.0
        %2117 = vmatprep.subr.mxu0 0.0
        %2118 = vmatpush1.msra.mxu0 0.0
        %2119 = vmatprep.subr.mxu0 0.0
        %2120 = vmatpush1.msra.mxu0 0.0
        %2121 = vmatprep.subr.mxu0 0.0
        %2122 = vmatpush1.msra.mxu0 0.0
        %2123 = vmatprep.subr.mxu0 0.0
        %2124 = vmatpush1.msra.mxu0 0.0
        %2125 = vmatprep.subr.mxu0 0.0
        %2126 = vmatpush1.msra.mxu0 0.0
        %2127 = vmatprep.subr.mxu0 0.0
        %2128 = vmatpush1.msra.mxu0 0.0
        %2129 = vmatprep.subr.mxu0 0.0
        %2130 = vmatpush1.msra.mxu0 0.0
        %2131 = vmatprep.subr.mxu0 0.0
        %2132 = vmatpush1.msra.mxu0 0.0
        %2133 = vmatprep.subr.mxu0 0.0
        %2134 = vmatpush1.msra.mxu0 0.0
        %2135 = vmatprep.subr.mxu0 0.0
        %2136 = vmatpush1.msra.mxu0 0.0
        %2137 = vmatprep.subr.mxu0 0.0
        %2138 = vmatpush1.msra.mxu0 0.0
        %2139 = vmatprep.subr.mxu0 0.0
        %2140 = vmatpush1.msra.mxu0 0.0
        %2141 = vmatprep.mubr.f32.mxu0 0.0
        %2142 = vmatmul.mubr.f32.gmra.mrb[0].mxu0 %v2075
        %v2143 = vpop.f32.mrb[0].mxu0
        %v2144 = vadd.f32 0.0, %v2143
        %v2145 = vpop.f32.mrb[0].mxu0
        %2146 = vdwg.mxu0
        %v2148 = vsel %vm666, %v2144, 0
        %2150 = vmatprep.subr.mxu0 %v1266
        %2151 = vmatpush1.msra.mxu0 %v1265
        %2152 = vmatprep.subr.mxu0 %v1269
        %2153 = vmatpush1.msra.mxu0 %v1268
        %2154 = vmatprep.subr.mxu0 %v1272
        %2155 = vmatpush1.msra.mxu0 %v1271
        %2156 = vmatprep.subr.mxu0 %v1275
        %2157 = vmatpush1.msra.mxu0 %v1274
        %2158 = vmatprep.subr.mxu0 %v1278
        %2159 = vmatpush1.msra.mxu0 %v1277
        %2160 = vmatprep.subr.mxu0 %v1281
        %2161 = vmatpush1.msra.mxu0 %v1280
        %2162 = vmatprep.subr.mxu0 %v1284
        %2163 = vmatpush1.msra.mxu0 %v1283
        %2164 = vmatprep.subr.mxu0 %v1287
        %2165 = vmatpush1.msra.mxu0 %v1286
        %2166 = vmatprep.subr.mxu0 0.0
        %2167 = vmatpush1.msra.mxu0 0.0
        %2168 = vmatprep.subr.mxu0 0.0
        %2169 = vmatpush1.msra.mxu0 0.0
        %2170 = vmatprep.subr.mxu0 0.0
        %2171 = vmatpush1.msra.mxu0 0.0
        %2172 = vmatprep.subr.mxu0 0.0
        %2173 = vmatpush1.msra.mxu0 0.0
        %2174 = vmatprep.subr.mxu0 0.0
        %2175 = vmatpush1.msra.mxu0 0.0
        %2176 = vmatprep.subr.mxu0 0.0
        %2177 = vmatpush1.msra.mxu0 0.0
        %2178 = vmatprep.subr.mxu0 0.0
        %2179 = vmatpush1.msra.mxu0 0.0
        %2180 = vmatprep.subr.mxu0 0.0
        %2181 = vmatpush1.msra.mxu0 0.0
        %2182 = vmatprep.subr.mxu0 0.0
        %2183 = vmatpush1.msra.mxu0 0.0
        %2184 = vmatprep.subr.mxu0 0.0
        %2185 = vmatpush1.msra.mxu0 0.0
        %2186 = vmatprep.subr.mxu0 0.0
        %2187 = vmatpush1.msra.mxu0 0.0
        %2188 = vmatprep.subr.mxu0 0.0
        %2189 = vmatpush1.msra.mxu0 0.0
        %2190 = vmatprep.subr.mxu0 0.0
        %2191 = vmatpush1.msra.mxu0 0.0
        %2192 = vmatprep.subr.mxu0 0.0
        %2193 = vmatpush1.msra.mxu0 0.0
        %2194 = vmatprep.subr.mxu0 0.0
        %2195 = vmatpush1.msra.mxu0 0.0
        %2196 = vmatprep.subr.mxu0 0.0
        %2197 = vmatpush1.msra.mxu0 0.0
        %2198 = vmatprep.subr.mxu0 0.0
        %2199 = vmatpush1.msra.mxu0 0.0
        %2200 = vmatprep.subr.mxu0 0.0
        %2201 = vmatpush1.msra.mxu0 0.0
        %2202 = vmatprep.subr.mxu0 0.0
        %2203 = vmatpush1.msra.mxu0 0.0
        %2204 = vmatprep.subr.mxu0 0.0
        %2205 = vmatpush1.msra.mxu0 0.0
        %2206 = vmatprep.subr.mxu0 0.0
        %2207 = vmatpush1.msra.mxu0 0.0
        %2208 = vmatprep.subr.mxu0 0.0
        %2209 = vmatpush1.msra.mxu0 0.0
        %2210 = vmatprep.subr.mxu0 0.0
        %2211 = vmatpush1.msra.mxu0 0.0
        %2212 = vmatprep.subr.mxu0 0.0
        %2213 = vmatpush1.msra.mxu0 0.0
        %2214 = vmatprep.mubr.f32.mxu0 0.0
        %2215 = vmatmul.mubr.f32.gmra.mrb[0].mxu0 %v2148
        %v2216 = vpop.f32.mrb[0].mxu0
        %v2217 = vadd.f32 0.0, %v2216
        %v2218 = vpop.f32.mrb[0].mxu0
        %v2219 = vadd.f32 0.0, %v2218
        %2220 = vdwg.mxu0
        %2221 = vmatprep.subr.mxu0 0.0
        %2222 = vmatpush1.msra.mxu0 %v1267
        %2223 = vmatprep.subr.mxu0 0.0
        %2224 = vmatpush1.msra.mxu0 %v1270
        %2225 = vmatprep.subr.mxu0 0.0
        %2226 = vmatpush1.msra.mxu0 %v1273
        %2227 = vmatprep.subr.mxu0 0.0
        %2228 = vmatpush1.msra.mxu0 %v1276
        %2229 = vmatprep.subr.mxu0 0.0
        %2230 = vmatpush1.msra.mxu0 %v1279
        %2231 = vmatprep.subr.mxu0 0.0
        %2232 = vmatpush1.msra.mxu0 %v1282
        %2233 = vmatprep.subr.mxu0 0.0
        %2234 = vmatpush1.msra.mxu0 %v1285
        %2235 = vmatprep.subr.mxu0 0.0
        %2236 = vmatpush1.msra.mxu0 %v1288
        %2237 = vmatprep.subr.mxu0 0.0
        %2238 = vmatpush1.msra.mxu0 0.0
        %2239 = vmatprep.subr.mxu0 0.0
        %2240 = vmatpush1.msra.mxu0 0.0
        %2241 = vmatprep.subr.mxu0 0.0
        %2242 = vmatpush1.msra.mxu0 0.0
        %2243 = vmatprep.subr.mxu0 0.0
        %2244 = vmatpush1.msra.mxu0 0.0
        %2245 = vmatprep.subr.mxu0 0.0
        %2246 = vmatpush1.msra.mxu0 0.0
        %2247 = vmatprep.subr.mxu0 0.0
        %2248 = vmatpush1.msra.mxu0 0.0
        %2249 = vmatprep.subr.mxu0 0.0
        %2250 = vmatpush1.msra.mxu0 0.0
        %2251 = vmatprep.subr.mxu0 0.0
        %2252 = vmatpush1.msra.mxu0 0.0
        %2253 = vmatprep.subr.mxu0 0.0
        %2254 = vmatpush1.msra.mxu0 0.0
        %2255 = vmatprep.subr.mxu0 0.0
        %2256 = vmatpush1.msra.mxu0 0.0
        %2257 = vmatprep.subr.mxu0 0.0
        %2258 = vmatpush1.msra.mxu0 0.0
        %2259 = vmatprep.subr.mxu0 0.0
        %2260 = vmatpush1.msra.mxu0 0.0
        %2261 = vmatprep.subr.mxu0 0.0
        %2262 = vmatpush1.msra.mxu0 0.0
        %2263 = vmatprep.subr.mxu0 0.0
        %2264 = vmatpush1.msra.mxu0 0.0
        %2265 = vmatprep.subr.mxu0 0.0
        %2266 = vmatpush1.msra.mxu0 0.0
        %2267 = vmatprep.subr.mxu0 0.0
        %2268 = vmatpush1.msra.mxu0 0.0
        %2269 = vmatprep.subr.mxu0 0.0
        %2270 = vmatpush1.msra.mxu0 0.0
        %2271 = vmatprep.subr.mxu0 0.0
        %2272 = vmatpush1.msra.mxu0 0.0
        %2273 = vmatprep.subr.mxu0 0.0
        %2274 = vmatpush1.msra.mxu0 0.0
        %2275 = vmatprep.subr.mxu0 0.0
        %2276 = vmatpush1.msra.mxu0 0.0
        %2277 = vmatprep.subr.mxu0 0.0
        %2278 = vmatpush1.msra.mxu0 0.0
        %2279 = vmatprep.subr.mxu0 0.0
        %2280 = vmatpush1.msra.mxu0 0.0
        %2281 = vmatprep.subr.mxu0 0.0
        %2282 = vmatpush1.msra.mxu0 0.0
        %2283 = vmatprep.subr.mxu0 0.0
        %2284 = vmatpush1.msra.mxu0 0.0
        %2285 = vmatprep.mubr.f32.mxu0 0.0
        %2286 = vmatmul.mubr.f32.gmra.mrb[0].mxu0 %v2148
        %v2287 = vpop.f32.mrb[0].mxu0
        %v2288 = vadd.f32 0.0, %v2287
        %v2289 = vpop.f32.mrb[0].mxu0
        %2290 = vdwg.mxu0
        %2293 = vrot.lane.b32.xlu0 %v2217, 64
        %v2294 = vpop.permute.xlu0 %2293
        %2295 = vrot.lane.b32.xlu0 %v2219, 64
        %v2296 = vpop.permute.xlu0 %2295
        %v2297 = vsel %vm666, %v2294, %v2296
        %v2300 = vsel %vm1038, %v2219, %v2294
        %v2301 = vsel %vm1038, %v2288, %v2297
        %v2302 = vadd.f32 %v2300, %v1449
        %v2303 = vadd.f32 %v2301, %v1452
        %v2305 = vsel %vm666, %v1880, 0
        %2307 = vmatprep.subr.mxu0 %v1458
        %2308 = vmatpush1.msra.mxu0 %v1457
        %2309 = vmatprep.subr.mxu0 %v1461
        %2310 = vmatpush1.msra.mxu0 %v1460
        %2311 = vmatprep.subr.mxu0 %v1464
        %2312 = vmatpush1.msra.mxu0 %v1463
        %2313 = vmatprep.subr.mxu0 %v1467
        %2314 = vmatpush1.msra.mxu0 %v1466
        %2315 = vmatprep.subr.mxu0 %v1470
        %2316 = vmatpush1.msra.mxu0 %v1469
        %2317 = vmatprep.subr.mxu0 %v1473
        %2318 = vmatpush1.msra.mxu0 %v1472
        %2319 = vmatprep.subr.mxu0 %v1476
        %2320 = vmatpush1.msra.mxu0 %v1475
        %2321 = vmatprep.subr.mxu0 %v1479
        %2322 = vmatpush1.msra.mxu0 %v1478
        %2323 = vmatprep.subr.mxu0 0.0
        %2324 = vmatpush1.msra.mxu0 0.0
        %2325 = vmatprep.subr.mxu0 0.0
        %2326 = vmatpush1.msra.mxu0 0.0
        %2327 = vmatprep.subr.mxu0 0.0
        %2328 = vmatpush1.msra.mxu0 0.0
        %2329 = vmatprep.subr.mxu0 0.0
        %2330 = vmatpush1.msra.mxu0 0.0
        %2331 = vmatprep.subr.mxu0 0.0
        %2332 = vmatpush1.msra.mxu0 0.0
        %2333 = vmatprep.subr.mxu0 0.0
        %2334 = vmatpush1.msra.mxu0 0.0
        %2335 = vmatprep.subr.mxu0 0.0
        %2336 = vmatpush1.msra.mxu0 0.0
        %2337 = vmatprep.subr.mxu0 0.0
        %2338 = vmatpush1.msra.mxu0 0.0
        %2339 = vmatprep.subr.mxu0 0.0
        %2340 = vmatpush1.msra.mxu0 0.0
        %2341 = vmatprep.subr.mxu0 0.0
        %2342 = vmatpush1.msra.mxu0 0.0
        %2343 = vmatprep.subr.mxu0 0.0
        %2344 = vmatpush1.msra.mxu0 0.0
        %2345 = vmatprep.subr.mxu0 0.0
        %2346 = vmatpush1.msra.mxu0 0.0
        %2347 = vmatprep.subr.mxu0 0.0
        %2348 = vmatpush1.msra.mxu0 0.0
        %2349 = vmatprep.subr.mxu0 0.0
        %2350 = vmatpush1.msra.mxu0 0.0
        %2351 = vmatprep.subr.mxu0 0.0
        %2352 = vmatpush1.msra.mxu0 0.0
        %2353 = vmatprep.subr.mxu0 0.0
        %2354 = vmatpush1.msra.mxu0 0.0
        %2355 = vmatprep.subr.mxu0 0.0
        %2356 = vmatpush1.msra.mxu0 0.0
        %2357 = vmatprep.subr.mxu0 0.0
        %2358 = vmatpush1.msra.mxu0 0.0
        %2359 = vmatprep.subr.mxu0 0.0
        %2360 = vmatpush1.msra.mxu0 0.0
        %2361 = vmatprep.subr.mxu0 0.0
        %2362 = vmatpush1.msra.mxu0 0.0
        %2363 = vmatprep.subr.mxu0 0.0
        %2364 = vmatpush1.msra.mxu0 0.0
        %2365 = vmatprep.subr.mxu0 0.0
        %2366 = vmatpush1.msra.mxu0 0.0
        %2367 = vmatprep.subr.mxu0 0.0
        %2368 = vmatpush1.msra.mxu0 0.0
        %2369 = vmatprep.subr.mxu0 0.0
        %2370 = vmatpush1.msra.mxu0 0.0
        %2371 = vmatprep.mubr.f32.mxu0 0.0
        %2372 = vmatmul.mubr.f32.gmra.mrb[0].mxu0 %v2305
        %v2373 = vpop.f32.mrb[0].mxu0
        %v2374 = vadd.f32 0.0, %v2373
        %v2375 = vpop.f32.mrb[0].mxu0
        %v2376 = vadd.f32 0.0, %v2375
        %2377 = vdwg.mxu0
        %2378 = vmatprep.subr.mxu0 0.0
        %2379 = vmatpush1.msra.mxu0 %v1459
        %2380 = vmatprep.subr.mxu0 0.0
        %2381 = vmatpush1.msra.mxu0 %v1462
        %2382 = vmatprep.subr.mxu0 0.0
        %2383 = vmatpush1.msra.mxu0 %v1465
        %2384 = vmatprep.subr.mxu0 0.0
        %2385 = vmatpush1.msra.mxu0 %v1468
        %2386 = vmatprep.subr.mxu0 0.0
        %2387 = vmatpush1.msra.mxu0 %v1471
        %2388 = vmatprep.subr.mxu0 0.0
        %2389 = vmatpush1.msra.mxu0 %v1474
        %2390 = vmatprep.subr.mxu0 0.0
        %2391 = vmatpush1.msra.mxu0 %v1477
        %2392 = vmatprep.subr.mxu0 0.0
        %2393 = vmatpush1.msra.mxu0 %v1480
        %2394 = vmatprep.subr.mxu0 0.0
        %2395 = vmatpush1.msra.mxu0 0.0
        %2396 = vmatprep.subr.mxu0 0.0
        %2397 = vmatpush1.msra.mxu0 0.0
        %2398 = vmatprep.subr.mxu0 0.0
        %2399 = vmatpush1.msra.mxu0 0.0
        %2400 = vmatprep.subr.mxu0 0.0
        %2401 = vmatpush1.msra.mxu0 0.0
        %2402 = vmatprep.subr.mxu0 0.0
        %2403 = vmatpush1.msra.mxu0 0.0
        %2404 = vmatprep.subr.mxu0 0.0
        %2405 = vmatpush1.msra.mxu0 0.0
        %2406 = vmatprep.subr.mxu0 0.0
        %2407 = vmatpush1.msra.mxu0 0.0
        %2408 = vmatprep.subr.mxu0 0.0
        %2409 = vmatpush1.msra.mxu0 0.0
        %2410 = vmatprep.subr.mxu0 0.0
        %2411 = vmatpush1.msra.mxu0 0.0
        %2412 = vmatprep.subr.mxu0 0.0
        %2413 = vmatpush1.msra.mxu0 0.0
        %2414 = vmatprep.subr.mxu0 0.0
        %2415 = vmatpush1.msra.mxu0 0.0
        %2416 = vmatprep.subr.mxu0 0.0
        %2417 = vmatpush1.msra.mxu0 0.0
        %2418 = vmatprep.subr.mxu0 0.0
        %2419 = vmatpush1.msra.mxu0 0.0
        %2420 = vmatprep.subr.mxu0 0.0
        %2421 = vmatpush1.msra.mxu0 0.0
        %2422 = vmatprep.subr.mxu0 0.0
        %2423 = vmatpush1.msra.mxu0 0.0
        %2424 = vmatprep.subr.mxu0 0.0
        %2425 = vmatpush1.msra.mxu0 0.0
        %2426 = vmatprep.subr.mxu0 0.0
        %2427 = vmatpush1.msra.mxu0 0.0
        %2428 = vmatprep.subr.mxu0 0.0
        %2429 = vmatpush1.msra.mxu0 0.0
        %2430 = vmatprep.subr.mxu0 0.0
        %2431 = vmatpush1.msra.mxu0 0.0
        %2432 = vmatprep.subr.mxu0 0.0
        %2433 = vmatpush1.msra.mxu0 0.0
        %2434 = vmatprep.subr.mxu0 0.0
        %2435 = vmatpush1.msra.mxu0 0.0
        %2436 = vmatprep.subr.mxu0 0.0
        %2437 = vmatpush1.msra.mxu0 0.0
        %2438 = vmatprep.subr.mxu0 0.0
        %2439 = vmatpush1.msra.mxu0 0.0
        %2440 = vmatprep.subr.mxu0 0.0
        %2441 = vmatpush1.msra.mxu0 0.0
        %2442 = vmatprep.mubr.f32.mxu0 0.0
        %2443 = vmatmul.mubr.f32.gmra.mrb[0].mxu0 %v2305
        %v2444 = vpop.f32.mrb[0].mxu0
        %v2445 = vadd.f32 0.0, %v2444
        %v2446 = vpop.f32.mrb[0].mxu0
        %2447 = vdwg.mxu0
        %2450 = vrot.lane.b32.xlu0 %v2374, 64
        %v2451 = vpop.permute.xlu0 %2450
        %2452 = vrot.lane.b32.xlu0 %v2376, 64
        %v2453 = vpop.permute.xlu0 %2452
        %v2454 = vsel %vm666, %v2451, %v2453
        %v2457 = vsel %vm1038, %v2376, %v2451
        %v2458 = vsel %vm1038, %v2445, %v2454
        %v2459 = vadd.f32 %v2457, %v1641
        %v2460 = vadd.f32 %v2458, %v1644
        %v2461 = vadd.f32 %v2302, %v2459
        %v2462 = vxor.u32 %v2461, 2147483648
        %v2463 = vmul.f32 %v2462, 1.442695
        %v2464 = vpow.pop %v2463
        %v2465 = vadd.f32 %v2464, 1.0
        %v2466 = vrcp.pop %v2465
        %v2467 = vmul.f32 1.0, %v2466
        %v2468 = vadd.f32 %v2303, %v2460
        %v2469 = vxor.u32 %v2468, 2147483648
        %v2470 = vmul.f32 %v2469, 1.442695
        %v2471 = vpow.pop %v2470
        %v2472 = vadd.f32 %v2471, 1.0
        %v2473 = vrcp.pop %v2472
        %v2474 = vmul.f32 1.0, %v2473
        %v2475 = vmul.f32 %v2467, %v2460
        %v2476 = vadd.f32 %v2303, %v2475
        %v2477 = vtanh.pop %v2476
        %v2478 = vsub.f32 1.0, %v2474
        %2480 = vrot.lane.b32.xlu0 %v2477, 64
        %v2481 = vpop.permute.xlu0 %2480
        %v2483 = vmul.f32 %v2478, %v2481
        %v2484 = vmul.f32 %v2474, %v1880
        %v2485 = vadd.f32 %v2483, %v2484
        %v2486 = vsel %vm940, %v2485, 0.0
        %2487 = vadd.xlane.f32.xlu0 %v2486
        %v2488 = vpop.xlane.xlu0 %2487
        %v2489 = vmul.f32 %v2488, %v691
        %v2490 = vsub.f32 %v2485, %v2489
        %v2491 = vmul.f32 %v2490, %v2490
        %v2492 = vsel %vm940, %v2491, 0.0
        %2493 = vadd.xlane.f32.xlu0 %v2492
        %v2494 = vpop.xlane.xlu0 %2493
        %v2495 = vmul.f32 %v2494, %v691
        %v2496 = vadd.f32 %v2495, 1e-05
        %v2497 = vrsqrt.pop %v2496
        %v2498 = vmul.f32 %v2490, %v2497
        %v2499 = vmul.f32 %v2498, %v936
        %v2500 = vadd.f32 %v2499, %v938
        %v2502 = vsel %vm666, %v2500, 0
        %2504 = vmatprep.subr.mxu0 %v1690
        %2505 = vmatpush1.msra.mxu0 %v1689
        %2506 = vmatprep.subr.mxu0 %v1692
        %2507 = vmatpush1.msra.mxu0 %v1691
        %2508 = vmatprep.subr.mxu0 %v1694
        %2509 = vmatpush1.msra.mxu0 %v1693
        %2510 = vmatprep.subr.mxu0 %v1696
        %2511 = vmatpush1.msra.mxu0 %v1695
        %2512 = vmatprep.subr.mxu0 %v1698
        %2513 = vmatpush1.msra.mxu0 %v1697
        %2514 = vmatprep.subr.mxu0 %v1700
        %2515 = vmatpush1.msra.mxu0 %v1699
        %2516 = vmatprep.subr.mxu0 %v1702
        %2517 = vmatpush1.msra.mxu0 %v1701
        %2518 = vmatprep.subr.mxu0 %v1704
        %2519 = vmatpush1.msra.mxu0 %v1703
        %2520 = vmatprep.subr.mxu0 0.0
        %2521 = vmatpush1.msra.mxu0 0.0
        %2522 = vmatprep.subr.mxu0 0.0
        %2523 = vmatpush1.msra.mxu0 0.0
        %2524 = vmatprep.subr.mxu0 0.0
        %2525 = vmatpush1.msra.mxu0 0.0
        %2526 = vmatprep.subr.mxu0 0.0
        %2527 = vmatpush1.msra.mxu0 0.0
        %2528 = vmatprep.subr.mxu0 0.0
        %2529 = vmatpush1.msra.mxu0 0.0
        %2530 = vmatprep.subr.mxu0 0.0
        %2531 = vmatpush1.msra.mxu0 0.0
        %2532 = vmatprep.subr.mxu0 0.0
        %2533 = vmatpush1.msra.mxu0 0.0
        %2534 = vmatprep.subr.mxu0 0.0
        %2535 = vmatpush1.msra.mxu0 0.0
        %2536 = vmatprep.subr.mxu0 0.0
        %2537 = vmatpush1.msra.mxu0 0.0
        %2538 = vmatprep.subr.mxu0 0.0
        %2539 = vmatpush1.msra.mxu0 0.0
        %2540 = vmatprep.subr.mxu0 0.0
        %2541 = vmatpush1.msra.mxu0 0.0
        %2542 = vmatprep.subr.mxu0 0.0
        %2543 = vmatpush1.msra.mxu0 0.0
        %2544 = vmatprep.subr.mxu0 0.0
        %2545 = vmatpush1.msra.mxu0 0.0
        %2546 = vmatprep.subr.mxu0 0.0
        %2547 = vmatpush1.msra.mxu0 0.0
        %2548 = vmatprep.subr.mxu0 0.0
        %2549 = vmatpush1.msra.mxu0 0.0
        %2550 = vmatprep.subr.mxu0 0.0
        %2551 = vmatpush1.msra.mxu0 0.0
        %2552 = vmatprep.subr.mxu0 0.0
        %2553 = vmatpush1.msra.mxu0 0.0
        %2554 = vmatprep.subr.mxu0 0.0
        %2555 = vmatpush1.msra.mxu0 0.0
        %2556 = vmatprep.subr.mxu0 0.0
        %2557 = vmatpush1.msra.mxu0 0.0
        %2558 = vmatprep.subr.mxu0 0.0
        %2559 = vmatpush1.msra.mxu0 0.0
        %2560 = vmatprep.subr.mxu0 0.0
        %2561 = vmatpush1.msra.mxu0 0.0
        %2562 = vmatprep.subr.mxu0 0.0
        %2563 = vmatpush1.msra.mxu0 0.0
        %2564 = vmatprep.subr.mxu0 0.0
        %2565 = vmatpush1.msra.mxu0 0.0
        %2566 = vmatprep.subr.mxu0 0.0
        %2567 = vmatpush1.msra.mxu0 0.0
        %2568 = vmatprep.mubr.f32.mxu0 0.0
        %2569 = vmatmul.mubr.f32.gmra.mrb[0].mxu0 %v2502
        %v2570 = vpop.f32.mrb[0].mxu0
        %v2571 = vadd.f32 0.0, %v2570
        %v2572 = vpop.f32.mrb[0].mxu0
        %v2573 = vadd.f32 0.0, %v2572
        %2574 = vdwg.mxu0
        %v2575 = vsel %vm1038, %v2573, %v2571
        %v2576 = vadd.f32 %v2575, %v1780
        %v2577 = vmax.f32 %v2576, 0.0
        %2578 = vmatprep.subr.mxu0 0.0
        %2579 = vmatpush1.msra.mxu0 %v1783
        %2580 = vmatprep.subr.mxu0 0.0
        %2581 = vmatpush1.msra.mxu0 %v1784
        %2582 = vmatprep.subr.mxu0 0.0
        %2583 = vmatpush1.msra.mxu0 %v1785
        %2584 = vmatprep.subr.mxu0 0.0
        %2585 = vmatpush1.msra.mxu0 %v1786
        %2586 = vmatprep.subr.mxu0 0.0
        %2587 = vmatpush1.msra.mxu0 %v1787
        %2588 = vmatprep.subr.mxu0 0.0
        %2589 = vmatpush1.msra.mxu0 %v1788
        %2590 = vmatprep.subr.mxu0 0.0
        %2591 = vmatpush1.msra.mxu0 %v1789
        %2592 = vmatprep.subr.mxu0 0.0
        %2593 = vmatpush1.msra.mxu0 %v1790
        %2594 = vmatprep.subr.mxu0 0.0
        %2595 = vmatpush1.msra.mxu0 %v1791
        %2596 = vmatprep.subr.mxu0 0.0
        %2597 = vmatpush1.msra.mxu0 %v1792
        %2598 = vmatprep.subr.mxu0 0.0
        %2599 = vmatpush1.msra.mxu0 %v1793
        %2600 = vmatprep.subr.mxu0 0.0
        %2601 = vmatpush1.msra.mxu0 %v1794
        %2602 = vmatprep.subr.mxu0 0.0
        %2603 = vmatpush1.msra.mxu0 %v1795
        %2604 = vmatprep.subr.mxu0 0.0
        %2605 = vmatpush1.msra.mxu0 %v1796
        %2606 = vmatprep.subr.mxu0 0.0
        %2607 = vmatpush1.msra.mxu0 %v1797
        %2608 = vmatprep.subr.mxu0 0.0
        %2609 = vmatpush1.msra.mxu0 %v1798
        %2610 = vmatprep.subr.mxu0 0.0
        %2611 = vmatpush1.msra.mxu0 0.0
        %2612 = vmatprep.subr.mxu0 0.0
        %2613 = vmatpush1.msra.mxu0 0.0
        %2614 = vmatprep.subr.mxu0 0.0
        %2615 = vmatpush1.msra.mxu0 0.0
        %2616 = vmatprep.subr.mxu0 0.0
        %2617 = vmatpush1.msra.mxu0 0.0
        %2618 = vmatprep.subr.mxu0 0.0
        %2619 = vmatpush1.msra.mxu0 0.0
        %2620 = vmatprep.subr.mxu0 0.0
        %2621 = vmatpush1.msra.mxu0 0.0
        %2622 = vmatprep.subr.mxu0 0.0
        %2623 = vmatpush1.msra.mxu0 0.0
        %2624 = vmatprep.subr.mxu0 0.0
        %2625 = vmatpush1.msra.mxu0 0.0
        %2626 = vmatprep.subr.mxu0 0.0
        %2627 = vmatpush1.msra.mxu0 0.0
        %2628 = vmatprep.subr.mxu0 0.0
        %2629 = vmatpush1.msra.mxu0 0.0
        %2630 = vmatprep.subr.mxu0 0.0
        %2631 = vmatpush1.msra.mxu0 0.0
        %2632 = vmatprep.subr.mxu0 0.0
        %2633 = vmatpush1.msra.mxu0 0.0
        %2634 = vmatprep.subr.mxu0 0.0
        %2635 = vmatpush1.msra.mxu0 0.0
        %2636 = vmatprep.subr.mxu0 0.0
        %2637 = vmatpush1.msra.mxu0 0.0
        %2638 = vmatprep.subr.mxu0 0.0
        %2639 = vmatpush1.msra.mxu0 0.0
        %2640 = vmatprep.subr.mxu0 0.0
        %2641 = vmatpush1.msra.mxu0 0.0
        %2642 = vmatprep.mubr.f32.mxu0 0.0
        %2643 = vmatmul.mubr.f32.gmra.mrb[0].mxu0 %v2577
        %v2644 = vpop.f32.mrb[0].mxu0
        %v2645 = vadd.f32 0.0, %v2644
        %v2646 = vpop.f32.mrb[0].mxu0
        %2647 = vdwg.mxu0
        %2649 = vrot.lane.b32.xlu0 %v2645, 64
        %v2650 = vpop.permute.xlu0 %2649
        %v2652 = vsel %vm1038, %v2645, %v2650
        %2654 = vrot.lane.b32.xlu0 %v2652, 64
        %v2655 = vpop.permute.xlu0 %2654
        %v2657 = vadd.f32 %v2485, %v2655
        %v2658 = vadd.f32 %v2657, %v1879
        %v2659 = vsel %vm940, %v2658, 0.0
        %2660 = vadd.xlane.f32.xlu0 %v2659
        %v2661 = vpop.xlane.xlu0 %2660
        %v2662 = vmul.f32 %v2661, %v691
        %v2663 = vsub.f32 %v2658, %v2662
        %v2664 = vmul.f32 %v2663, %v2663
        %v2665 = vsel %vm940, %v2664, 0.0
        %2666 = vadd.xlane.f32.xlu0 %v2665
        %v2667 = vpop.xlane.xlu0 %2666
        %v2668 = vmul.f32 %v2667, %v691
        %v2669 = vadd.f32 %v2668, 1e-05
        %v2670 = vrsqrt.pop %v2669
        %v2671 = vmul.f32 %v2663, %v2670
        %v2672 = vmul.f32 %v2671, %v933
        %v2673 = vadd.f32 %v2672, %v935
        %v2675 = vsel %vm666, %v2673, 0
        %2677 = vmatprep.subr.mxu0 0.0
        %2678 = vmatpush1.msra.mxu0 %v956
        %2679 = vmatprep.subr.mxu0 0.0
        %2680 = vmatpush1.msra.mxu0 %v957
        %2681 = vmatprep.subr.mxu0 0.0
        %2682 = vmatpush1.msra.mxu0 %v958
        %2683 = vmatprep.subr.mxu0 0.0
        %2684 = vmatpush1.msra.mxu0 %v959
        %2685 = vmatprep.subr.mxu0 0.0
        %2686 = vmatpush1.msra.mxu0 %v960
        %2687 = vmatprep.subr.mxu0 0.0
        %2688 = vmatpush1.msra.mxu0 %v961
        %2689 = vmatprep.subr.mxu0 0.0
        %2690 = vmatpush1.msra.mxu0 %v962
        %2691 = vmatprep.subr.mxu0 0.0
        %2692 = vmatpush1.msra.mxu0 %v963
        %2693 = vmatprep.subr.mxu0 0.0
        %2694 = vmatpush1.msra.mxu0 0.0
        %2695 = vmatprep.subr.mxu0 0.0
        %2696 = vmatpush1.msra.mxu0 0.0
        %2697 = vmatprep.subr.mxu0 0.0
        %2698 = vmatpush1.msra.mxu0 0.0
        %2699 = vmatprep.subr.mxu0 0.0
        %2700 = vmatpush1.msra.mxu0 0.0
        %2701 = vmatprep.subr.mxu0 0.0
        %2702 = vmatpush1.msra.mxu0 0.0
        %2703 = vmatprep.subr.mxu0 0.0
        %2704 = vmatpush1.msra.mxu0 0.0
        %2705 = vmatprep.subr.mxu0 0.0
        %2706 = vmatpush1.msra.mxu0 0.0
        %2707 = vmatprep.subr.mxu0 0.0
        %2708 = vmatpush1.msra.mxu0 0.0
        %2709 = vmatprep.subr.mxu0 0.0
        %2710 = vmatpush1.msra.mxu0 0.0
        %2711 = vmatprep.subr.mxu0 0.0
        %2712 = vmatpush1.msra.mxu0 0.0
        %2713 = vmatprep.subr.mxu0 0.0
        %2714 = vmatpush1.msra.mxu0 0.0
        %2715 = vmatprep.subr.mxu0 0.0
        %2716 = vmatpush1.msra.mxu0 0.0
        %2717 = vmatprep.subr.mxu0 0.0
        %2718 = vmatpush1.msra.mxu0 0.0
        %2719 = vmatprep.subr.mxu0 0.0
        %2720 = vmatpush1.msra.mxu0 0.0
        %2721 = vmatprep.subr.mxu0 0.0
        %2722 = vmatpush1.msra.mxu0 0.0
        %2723 = vmatprep.subr.mxu0 0.0
        %2724 = vmatpush1.msra.mxu0 0.0
        %2725 = vmatprep.subr.mxu0 0.0
        %2726 = vmatpush1.msra.mxu0 0.0
        %2727 = vmatprep.subr.mxu0 0.0
        %2728 = vmatpush1.msra.mxu0 0.0
        %2729 = vmatprep.subr.mxu0 0.0
        %2730 = vmatpush1.msra.mxu0 0.0
        %2731 = vmatprep.subr.mxu0 0.0
        %2732 = vmatpush1.msra.mxu0 0.0
        %2733 = vmatprep.subr.mxu0 0.0
        %2734 = vmatpush1.msra.mxu0 0.0
        %2735 = vmatprep.subr.mxu0 0.0
        %2736 = vmatpush1.msra.mxu0 0.0
        %2737 = vmatprep.subr.mxu0 0.0
        %2738 = vmatpush1.msra.mxu0 0.0
        %2739 = vmatprep.subr.mxu0 0.0
        %2740 = vmatpush1.msra.mxu0 0.0
        %2741 = vmatprep.mubr.f32.mxu0 0.0
        %2742 = vmatmul.mubr.f32.gmra.mrb[0].mxu0 %v2675
        %v2743 = vpop.f32.mrb[0].mxu0
        %v2744 = vadd.f32 0.0, %v2743
        %v2745 = vpop.f32.mrb[0].mxu0
        %2746 = vdwg.mxu0
        %2748 = vrot.lane.b32.xlu0 %v2744, 64
        %v2749 = vpop.permute.xlu0 %2748
        %v2751 = vsel %vm1038, %v2744, %v2749
        %2753 = vrot.lane.b32.xlu0 %v2751, 64
        %v2754 = vpop.permute.xlu0 %2753
        %v2755 = vsel %vm666, %v2754, 0
        %2757 = vmatprep.subr.mxu0 0.0
        %2758 = vmatpush1.xpose.msra.mxu0 %v1050
        %2759 = vmatprep.subr.mxu0 0.0
        %2760 = vmatpush1.xpose.msra.mxu0 %v1053
        %2761 = vmatprep.subr.mxu0 0.0
        %2762 = vmatpush1.xpose.msra.mxu0 %v1056
        %2763 = vmatprep.subr.mxu0 0.0
        %2764 = vmatpush1.xpose.msra.mxu0 %v1059
        %2765 = vmatprep.subr.mxu0 0.0
        %2766 = vmatpush1.xpose.msra.mxu0 %v1062
        %2767 = vmatprep.subr.mxu0 0.0
        %2768 = vmatpush1.xpose.msra.mxu0 %v1065
        %2769 = vmatprep.subr.mxu0 0.0
        %2770 = vmatpush1.xpose.msra.mxu0 %v1068
        %2771 = vmatprep.subr.mxu0 0.0
        %2772 = vmatpush1.xpose.msra.mxu0 %v1071
        %2773 = vmatprep.subr.mxu0 0.0
        %2774 = vmatpush1.xpose.msra.mxu0 0.0
        %2775 = vmatprep.subr.mxu0 0.0
        %2776 = vmatpush1.xpose.msra.mxu0 0.0
        %2777 = vmatprep.subr.mxu0 0.0
        %2778 = vmatpush1.xpose.msra.mxu0 0.0
        %2779 = vmatprep.subr.mxu0 0.0
        %2780 = vmatpush1.xpose.msra.mxu0 0.0
        %2781 = vmatprep.subr.mxu0 0.0
        %2782 = vmatpush1.xpose.msra.mxu0 0.0
        %2783 = vmatprep.subr.mxu0 0.0
        %2784 = vmatpush1.xpose.msra.mxu0 0.0
        %2785 = vmatprep.subr.mxu0 0.0
        %2786 = vmatpush1.xpose.msra.mxu0 0.0
        %2787 = vmatprep.subr.mxu0 0.0
        %2788 = vmatpush1.xpose.msra.mxu0 0.0
        %2789 = vmatprep.subr.mxu0 0.0
        %2790 = vmatpush1.xpose.msra.mxu0 0.0
        %2791 = vmatprep.subr.mxu0 0.0
        %2792 = vmatpush1.xpose.msra.mxu0 0.0
        %2793 = vmatprep.subr.mxu0 0.0
        %2794 = vmatpush1.xpose.msra.mxu0 0.0
        %2795 = vmatprep.subr.mxu0 0.0
        %2796 = vmatpush1.xpose.msra.mxu0 0.0
        %2797 = vmatprep.subr.mxu0 0.0
        %2798 = vmatpush1.xpose.msra.mxu0 0.0
        %2799 = vmatprep.subr.mxu0 0.0
        %2800 = vmatpush1.xpose.msra.mxu0 0.0
        %2801 = vmatprep.subr.mxu0 0.0
        %2802 = vmatpush1.xpose.msra.mxu0 0.0
        %2803 = vmatprep.subr.mxu0 0.0
        %2804 = vmatpush1.xpose.msra.mxu0 0.0
        %2805 = vmatprep.subr.mxu0 0.0
        %2806 = vmatpush1.xpose.msra.mxu0 0.0
        %2807 = vmatprep.subr.mxu0 0.0
        %2808 = vmatpush1.xpose.msra.mxu0 0.0
        %2809 = vmatprep.subr.mxu0 0.0
        %2810 = vmatpush1.xpose.msra.mxu0 0.0
        %2811 = vmatprep.subr.mxu0 0.0
        %2812 = vmatpush1.xpose.msra.mxu0 0.0
        %2813 = vmatprep.subr.mxu0 0.0
        %2814 = vmatpush1.xpose.msra.mxu0 0.0
        %2815 = vmatprep.subr.mxu0 0.0
        %2816 = vmatpush1.xpose.msra.mxu0 0.0
        %2817 = vmatprep.subr.mxu0 0.0
        %2818 = vmatpush1.xpose.msra.mxu0 0.0
        %2819 = vmatprep.subr.mxu0 0.0
        %2820 = vmatpush1.xpose.msra.mxu0 0.0
        %2821 = vmatprep.mubr.f32.mxu0 0.0
        %2822 = vmatmul.mubr.f32.gmra.mrb[0].mxu0 %v2755
        %v2823 = vpop.f32.mrb[0].mxu0
        %v2824 = vadd.f32 0.0, %v2823
        %v2825 = vpop.f32.mrb[0].mxu0
        %2826 = vdwg.mxu0
        %v2827 = vsel %vm940, %v2824, -inf
        %v2828 = vrot.slane %v2827, 4
        %v2829 = vmax.f32 %v2827, %v2828
        %v2830 = vrot.slane %v2829, 2
        %v2831 = vmax.f32 %v2829, %v2830
        %v2832 = vrot.slane %v2831, 1
        %v2833 = vmax.f32 %v2831, %v2832
        %v2834 = vsub.f32 %v2824, %v2833
        %v2835 = vmul.f32 %v2834, 1.442695
        %v2836 = vpow.pop %v2835
        %v2837 = vsel %vm940, %v2836, 0.0
        %v2838 = vrot.slane %v2837, 4
        %v2839 = vadd.f32 %v2837, %v2838
        %v2840 = vrot.slane %v2839, 2
        %v2841 = vadd.f32 %v2839, %v2840
        %v2842 = vrot.slane %v2841, 1
        %v2843 = vadd.f32 %v2841, %v2842
        %v2844 = vrcp.pop %v2843
        %v2845 = vmul.f32 %v2836, %v2844
        %v2846 = vadd.f32 %v2845, 1e-08
        %v2847 = vsel %vm940, %v2846, 0.0
        %2848 = vadd.xlane.f32.xlu0 %v2847
        %v2849 = vpop.xlane.xlu0 %2848
        %v2850 = vrcp.pop %v2849
        %v2851 = vmul.f32 %v2846, %v2850
        %v2853 = vsel %vm666, %v2851, 0
        %2855 = vmatprep.subr.mxu0 0.0
        %2856 = vmatpush1.msra.mxu0 %v1169
        %2857 = vmatprep.subr.mxu0 0.0
        %2858 = vmatpush1.msra.mxu0 %v1171
        %2859 = vmatprep.subr.mxu0 0.0
        %2860 = vmatpush1.msra.mxu0 %v1173
        %2861 = vmatprep.subr.mxu0 0.0
        %2862 = vmatpush1.msra.mxu0 %v1175
        %2863 = vmatprep.subr.mxu0 0.0
        %2864 = vmatpush1.msra.mxu0 %v1177
        %2865 = vmatprep.subr.mxu0 0.0
        %2866 = vmatpush1.msra.mxu0 %v1179
        %2867 = vmatprep.subr.mxu0 0.0
        %2868 = vmatpush1.msra.mxu0 %v1181
        %2869 = vmatprep.subr.mxu0 0.0
        %2870 = vmatpush1.msra.mxu0 %v1183
        %2871 = vmatprep.subr.mxu0 0.0
        %2872 = vmatpush1.msra.mxu0 0.0
        %2873 = vmatprep.subr.mxu0 0.0
        %2874 = vmatpush1.msra.mxu0 0.0
        %2875 = vmatprep.subr.mxu0 0.0
        %2876 = vmatpush1.msra.mxu0 0.0
        %2877 = vmatprep.subr.mxu0 0.0
        %2878 = vmatpush1.msra.mxu0 0.0
        %2879 = vmatprep.subr.mxu0 0.0
        %2880 = vmatpush1.msra.mxu0 0.0
        %2881 = vmatprep.subr.mxu0 0.0
        %2882 = vmatpush1.msra.mxu0 0.0
        %2883 = vmatprep.subr.mxu0 0.0
        %2884 = vmatpush1.msra.mxu0 0.0
        %2885 = vmatprep.subr.mxu0 0.0
        %2886 = vmatpush1.msra.mxu0 0.0
        %2887 = vmatprep.subr.mxu0 0.0
        %2888 = vmatpush1.msra.mxu0 0.0
        %2889 = vmatprep.subr.mxu0 0.0
        %2890 = vmatpush1.msra.mxu0 0.0
        %2891 = vmatprep.subr.mxu0 0.0
        %2892 = vmatpush1.msra.mxu0 0.0
        %2893 = vmatprep.subr.mxu0 0.0
        %2894 = vmatpush1.msra.mxu0 0.0
        %2895 = vmatprep.subr.mxu0 0.0
        %2896 = vmatpush1.msra.mxu0 0.0
        %2897 = vmatprep.subr.mxu0 0.0
        %2898 = vmatpush1.msra.mxu0 0.0
        %2899 = vmatprep.subr.mxu0 0.0
        %2900 = vmatpush1.msra.mxu0 0.0
        %2901 = vmatprep.subr.mxu0 0.0
        %2902 = vmatpush1.msra.mxu0 0.0
        %2903 = vmatprep.subr.mxu0 0.0
        %2904 = vmatpush1.msra.mxu0 0.0
        %2905 = vmatprep.subr.mxu0 0.0
        %2906 = vmatpush1.msra.mxu0 0.0
        %2907 = vmatprep.subr.mxu0 0.0
        %2908 = vmatpush1.msra.mxu0 0.0
        %2909 = vmatprep.subr.mxu0 0.0
        %2910 = vmatpush1.msra.mxu0 0.0
        %2911 = vmatprep.subr.mxu0 0.0
        %2912 = vmatpush1.msra.mxu0 0.0
        %2913 = vmatprep.subr.mxu0 0.0
        %2914 = vmatpush1.msra.mxu0 0.0
        %2915 = vmatprep.subr.mxu0 0.0
        %2916 = vmatpush1.msra.mxu0 0.0
        %2917 = vmatprep.subr.mxu0 0.0
        %2918 = vmatpush1.msra.mxu0 0.0
        %2919 = vmatprep.mubr.f32.mxu0 0.0
        %2920 = vmatmul.mubr.f32.gmra.mrb[0].mxu0 %v2853
        %v2921 = vpop.f32.mrb[0].mxu0
        %v2922 = vadd.f32 0.0, %v2921
        %v2923 = vpop.f32.mrb[0].mxu0
        %2924 = vdwg.mxu0
        %v2926 = vsel %vm666, %v2922, 0
        %2928 = vmatprep.subr.mxu0 %v1266
        %2929 = vmatpush1.msra.mxu0 %v1265
        %2930 = vmatprep.subr.mxu0 %v1269
        %2931 = vmatpush1.msra.mxu0 %v1268
        %2932 = vmatprep.subr.mxu0 %v1272
        %2933 = vmatpush1.msra.mxu0 %v1271
        %2934 = vmatprep.subr.mxu0 %v1275
        %2935 = vmatpush1.msra.mxu0 %v1274
        %2936 = vmatprep.subr.mxu0 %v1278
        %2937 = vmatpush1.msra.mxu0 %v1277
        %2938 = vmatprep.subr.mxu0 %v1281
        %2939 = vmatpush1.msra.mxu0 %v1280
        %2940 = vmatprep.subr.mxu0 %v1284
        %2941 = vmatpush1.msra.mxu0 %v1283
        %2942 = vmatprep.subr.mxu0 %v1287
        %2943 = vmatpush1.msra.mxu0 %v1286
        %2944 = vmatprep.subr.mxu0 0.0
        %2945 = vmatpush1.msra.mxu0 0.0
        %2946 = vmatprep.subr.mxu0 0.0
        %2947 = vmatpush1.msra.mxu0 0.0
        %2948 = vmatprep.subr.mxu0 0.0
        %2949 = vmatpush1.msra.mxu0 0.0
        %2950 = vmatprep.subr.mxu0 0.0
        %2951 = vmatpush1.msra.mxu0 0.0
        %2952 = vmatprep.subr.mxu0 0.0
        %2953 = vmatpush1.msra.mxu0 0.0
        %2954 = vmatprep.subr.mxu0 0.0
        %2955 = vmatpush1.msra.mxu0 0.0
        %2956 = vmatprep.subr.mxu0 0.0
        %2957 = vmatpush1.msra.mxu0 0.0
        %2958 = vmatprep.subr.mxu0 0.0
        %2959 = vmatpush1.msra.mxu0 0.0
        %2960 = vmatprep.subr.mxu0 0.0
        %2961 = vmatpush1.msra.mxu0 0.0
        %2962 = vmatprep.subr.mxu0 0.0
        %2963 = vmatpush1.msra.mxu0 0.0
        %2964 = vmatprep.subr.mxu0 0.0
        %2965 = vmatpush1.msra.mxu0 0.0
        %2966 = vmatprep.subr.mxu0 0.0
        %2967 = vmatpush1.msra.mxu0 0.0
        %2968 = vmatprep.subr.mxu0 0.0
        %2969 = vmatpush1.msra.mxu0 0.0
        %2970 = vmatprep.subr.mxu0 0.0
        %2971 = vmatpush1.msra.mxu0 0.0
        %2972 = vmatprep.subr.mxu0 0.0
        %2973 = vmatpush1.msra.mxu0 0.0
        %2974 = vmatprep.subr.mxu0 0.0
        %2975 = vmatpush1.msra.mxu0 0.0
        %2976 = vmatprep.subr.mxu0 0.0
        %2977 = vmatpush1.msra.mxu0 0.0
        %2978 = vmatprep.subr.mxu0 0.0
        %2979 = vmatpush1.msra.mxu0 0.0
        %2980 = vmatprep.subr.mxu0 0.0
        %2981 = vmatpush1.msra.mxu0 0.0
        %2982 = vmatprep.subr.mxu0 0.0
        %2983 = vmatpush1.msra.mxu0 0.0
        %2984 = vmatprep.subr.mxu0 0.0
        %2985 = vmatpush1.msra.mxu0 0.0
        %2986 = vmatprep.subr.mxu0 0.0
        %2987 = vmatpush1.msra.mxu0 0.0
        %2988 = vmatprep.subr.mxu0 0.0
        %2989 = vmatpush1.msra.mxu0 0.0
        %2990 = vmatprep.subr.mxu0 0.0
        %2991 = vmatpush1.msra.mxu0 0.0
        %2992 = vmatprep.mubr.f32.mxu0 0.0
        %2993 = vmatmul.mubr.f32.gmra.mrb[0].mxu0 %v2926
        %v2994 = vpop.f32.mrb[0].mxu0
        %v2995 = vadd.f32 0.0, %v2994
        %v2996 = vpop.f32.mrb[0].mxu0
        %v2997 = vadd.f32 0.0, %v2996
        %2998 = vdwg.mxu0
        %2999 = vmatprep.subr.mxu0 0.0
        %3000 = vmatpush1.msra.mxu0 %v1267
        %3001 = vmatprep.subr.mxu0 0.0
        %3002 = vmatpush1.msra.mxu0 %v1270
        %3003 = vmatprep.subr.mxu0 0.0
        %3004 = vmatpush1.msra.mxu0 %v1273
        %3005 = vmatprep.subr.mxu0 0.0
        %3006 = vmatpush1.msra.mxu0 %v1276
        %3007 = vmatprep.subr.mxu0 0.0
        %3008 = vmatpush1.msra.mxu0 %v1279
        %3009 = vmatprep.subr.mxu0 0.0
        %3010 = vmatpush1.msra.mxu0 %v1282
        %3011 = vmatprep.subr.mxu0 0.0
        %3012 = vmatpush1.msra.mxu0 %v1285
        %3013 = vmatprep.subr.mxu0 0.0
        %3014 = vmatpush1.msra.mxu0 %v1288
        %3015 = vmatprep.subr.mxu0 0.0
        %3016 = vmatpush1.msra.mxu0 0.0
        %3017 = vmatprep.subr.mxu0 0.0
        %3018 = vmatpush1.msra.mxu0 0.0
        %3019 = vmatprep.subr.mxu0 0.0
        %3020 = vmatpush1.msra.mxu0 0.0
        %3021 = vmatprep.subr.mxu0 0.0
        %3022 = vmatpush1.msra.mxu0 0.0
        %3023 = vmatprep.subr.mxu0 0.0
        %3024 = vmatpush1.msra.mxu0 0.0
        %3025 = vmatprep.subr.mxu0 0.0
        %3026 = vmatpush1.msra.mxu0 0.0
        %3027 = vmatprep.subr.mxu0 0.0
        %3028 = vmatpush1.msra.mxu0 0.0
        %3029 = vmatprep.subr.mxu0 0.0
        %3030 = vmatpush1.msra.mxu0 0.0
        %3031 = vmatprep.subr.mxu0 0.0
        %3032 = vmatpush1.msra.mxu0 0.0
        %3033 = vmatprep.subr.mxu0 0.0
        %3034 = vmatpush1.msra.mxu0 0.0
        %3035 = vmatprep.subr.mxu0 0.0
        %3036 = vmatpush1.msra.mxu0 0.0
        %3037 = vmatprep.subr.mxu0 0.0
        %3038 = vmatpush1.msra.mxu0 0.0
        %3039 = vmatprep.subr.mxu0 0.0
        %3040 = vmatpush1.msra.mxu0 0.0
        %3041 = vmatprep.subr.mxu0 0.0
        %3042 = vmatpush1.msra.mxu0 0.0
        %3043 = vmatprep.subr.mxu0 0.0
        %3044 = vmatpush1.msra.mxu0 0.0
        %3045 = vmatprep.subr.mxu0 0.0
        %3046 = vmatpush1.msra.mxu0 0.0
        %3047 = vmatprep.subr.mxu0 0.0
        %3048 = vmatpush1.msra.mxu0 0.0
        %3049 = vmatprep.subr.mxu0 0.0
        %3050 = vmatpush1.msra.mxu0 0.0
        %3051 = vmatprep.subr.mxu0 0.0
        %3052 = vmatpush1.msra.mxu0 0.0
        %3053 = vmatprep.subr.mxu0 0.0
        %3054 = vmatpush1.msra.mxu0 0.0
        %3055 = vmatprep.subr.mxu0 0.0
        %3056 = vmatpush1.msra.mxu0 0.0
        %3057 = vmatprep.subr.mxu0 0.0
        %3058 = vmatpush1.msra.mxu0 0.0
        %3059 = vmatprep.subr.mxu0 0.0
        %3060 = vmatpush1.msra.mxu0 0.0
        %3061 = vmatprep.subr.mxu0 0.0
        %3062 = vmatpush1.msra.mxu0 0.0
        %3063 = vmatprep.mubr.f32.mxu0 0.0
        %3064 = vmatmul.mubr.f32.gmra.mrb[0].mxu0 %v2926
        %v3065 = vpop.f32.mrb[0].mxu0
        %v3066 = vadd.f32 0.0, %v3065
        %v3067 = vpop.f32.mrb[0].mxu0
        %3068 = vdwg.mxu0
        %3071 = vrot.lane.b32.xlu0 %v2995, 64
        %v3072 = vpop.permute.xlu0 %3071
        %3073 = vrot.lane.b32.xlu0 %v2997, 64
        %v3074 = vpop.permute.xlu0 %3073
        %v3075 = vsel %vm666, %v3072, %v3074
        %v3078 = vsel %vm1038, %v2997, %v3072
        %v3079 = vsel %vm1038, %v3066, %v3075
        %v3080 = vadd.f32 %v3078, %v1449
        %v3081 = vadd.f32 %v3079, %v1452
        %v3083 = vsel %vm666, %v2658, 0
        %3085 = vmatprep.subr.mxu0 %v1458
        %3086 = vmatpush1.msra.mxu0 %v1457
        %3087 = vmatprep.subr.mxu0 %v1461
        %3088 = vmatpush1.msra.mxu0 %v1460
        %3089 = vmatprep.subr.mxu0 %v1464
        %3090 = vmatpush1.msra.mxu0 %v1463
        %3091 = vmatprep.subr.mxu0 %v1467
        %3092 = vmatpush1.msra.mxu0 %v1466
        %3093 = vmatprep.subr.mxu0 %v1470
        %3094 = vmatpush1.msra.mxu0 %v1469
        %3095 = vmatprep.subr.mxu0 %v1473
        %3096 = vmatpush1.msra.mxu0 %v1472
        %3097 = vmatprep.subr.mxu0 %v1476
        %3098 = vmatpush1.msra.mxu0 %v1475
        %3099 = vmatprep.subr.mxu0 %v1479
        %3100 = vmatpush1.msra.mxu0 %v1478
        %3101 = vmatprep.subr.mxu0 0.0
        %3102 = vmatpush1.msra.mxu0 0.0
        %3103 = vmatprep.subr.mxu0 0.0
        %3104 = vmatpush1.msra.mxu0 0.0
        %3105 = vmatprep.subr.mxu0 0.0
        %3106 = vmatpush1.msra.mxu0 0.0
        %3107 = vmatprep.subr.mxu0 0.0
        %3108 = vmatpush1.msra.mxu0 0.0
        %3109 = vmatprep.subr.mxu0 0.0
        %3110 = vmatpush1.msra.mxu0 0.0
        %3111 = vmatprep.subr.mxu0 0.0
        %3112 = vmatpush1.msra.mxu0 0.0
        %3113 = vmatprep.subr.mxu0 0.0
        %3114 = vmatpush1.msra.mxu0 0.0
        %3115 = vmatprep.subr.mxu0 0.0
        %3116 = vmatpush1.msra.mxu0 0.0
        %3117 = vmatprep.subr.mxu0 0.0
        %3118 = vmatpush1.msra.mxu0 0.0
        %3119 = vmatprep.subr.mxu0 0.0
        %3120 = vmatpush1.msra.mxu0 0.0
        %3121 = vmatprep.subr.mxu0 0.0
        %3122 = vmatpush1.msra.mxu0 0.0
        %3123 = vmatprep.subr.mxu0 0.0
        %3124 = vmatpush1.msra.mxu0 0.0
        %3125 = vmatprep.subr.mxu0 0.0
        %3126 = vmatpush1.msra.mxu0 0.0
        %3127 = vmatprep.subr.mxu0 0.0
        %3128 = vmatpush1.msra.mxu0 0.0
        %3129 = vmatprep.subr.mxu0 0.0
        %3130 = vmatpush1.msra.mxu0 0.0
        %3131 = vmatprep.subr.mxu0 0.0
        %3132 = vmatpush1.msra.mxu0 0.0
        %3133 = vmatprep.subr.mxu0 0.0
        %3134 = vmatpush1.msra.mxu0 0.0
        %3135 = vmatprep.subr.mxu0 0.0
        %3136 = vmatpush1.msra.mxu0 0.0
        %3137 = vmatprep.subr.mxu0 0.0
        %3138 = vmatpush1.msra.mxu0 0.0
        %3139 = vmatprep.subr.mxu0 0.0
        %3140 = vmatpush1.msra.mxu0 0.0
        %3141 = vmatprep.subr.mxu0 0.0
        %3142 = vmatpush1.msra.mxu0 0.0
        %3143 = vmatprep.subr.mxu0 0.0
        %3144 = vmatpush1.msra.mxu0 0.0
        %3145 = vmatprep.subr.mxu0 0.0
        %3146 = vmatpush1.msra.mxu0 0.0
        %3147 = vmatprep.subr.mxu0 0.0
        %3148 = vmatpush1.msra.mxu0 0.0
        %3149 = vmatprep.mubr.f32.mxu0 0.0
        %3150 = vmatmul.mubr.f32.gmra.mrb[0].mxu0 %v3083
        %v3151 = vpop.f32.mrb[0].mxu0
        %v3152 = vadd.f32 0.0, %v3151
        %v3153 = vpop.f32.mrb[0].mxu0
        %v3154 = vadd.f32 0.0, %v3153
        %3155 = vdwg.mxu0
        %3156 = vmatprep.subr.mxu0 0.0
        %3157 = vmatpush1.msra.mxu0 %v1459
        %3158 = vmatprep.subr.mxu0 0.0
        %3159 = vmatpush1.msra.mxu0 %v1462
        %3160 = vmatprep.subr.mxu0 0.0
        %3161 = vmatpush1.msra.mxu0 %v1465
        %3162 = vmatprep.subr.mxu0 0.0
        %3163 = vmatpush1.msra.mxu0 %v1468
        %3164 = vmatprep.subr.mxu0 0.0
        %3165 = vmatpush1.msra.mxu0 %v1471
        %3166 = vmatprep.subr.mxu0 0.0
        %3167 = vmatpush1.msra.mxu0 %v1474
        %3168 = vmatprep.subr.mxu0 0.0
        %3169 = vmatpush1.msra.mxu0 %v1477
        %3170 = vmatprep.subr.mxu0 0.0
        %3171 = vmatpush1.msra.mxu0 %v1480
        %3172 = vmatprep.subr.mxu0 0.0
        %3173 = vmatpush1.msra.mxu0 0.0
        %3174 = vmatprep.subr.mxu0 0.0
        %3175 = vmatpush1.msra.mxu0 0.0
        %3176 = vmatprep.subr.mxu0 0.0
        %3177 = vmatpush1.msra.mxu0 0.0
        %3178 = vmatprep.subr.mxu0 0.0
        %3179 = vmatpush1.msra.mxu0 0.0
        %3180 = vmatprep.subr.mxu0 0.0
        %3181 = vmatpush1.msra.mxu0 0.0
        %3182 = vmatprep.subr.mxu0 0.0
        %3183 = vmatpush1.msra.mxu0 0.0
        %3184 = vmatprep.subr.mxu0 0.0
        %3185 = vmatpush1.msra.mxu0 0.0
        %3186 = vmatprep.subr.mxu0 0.0
        %3187 = vmatpush1.msra.mxu0 0.0
        %3188 = vmatprep.subr.mxu0 0.0
        %3189 = vmatpush1.msra.mxu0 0.0
        %3190 = vmatprep.subr.mxu0 0.0
        %3191 = vmatpush1.msra.mxu0 0.0
        %3192 = vmatprep.subr.mxu0 0.0
        %3193 = vmatpush1.msra.mxu0 0.0
        %3194 = vmatprep.subr.mxu0 0.0
        %3195 = vmatpush1.msra.mxu0 0.0
        %3196 = vmatprep.subr.mxu0 0.0
        %3197 = vmatpush1.msra.mxu0 0.0
        %3198 = vmatprep.subr.mxu0 0.0
        %3199 = vmatpush1.msra.mxu0 0.0
        %3200 = vmatprep.subr.mxu0 0.0
        %3201 = vmatpush1.msra.mxu0 0.0
        %3202 = vmatprep.subr.mxu0 0.0
        %3203 = vmatpush1.msra.mxu0 0.0
        %3204 = vmatprep.subr.mxu0 0.0
        %3205 = vmatpush1.msra.mxu0 0.0
        %3206 = vmatprep.subr.mxu0 0.0
        %3207 = vmatpush1.msra.mxu0 0.0
        %3208 = vmatprep.subr.mxu0 0.0
        %3209 = vmatpush1.msra.mxu0 0.0
        %3210 = vmatprep.subr.mxu0 0.0
        %3211 = vmatpush1.msra.mxu0 0.0
        %3212 = vmatprep.subr.mxu0 0.0
        %3213 = vmatpush1.msra.mxu0 0.0
        %3214 = vmatprep.subr.mxu0 0.0
        %3215 = vmatpush1.msra.mxu0 0.0
        %3216 = vmatprep.subr.mxu0 0.0
        %3217 = vmatpush1.msra.mxu0 0.0
        %3218 = vmatprep.subr.mxu0 0.0
        %3219 = vmatpush1.msra.mxu0 0.0
        %3220 = vmatprep.mubr.f32.mxu0 0.0
        %3221 = vmatmul.mubr.f32.gmra.mrb[0].mxu0 %v3083
        %v3222 = vpop.f32.mrb[0].mxu0
        %v3223 = vadd.f32 0.0, %v3222
        %v3224 = vpop.f32.mrb[0].mxu0
        %3225 = vdwg.mxu0
        %3228 = vrot.lane.b32.xlu0 %v3152, 64
        %v3229 = vpop.permute.xlu0 %3228
        %3230 = vrot.lane.b32.xlu0 %v3154, 64
        %v3231 = vpop.permute.xlu0 %3230
        %v3232 = vsel %vm666, %v3229, %v3231
        %v3235 = vsel %vm1038, %v3154, %v3229
        %v3236 = vsel %vm1038, %v3223, %v3232
        %v3237 = vadd.f32 %v3235, %v1641
        %v3238 = vadd.f32 %v3236, %v1644
        %v3239 = vadd.f32 %v3080, %v3237
        %v3240 = vxor.u32 %v3239, 2147483648
        %v3241 = vmul.f32 %v3240, 1.442695
        %v3242 = vpow.pop %v3241
        %v3243 = vadd.f32 %v3242, 1.0
        %v3244 = vrcp.pop %v3243
        %v3245 = vmul.f32 1.0, %v3244
        %v3246 = vadd.f32 %v3081, %v3238
        %v3247 = vxor.u32 %v3246, 2147483648
        %v3248 = vmul.f32 %v3247, 1.442695
        %v3249 = vpow.pop %v3248
        %v3250 = vadd.f32 %v3249, 1.0
        %v3251 = vrcp.pop %v3250
        %v3252 = vmul.f32 1.0, %v3251
        %v3253 = vmul.f32 %v3245, %v3238
        %v3254 = vadd.f32 %v3081, %v3253
        %v3255 = vtanh.pop %v3254
        %v3256 = vsub.f32 1.0, %v3252
        %3258 = vrot.lane.b32.xlu0 %v3255, 64
        %v3259 = vpop.permute.xlu0 %3258
        %v3261 = vmul.f32 %v3256, %v3259
        %v3262 = vmul.f32 %v3252, %v2658
        %v3263 = vadd.f32 %v3261, %v3262
        %v3264 = vsel %vm940, %v3263, 0.0
        %3265 = vadd.xlane.f32.xlu0 %v3264
        %v3266 = vpop.xlane.xlu0 %3265
        %v3267 = vmul.f32 %v3266, %v691
        %v3268 = vsub.f32 %v3263, %v3267
        %v3269 = vmul.f32 %v3268, %v3268
        %v3270 = vsel %vm940, %v3269, 0.0
        %3271 = vadd.xlane.f32.xlu0 %v3270
        %v3272 = vpop.xlane.xlu0 %3271
        %v3273 = vmul.f32 %v3272, %v691
        %v3274 = vadd.f32 %v3273, 1e-05
        %v3275 = vrsqrt.pop %v3274
        %v3276 = vmul.f32 %v3268, %v3275
        %v3277 = vmul.f32 %v3276, %v936
        %v3278 = vadd.f32 %v3277, %v938
        %v3280 = vsel %vm666, %v3278, 0
        %3282 = vmatprep.subr.mxu0 %v1690
        %3283 = vmatpush1.msra.mxu0 %v1689
        %3284 = vmatprep.subr.mxu0 %v1692
        %3285 = vmatpush1.msra.mxu0 %v1691
        %3286 = vmatprep.subr.mxu0 %v1694
        %3287 = vmatpush1.msra.mxu0 %v1693
        %3288 = vmatprep.subr.mxu0 %v1696
        %3289 = vmatpush1.msra.mxu0 %v1695
        %3290 = vmatprep.subr.mxu0 %v1698
        %3291 = vmatpush1.msra.mxu0 %v1697
        %3292 = vmatprep.subr.mxu0 %v1700
        %3293 = vmatpush1.msra.mxu0 %v1699
        %3294 = vmatprep.subr.mxu0 %v1702
        %3295 = vmatpush1.msra.mxu0 %v1701
        %3296 = vmatprep.subr.mxu0 %v1704
        %3297 = vmatpush1.msra.mxu0 %v1703
        %3298 = vmatprep.subr.mxu0 0.0
        %3299 = vmatpush1.msra.mxu0 0.0
        %3300 = vmatprep.subr.mxu0 0.0
        %3301 = vmatpush1.msra.mxu0 0.0
        %3302 = vmatprep.subr.mxu0 0.0
        %3303 = vmatpush1.msra.mxu0 0.0
        %3304 = vmatprep.subr.mxu0 0.0
        %3305 = vmatpush1.msra.mxu0 0.0
        %3306 = vmatprep.subr.mxu0 0.0
        %3307 = vmatpush1.msra.mxu0 0.0
        %3308 = vmatprep.subr.mxu0 0.0
        %3309 = vmatpush1.msra.mxu0 0.0
        %3310 = vmatprep.subr.mxu0 0.0
        %3311 = vmatpush1.msra.mxu0 0.0
        %3312 = vmatprep.subr.mxu0 0.0
        %3313 = vmatpush1.msra.mxu0 0.0
        %3314 = vmatprep.subr.mxu0 0.0
        %3315 = vmatpush1.msra.mxu0 0.0
        %3316 = vmatprep.subr.mxu0 0.0
        %3317 = vmatpush1.msra.mxu0 0.0
        %3318 = vmatprep.subr.mxu0 0.0
        %3319 = vmatpush1.msra.mxu0 0.0
        %3320 = vmatprep.subr.mxu0 0.0
        %3321 = vmatpush1.msra.mxu0 0.0
        %3322 = vmatprep.subr.mxu0 0.0
        %3323 = vmatpush1.msra.mxu0 0.0
        %3324 = vmatprep.subr.mxu0 0.0
        %3325 = vmatpush1.msra.mxu0 0.0
        %3326 = vmatprep.subr.mxu0 0.0
        %3327 = vmatpush1.msra.mxu0 0.0
        %3328 = vmatprep.subr.mxu0 0.0
        %3329 = vmatpush1.msra.mxu0 0.0
        %3330 = vmatprep.subr.mxu0 0.0
        %3331 = vmatpush1.msra.mxu0 0.0
        %3332 = vmatprep.subr.mxu0 0.0
        %3333 = vmatpush1.msra.mxu0 0.0
        %3334 = vmatprep.subr.mxu0 0.0
        %3335 = vmatpush1.msra.mxu0 0.0
        %3336 = vmatprep.subr.mxu0 0.0
        %3337 = vmatpush1.msra.mxu0 0.0
        %3338 = vmatprep.subr.mxu0 0.0
        %3339 = vmatpush1.msra.mxu0 0.0
        %3340 = vmatprep.subr.mxu0 0.0
        %3341 = vmatpush1.msra.mxu0 0.0
        %3342 = vmatprep.subr.mxu0 0.0
        %3343 = vmatpush1.msra.mxu0 0.0
        %3344 = vmatprep.subr.mxu0 0.0
        %3345 = vmatpush1.msra.mxu0 0.0
        %3346 = vmatprep.mubr.f32.mxu0 0.0
        %3347 = vmatmul.mubr.f32.gmra.mrb[0].mxu0 %v3280
        %v3348 = vpop.f32.mrb[0].mxu0
        %v3349 = vadd.f32 0.0, %v3348
        %v3350 = vpop.f32.mrb[0].mxu0
        %v3351 = vadd.f32 0.0, %v3350
        %3352 = vdwg.mxu0
        %v3353 = vsel %vm1038, %v3351, %v3349
        %v3354 = vadd.f32 %v3353, %v1780
        %v3355 = vmax.f32 %v3354, 0.0
        %3356 = vmatprep.subr.mxu0 0.0
        %3357 = vmatpush1.msra.mxu0 %v1783
        %3358 = vmatprep.subr.mxu0 0.0
        %3359 = vmatpush1.msra.mxu0 %v1784
        %3360 = vmatprep.subr.mxu0 0.0
        %3361 = vmatpush1.msra.mxu0 %v1785
        %3362 = vmatprep.subr.mxu0 0.0
        %3363 = vmatpush1.msra.mxu0 %v1786
        %3364 = vmatprep.subr.mxu0 0.0
        %3365 = vmatpush1.msra.mxu0 %v1787
        %3366 = vmatprep.subr.mxu0 0.0
        %3367 = vmatpush1.msra.mxu0 %v1788
        %3368 = vmatprep.subr.mxu0 0.0
        %3369 = vmatpush1.msra.mxu0 %v1789
        %3370 = vmatprep.subr.mxu0 0.0
        %3371 = vmatpush1.msra.mxu0 %v1790
        %3372 = vmatprep.subr.mxu0 0.0
        %3373 = vmatpush1.msra.mxu0 %v1791
        %3374 = vmatprep.subr.mxu0 0.0
        %3375 = vmatpush1.msra.mxu0 %v1792
        %3376 = vmatprep.subr.mxu0 0.0
        %3377 = vmatpush1.msra.mxu0 %v1793
        %3378 = vmatprep.subr.mxu0 0.0
        %3379 = vmatpush1.msra.mxu0 %v1794
        %3380 = vmatprep.subr.mxu0 0.0
        %3381 = vmatpush1.msra.mxu0 %v1795
        %3382 = vmatprep.subr.mxu0 0.0
        %3383 = vmatpush1.msra.mxu0 %v1796
        %3384 = vmatprep.subr.mxu0 0.0
        %3385 = vmatpush1.msra.mxu0 %v1797
        %3386 = vmatprep.subr.mxu0 0.0
        %3387 = vmatpush1.msra.mxu0 %v1798
        %3388 = vmatprep.subr.mxu0 0.0
        %3389 = vmatpush1.msra.mxu0 0.0
        %3390 = vmatprep.subr.mxu0 0.0
        %3391 = vmatpush1.msra.mxu0 0.0
        %3392 = vmatprep.subr.mxu0 0.0
        %3393 = vmatpush1.msra.mxu0 0.0
        %3394 = vmatprep.subr.mxu0 0.0
        %3395 = vmatpush1.msra.mxu0 0.0
        %3396 = vmatprep.subr.mxu0 0.0
        %3397 = vmatpush1.msra.mxu0 0.0
        %3398 = vmatprep.subr.mxu0 0.0
        %3399 = vmatpush1.msra.mxu0 0.0
        %3400 = vmatprep.subr.mxu0 0.0
        %3401 = vmatpush1.msra.mxu0 0.0
        %3402 = vmatprep.subr.mxu0 0.0
        %3403 = vmatpush1.msra.mxu0 0.0
        %3404 = vmatprep.subr.mxu0 0.0
        %3405 = vmatpush1.msra.mxu0 0.0
        %3406 = vmatprep.subr.mxu0 0.0
        %3407 = vmatpush1.msra.mxu0 0.0
        %3408 = vmatprep.subr.mxu0 0.0
        %3409 = vmatpush1.msra.mxu0 0.0
        %3410 = vmatprep.subr.mxu0 0.0
        %3411 = vmatpush1.msra.mxu0 0.0
        %3412 = vmatprep.subr.mxu0 0.0
        %3413 = vmatpush1.msra.mxu0 0.0
        %3414 = vmatprep.subr.mxu0 0.0
        %3415 = vmatpush1.msra.mxu0 0.0
        %3416 = vmatprep.subr.mxu0 0.0
        %3417 = vmatpush1.msra.mxu0 0.0
        %3418 = vmatprep.subr.mxu0 0.0
        %3419 = vmatpush1.msra.mxu0 0.0
        %3420 = vmatprep.mubr.f32.mxu0 0.0
        %3421 = vmatmul.mubr.f32.gmra.mrb[0].mxu0 %v3355
        %v3422 = vpop.f32.mrb[0].mxu0
        %v3423 = vadd.f32 0.0, %v3422
        %v3424 = vpop.f32.mrb[0].mxu0
        %3425 = vdwg.mxu0
        %3427 = vrot.lane.b32.xlu0 %v3423, 64
        %v3428 = vpop.permute.xlu0 %3427
        %v3430 = vsel %vm1038, %v3423, %v3428
        %3432 = vrot.lane.b32.xlu0 %v3430, 64
        %v3433 = vpop.permute.xlu0 %3432
        %v3435 = vadd.f32 %v3263, %v3433
        %v3436 = vadd.f32 %v3435, %v1879
        %3437 = vst.msk [vmem:[%s648] sm:$0x1f] %vm940, %v3436
        %3438 = vst.msk [vmem:[%s652] sm:$0x1f] %vm940, %v2846
        %p3439 = scmp.lt.s32.totalorder %s34, 1
        %s3440 = scalar_select %p3439, %s34, 1
        %s3441 = smul.addr %s3440, 8
        %s3442 = scalar_lea.vmem %s15, %s3441
        %p3443 = scmp.lt.s32.totalorder %s34, 1
        %s3444 = scalar_select %p3443, %s34, 1
        %s3445 = smul.addr %s3444, 8
        %s3446 = scalar_lea.vmem %s16, %s3445
        // Predicated region
        $region109: #{tpu_custom_call.1} parent=79 // pred_check
          %p3447 = pneg %p377
        $region110: #{tpu_custom_call.1} parent=79 // pred_check_branch
          %3449 = sbr.rel (%p3447) target = $region112
        $region111: #{tpu_custom_call.1} parent=79 // pred_region
          _
        $region112: #{tpu_custom_call.1} parent=79 // pred_fallthru
          _
        // Predicated region
        $region113: #{tpu_custom_call.1} parent=79 // pred_check
          %p3450 = pneg %p403
        $region114: #{tpu_custom_call.1} parent=79 // pred_check_branch
          %3452 = sbr.rel (%p3450) target = $region116
        $region115: #{tpu_custom_call.1} parent=79 // pred_region
          _
        $region116: #{tpu_custom_call.1} parent=79 // pred_fallthru
          _
      $region80: #{tpu_custom_call.1} parent=5 // pred_fallthru
        _
      %p3453 = scmp.le.s32.totalorder 2, %s29
      // Predicated region
      $region117: #{tpu_custom_call.1} parent=5 // pred_check
        %p3454 = pneg %p3453
      $region118: #{tpu_custom_call.1} parent=5 // pred_check_branch
        %3456 = sbr.rel (%p3454) target = $region120
      $region119: #{tpu_custom_call.1} parent=5 // pred_region
        %s3457 = ssub.s32 %s29, 2
        // Predicated region
        $region121: #{tpu_custom_call.1} parent=119 // pred_check
          %p3458 = pneg %p383
        $region122: #{tpu_custom_call.1} parent=119 // pred_check_branch
          %3460 = sbr.rel (%p3458) target = $region124
        $region123: #{tpu_custom_call.1} parent=119 // pred_region
          %p3461 = scmp.lt.s32.totalorder %s35, 1
          %s3462 = scalar_select %p3461, %s35, 1
          %s3463 = smul.addr %s3462, 8
          %s3464 = scalar_lea.vmem %s15, %s3463
        $region124: #{tpu_custom_call.1} parent=119 // pred_fallthru
          _
        // Predicated region
        $region125: #{tpu_custom_call.1} parent=119 // pred_check
          %p3465 = pneg %p409
        $region126: #{tpu_custom_call.1} parent=119 // pred_check_branch
          %3467 = sbr.rel (%p3465) target = $region128
        $region127: #{tpu_custom_call.1} parent=119 // pred_region
          %p3468 = scmp.lt.s32.totalorder %s35, 1
          %s3469 = scalar_select %p3468, %s35, 1
          %s3470 = smul.addr %s3469, 8
          %s3471 = scalar_lea.vmem %s16, %s3470
        $region128: #{tpu_custom_call.1} parent=119 // pred_fallthru
          _
      $region120: #{tpu_custom_call.1} parent=5 // pred_fallthru
        _
    $region6: #{tpu_custom_call.1} parent=1 // loop_footer
      %s33 = sadd.s32 1, %s29
    $region7: #{tpu_custom_call.1} parent=1 // loop_footer_branch
      %28 = sbr.rel target = $region3
    $region8: #{tpu_custom_call.1} parent=1 // loop_exit
      _
    %3472 = vsyncpa [#allocation3], 1
    %s3473 = scalar_lea.sflag [#allocation3], 1
    %3474 = vsyncpa %s3473, 1
    %3475 = vsyncpa [#allocation5], 1
    %3476 = vsyncpa [#allocation8], 1
    %3477 = vsyncpa [#allocation11], 1

</llo_original>
